<compile_context>
chip_gen: v5e
topology: v5e:2x2
jax: 0.10.0
libtpu: 0.0.40
codegen_flags: <defaults>
</compile_context>

<pallas_src>
import functools

import jax
import jax.numpy as jnp
from jax.experimental import pallas as pl
from jax.experimental.pallas import tpu as pltpu


# ----------------------------------------------------------------------------
# Kernel 1: 3x3 conv (stride 1, pad 1, no bias) + folded-BN shift (+ ReLU),
#           optionally emitting the per-image channel mean (SE squeeze) as a
#           fused epilogue output.
# ----------------------------------------------------------------------------

def _conv3x3_bn_kernel(xp_ref, w_ref, shift_ref, *out_refs, relu, emit_mean, hw):
    h, w = hw
    cin = xp_ref.shape[-1]
    cout = w_ref.shape[-1]

    xp = xp_ref[0]                                    # (H+2, W+2, Cin) bf16
    acc = jnp.zeros((h * w, cout), jnp.float32)
    for t in range(9):                                # 9 taps, unrolled
        dy, dx = divmod(t, 3)
        a = xp[dy:dy + h, dx:dx + w, :].reshape(h * w, cin)
        acc = acc + jnp.dot(a, w_ref[t], preferred_element_type=jnp.float32)

    y = acc + shift_ref[...]                          # folded BN shift (f32)
    if relu:
        y = jnp.maximum(y, 0.0)

    y_ref = out_refs[0]
    y_ref[0] = y.astype(y_ref.dtype)
    if emit_mean:
        # SE "squeeze": AdaptiveAvgPool2d(1) fused into the conv epilogue.
        out_refs[1][0] = jnp.mean(y, axis=0, keepdims=True)   # (1, Cout) f32


def conv3x3_bn(xp, w9, shift, *, relu, emit_mean):
    """xp: (N, H+2, W+2, Cin) bf16 zero-padded input.
    w9: (9, Cin, Cout) bf16 with the BN scale already folded in.
    shift: (1, Cout) f32 folded BN shift.
    Returns y: (N, H*W, Cout) bf16  [, mean: (N, 1, Cout) f32]."""
    n, hp, wp, cin = xp.shape
    h, w = hp - 2, wp - 2
    cout = w9.shape[-1]

    # TODO(synk): for large H*W tile the output rows with a 2-row halo instead
    # of one full image per grid step (current blocks fit VMEM easily at these
    # shapes: ~40 KiB input + 64 KiB accumulator per step).
    kernel = functools.partial(_conv3x3_bn_kernel, relu=relu,
                               emit_mean=emit_mean, hw=(h, w))

    out_shape = [jax.ShapeDtypeStruct((n, h * w, cout), jnp.bfloat16)]
    out_specs = [pl.BlockSpec((1, h * w, cout), lambda i: (i, 0, 0))]
    if emit_mean:
        out_shape.append(jax.ShapeDtypeStruct((n, 1, cout), jnp.float32))
        out_specs.append(pl.BlockSpec((1, 1, cout), lambda i: (i, 0, 0)))

    return pl.pallas_call(
        kernel,
        out_shape=tuple(out_shape) if emit_mean else out_shape[0],
        grid_spec=pltpu.PrefetchScalarGridSpec(
            num_scalar_prefetch=0,
            grid=(n,),
            in_specs=[
                pl.BlockSpec((1, hp, wp, cin), lambda i: (i, 0, 0, 0)),
                pl.BlockSpec((9, cin, cout), lambda i: (0, 0, 0)),
                pl.BlockSpec((1, cout), lambda i: (0, 0)),
            ],
            out_specs=tuple(out_specs) if emit_mean else out_specs[0],
        ),
        compiler_params=pltpu.CompilerParams(
            dimension_semantics=("parallel",)),
    )(xp, w9, shift)


# ----------------------------------------------------------------------------
# Kernel 2: SE excitation, batched over the whole batch in one block.
#           u = sigmoid(relu(pooled @ W1) @ W2)
# ----------------------------------------------------------------------------

def _se_excite_kernel(pooled_ref, w1_ref, w2_ref, u_ref):
    p = pooled_ref[...]                               # (N, C) f32
    hdn = jnp.maximum(
        jnp.dot(p, w1_ref[...], preferred_element_type=jnp.float32), 0.0)
    u_ref[...] = jax.nn.sigmoid(
        jnp.dot(hdn, w2_ref[...], preferred_element_type=jnp.float32))


def se_excite(pooled, w1, w2):
    n, c = pooled.shape
    return pl.pallas_call(
        _se_excite_kernel,
        out_shape=jax.ShapeDtypeStruct((n, c), jnp.float32),
    )(pooled, w1, w2)


# ----------------------------------------------------------------------------
# Kernel 3: fused SE rescale + residual add + final ReLU.
#           out = relu(y2 * u + identity)
# ----------------------------------------------------------------------------

def _se_residual_kernel(y_ref, u_ref, x_ref, o_ref):
    y = y_ref[0].astype(jnp.float32)                  # (HW, C)
    u = u_ref[0]                                      # (1, C) f32
    o_ref[0] = jnp.maximum(y * u + x_ref[0], 0.0).astype(o_ref.dtype)


def se_residual_relu(y2, u, identity):
    """y2: (N, HW, C) bf16, u: (N, 1, C) f32, identity: (N, HW, C) f32."""
    n, hw, c = y2.shape
    return pl.pallas_call(
        _se_residual_kernel,
        out_shape=jax.ShapeDtypeStruct((n, hw, c), jnp.float32),
        grid_spec=pltpu.PrefetchScalarGridSpec(
            num_scalar_prefetch=0,
            grid=(n,),
            in_specs=[
                pl.BlockSpec((1, hw, c), lambda i: (i, 0, 0)),
                pl.BlockSpec((1, 1, c), lambda i: (i, 0, 0)),
                pl.BlockSpec((1, hw, c), lambda i: (i, 0, 0)),
            ],
            out_specs=pl.BlockSpec((1, hw, c), lambda i: (i, 0, 0)),
        ),
        compiler_params=pltpu.CompilerParams(
            dimension_semantics=("parallel",)),
    )(y2, u, identity)


# ----------------------------------------------------------------------------
# Deterministic parameter init (inference-mode BN folded at init time).
# ----------------------------------------------------------------------------

def init_params(key, channels=64, ratio=16):
    c = channels
    eps = 1e-5
    k = jax.random.split(key, 6)

    def conv_w(kk, cin, cout):
        std = (2.0 / (9 * cin)) ** 0.5
        return jax.random.normal(kk, (3, 3, cin, cout), jnp.float32) * std

    def bn_fold(kk, cout):
        k1, k2, k3 = jax.random.split(kk, 3)
        gamma = 1.0 + 0.05 * jax.random.normal(k1, (cout,), jnp.float32)
        beta = 0.05 * jax.random.normal(k2, (cout,), jnp.float32)
        mean = 0.05 * jax.random.normal(k3, (cout,), jnp.float32)
        var = jnp.ones((cout,), jnp.float32)
        scale = gamma / jnp.sqrt(var + eps)
        shift = beta - mean * scale
        return scale, shift

    def fold(w, scale):
        # fold per-output-channel BN scale into the weight columns, bf16.
        wf = w * scale[None, None, None, :]
        return wf.reshape(9, w.shape[2], w.shape[3]).astype(jnp.bfloat16)

    w1 = conv_w(k[0], c, c)
    s1, b1 = bn_fold(k[1], c)
    w2 = conv_w(k[2], c, c)
    s2, b2 = bn_fold(k[3], c)

    cr = c // ratio
    crp = 128                                         # lane-pad the SE bottleneck
    se1 = jax.random.normal(k[4], (c, cr), jnp.float32) * (2.0 / c) ** 0.5
    se2 = jax.random.normal(k[5], (cr, c), jnp.float32) * (2.0 / cr) ** 0.5
    se_w1 = jnp.zeros((c, crp), jnp.float32).at[:, :cr].set(se1)
    se_w2 = jnp.zeros((crp, c), jnp.float32).at[:cr, :].set(se2)

    return dict(
        conv1_w=fold(w1, s1), bn1_shift=b1.reshape(1, c).astype(jnp.float32),
        conv2_w=fold(w2, s2), bn2_shift=b2.reshape(1, c).astype(jnp.float32),
        se_w1=se_w1, se_w2=se_w2,
    )


# ----------------------------------------------------------------------------
# Forward pass (mirrors SEBasicBlock.forward, stride=1, downsample=None).
# ----------------------------------------------------------------------------

def forward(params, x):
    """x: (N, C, H, W) float32 -> (N, C, H, W) float32."""
    n, c, h, w = x.shape
    x_nhwc = jnp.transpose(x, (0, 2, 3, 1)).astype(jnp.float32)
    identity = x_nhwc.reshape(n, h * w, c)

    def pad_hw(a):
        return jnp.pad(a, ((0, 0), (1, 1), (1, 1), (0, 0)))

    xp = pad_hw(x_nhwc.astype(jnp.bfloat16))
    # conv1 -> bn1 -> relu
    y1 = conv3x3_bn(xp, params["conv1_w"], params["bn1_shift"],
                    relu=True, emit_mean=False)            # (N, HW, C) bf16
    # conv2 -> bn2 (+ fused SE squeeze)
    y1p = pad_hw(y1.reshape(n, h, w, c))
    y2, pooled = conv3x3_bn(y1p, params["conv2_w"], params["bn2_shift"],
                            relu=False, emit_mean=True)    # bf16, (N,1,C) f32
    # SE excitation (batched) then rescale + residual + relu (fused)
    u = se_excite(pooled.reshape(n, c), params["se_w1"], params["se_w2"])
    out = se_residual_relu(y2, u.reshape(n, 1, c), identity)   # (N, HW, C) f32

    return jnp.transpose(out.reshape(n, h, w, c), (0, 3, 1, 2))


# ----------------------------------------------------------------------------

if __name__ == "__main__":
    key = jax.random.PRNGKey(0)
    kp, kx = jax.random.split(key)

    N, C, H, W = 2, 64, 16, 16          # SEBasicBlock(64, 64): C >= ratio=16
    params = init_params(kp, channels=C)
    x = jax.random.normal(kx, (N, C, H, W), jnp.float32)

    fwd = jax.jit(forward)
    out = fwd(params, x)
    jax.block_until_ready(out)
    assert out.shape == (N, C, H, W)
    print("KERNEL_OK")
</pallas_src>

<mosaic_0001>
module attributes {stable_mosaic.version = 11 : i64} {
  func.func @_conv3x3_bn_kernel(%arg0: i32, %arg1: memref<1x18x18x64xbf16, #tpu.memory_space<vmem>>, %arg2: memref<9x64x64xbf16, #tpu.memory_space<vmem>>, %arg3: memref<1x64xf32, #tpu.memory_space<vmem>>, %arg4: memref<1x256x64xbf16, #tpu.memory_space<vmem>>, %arg5: memref<1x1x64xf32, #tpu.memory_space<vmem>>) attributes {dimension_semantics = [#tpu.dimension_semantics<parallel>], iteration_bounds = array<i64: 2>, scalar_prefetch = 0 : i64, scratch_operands = 0 : i64, tpu.core_type = #tpu.core_type<tc>, window_params = [{transform_indices = @transform_0, window_bounds = array<i64: 1, 18, 18, 64>}, {pipeline_mode = #tpu.pipeline_mode<synchronous>, transform_indices = @transform_1, window_bounds = array<i64: 9, 64, 64>}, {pipeline_mode = #tpu.pipeline_mode<synchronous>, transform_indices = @transform_2, window_bounds = array<i64: 1, 64>}, {transform_indices = @transform_3, window_bounds = array<i64: 1, 256, 64>}, {transform_indices = @transform_4, window_bounds = array<i64: 1, 1, 64>}]} {
    %c0 = arith.constant 0 : index
    %c0_0 = arith.constant 0 : index
    %c0_1 = arith.constant 0 : index
    %c0_2 = arith.constant 0 : index
    %0 = vector.load %arg1[%c0, %c0_0, %c0_1, %c0_2] : memref<1x18x18x64xbf16, #tpu.memory_space<vmem>>, vector<1x18x18x64xbf16>
    %1 = vector.shape_cast %0 : vector<1x18x18x64xbf16> to vector<18x18x64xbf16>
    %cst = arith.constant 0.000000e+00 : f32
    %2 = vector.broadcast %cst : f32 to vector<256x64xf32>
    %3 = vector.extract_strided_slice %1 {offsets = [0, 0, 0], sizes = [16, 16, 64], strides = [1, 1, 1]} : vector<18x18x64xbf16> to vector<16x16x64xbf16>
    %4 = vector.shape_cast %3 : vector<16x16x64xbf16> to vector<256x64xbf16>
    %c0_3 = arith.constant 0 : index
    %c0_4 = arith.constant 0 : index
    %c0_5 = arith.constant 0 : index
    %5 = vector.load %arg2[%c0_3, %c0_4, %c0_5] : memref<9x64x64xbf16, #tpu.memory_space<vmem>>, vector<1x64x64xbf16>
    %6 = vector.shape_cast %5 : vector<1x64x64xbf16> to vector<64x64xbf16>
    %cst_6 = arith.constant dense<0.000000e+00> : vector<256x64xf32>
    %7 = tpu.matmul %4, %6, %cst_6 {dimension_numbers = #tpu.dot_dimension_numbers<[1], [0], [0], [1], [0, 0, 1, 1], [], []>} : vector<256x64xbf16>, vector<64x64xbf16>, vector<256x64xf32> -> vector<256x64xf32>
    %8 = arith.addf %2, %7 : vector<256x64xf32>
    %9 = vector.extract_strided_slice %1 {offsets = [0, 1, 0], sizes = [16, 16, 64], strides = [1, 1, 1]} : vector<18x18x64xbf16> to vector<16x16x64xbf16>
    %10 = vector.shape_cast %9 : vector<16x16x64xbf16> to vector<256x64xbf16>
    %c1 = arith.constant 1 : index
    %c0_7 = arith.constant 0 : index
    %c0_8 = arith.constant 0 : index
    %11 = vector.load %arg2[%c1, %c0_7, %c0_8] : memref<9x64x64xbf16, #tpu.memory_space<vmem>>, vector<1x64x64xbf16>
    %12 = vector.shape_cast %11 : vector<1x64x64xbf16> to vector<64x64xbf16>
    %cst_9 = arith.constant dense<0.000000e+00> : vector<256x64xf32>
    %13 = tpu.matmul %10, %12, %cst_9 {dimension_numbers = #tpu.dot_dimension_numbers<[1], [0], [0], [1], [0, 0, 1, 1], [], []>} : vector<256x64xbf16>, vector<64x64xbf16>, vector<256x64xf32> -> vector<256x64xf32>
    %14 = arith.addf %8, %13 : vector<256x64xf32>
    %15 = vector.extract_strided_slice %1 {offsets = [0, 2, 0], sizes = [16, 16, 64], strides = [1, 1, 1]} : vector<18x18x64xbf16> to vector<16x16x64xbf16>
    %16 = vector.shape_cast %15 : vector<16x16x64xbf16> to vector<256x64xbf16>
    %c2 = arith.constant 2 : index
    %c0_10 = arith.constant 0 : index
    %c0_11 = arith.constant 0 : index
    %17 = vector.load %arg2[%c2, %c0_10, %c0_11] : memref<9x64x64xbf16, #tpu.memory_space<vmem>>, vector<1x64x64xbf16>
    %18 = vector.shape_cast %17 : vector<1x64x64xbf16> to vector<64x64xbf16>
    %cst_12 = arith.constant dense<0.000000e+00> : vector<256x64xf32>
    %19 = tpu.matmul %16, %18, %cst_12 {dimension_numbers = #tpu.dot_dimension_numbers<[1], [0], [0], [1], [0, 0, 1, 1], [], []>} : vector<256x64xbf16>, vector<64x64xbf16>, vector<256x64xf32> -> vector<256x64xf32>
    %20 = arith.addf %14, %19 : vector<256x64xf32>
    %21 = vector.extract_strided_slice %1 {offsets = [1, 0, 0], sizes = [16, 16, 64], strides = [1, 1, 1]} : vector<18x18x64xbf16> to vector<16x16x64xbf16>
    %22 = vector.shape_cast %21 : vector<16x16x64xbf16> to vector<256x64xbf16>
    %c3 = arith.constant 3 : index
    %c0_13 = arith.constant 0 : index
    %c0_14 = arith.constant 0 : index
    %23 = vector.load %arg2[%c3, %c0_13, %c0_14] : memref<9x64x64xbf16, #tpu.memory_space<vmem>>, vector<1x64x64xbf16>
    %24 = vector.shape_cast %23 : vector<1x64x64xbf16> to vector<64x64xbf16>
    %cst_15 = arith.constant dense<0.000000e+00> : vector<256x64xf32>
    %25 = tpu.matmul %22, %24, %cst_15 {dimension_numbers = #tpu.dot_dimension_numbers<[1], [0], [0], [1], [0, 0, 1, 1], [], []>} : vector<256x64xbf16>, vector<64x64xbf16>, vector<256x64xf32> -> vector<256x64xf32>
    %26 = arith.addf %20, %25 : vector<256x64xf32>
    %27 = vector.extract_strided_slice %1 {offsets = [1, 1, 0], sizes = [16, 16, 64], strides = [1, 1, 1]} : vector<18x18x64xbf16> to vector<16x16x64xbf16>
    %28 = vector.shape_cast %27 : vector<16x16x64xbf16> to vector<256x64xbf16>
    %c4 = arith.constant 4 : index
    %c0_16 = arith.constant 0 : index
    %c0_17 = arith.constant 0 : index
    %29 = vector.load %arg2[%c4, %c0_16, %c0_17] : memref<9x64x64xbf16, #tpu.memory_space<vmem>>, vector<1x64x64xbf16>
    %30 = vector.shape_cast %29 : vector<1x64x64xbf16> to vector<64x64xbf16>
    %cst_18 = arith.constant dense<0.000000e+00> : vector<256x64xf32>
    %31 = tpu.matmul %28, %30, %cst_18 {dimension_numbers = #tpu.dot_dimension_numbers<[1], [0], [0], [1], [0, 0, 1, 1], [], []>} : vector<256x64xbf16>, vector<64x64xbf16>, vector<256x64xf32> -> vector<256x64xf32>
    %32 = arith.addf %26, %31 : vector<256x64xf32>
    %33 = vector.extract_strided_slice %1 {offsets = [1, 2, 0], sizes = [16, 16, 64], strides = [1, 1, 1]} : vector<18x18x64xbf16> to vector<16x16x64xbf16>
    %34 = vector.shape_cast %33 : vector<16x16x64xbf16> to vector<256x64xbf16>
    %c5 = arith.constant 5 : index
    %c0_19 = arith.constant 0 : index
    %c0_20 = arith.constant 0 : index
    %35 = vector.load %arg2[%c5, %c0_19, %c0_20] : memref<9x64x64xbf16, #tpu.memory_space<vmem>>, vector<1x64x64xbf16>
    %36 = vector.shape_cast %35 : vector<1x64x64xbf16> to vector<64x64xbf16>
    %cst_21 = arith.constant dense<0.000000e+00> : vector<256x64xf32>
    %37 = tpu.matmul %34, %36, %cst_21 {dimension_numbers = #tpu.dot_dimension_numbers<[1], [0], [0], [1], [0, 0, 1, 1], [], []>} : vector<256x64xbf16>, vector<64x64xbf16>, vector<256x64xf32> -> vector<256x64xf32>
    %38 = arith.addf %32, %37 : vector<256x64xf32>
    %39 = vector.extract_strided_slice %1 {offsets = [2, 0, 0], sizes = [16, 16, 64], strides = [1, 1, 1]} : vector<18x18x64xbf16> to vector<16x16x64xbf16>
    %40 = vector.shape_cast %39 : vector<16x16x64xbf16> to vector<256x64xbf16>
    %c6 = arith.constant 6 : index
    %c0_22 = arith.constant 0 : index
    %c0_23 = arith.constant 0 : index
    %41 = vector.load %arg2[%c6, %c0_22, %c0_23] : memref<9x64x64xbf16, #tpu.memory_space<vmem>>, vector<1x64x64xbf16>
    %42 = vector.shape_cast %41 : vector<1x64x64xbf16> to vector<64x64xbf16>
    %cst_24 = arith.constant dense<0.000000e+00> : vector<256x64xf32>
    %43 = tpu.matmul %40, %42, %cst_24 {dimension_numbers = #tpu.dot_dimension_numbers<[1], [0], [0], [1], [0, 0, 1, 1], [], []>} : vector<256x64xbf16>, vector<64x64xbf16>, vector<256x64xf32> -> vector<256x64xf32>
    %44 = arith.addf %38, %43 : vector<256x64xf32>
    %45 = vector.extract_strided_slice %1 {offsets = [2, 1, 0], sizes = [16, 16, 64], strides = [1, 1, 1]} : vector<18x18x64xbf16> to vector<16x16x64xbf16>
    %46 = vector.shape_cast %45 : vector<16x16x64xbf16> to vector<256x64xbf16>
    %c7 = arith.constant 7 : index
    %c0_25 = arith.constant 0 : index
    %c0_26 = arith.constant 0 : index
    %47 = vector.load %arg2[%c7, %c0_25, %c0_26] : memref<9x64x64xbf16, #tpu.memory_space<vmem>>, vector<1x64x64xbf16>
    %48 = vector.shape_cast %47 : vector<1x64x64xbf16> to vector<64x64xbf16>
    %cst_27 = arith.constant dense<0.000000e+00> : vector<256x64xf32>
    %49 = tpu.matmul %46, %48, %cst_27 {dimension_numbers = #tpu.dot_dimension_numbers<[1], [0], [0], [1], [0, 0, 1, 1], [], []>} : vector<256x64xbf16>, vector<64x64xbf16>, vector<256x64xf32> -> vector<256x64xf32>
    %50 = arith.addf %44, %49 : vector<256x64xf32>
    %51 = vector.extract_strided_slice %1 {offsets = [2, 2, 0], sizes = [16, 16, 64], strides = [1, 1, 1]} : vector<18x18x64xbf16> to vector<16x16x64xbf16>
    %52 = vector.shape_cast %51 : vector<16x16x64xbf16> to vector<256x64xbf16>
    %c8 = arith.constant 8 : index
    %c0_28 = arith.constant 0 : index
    %c0_29 = arith.constant 0 : index
    %53 = vector.load %arg2[%c8, %c0_28, %c0_29] : memref<9x64x64xbf16, #tpu.memory_space<vmem>>, vector<1x64x64xbf16>
    %54 = vector.shape_cast %53 : vector<1x64x64xbf16> to vector<64x64xbf16>
    %cst_30 = arith.constant dense<0.000000e+00> : vector<256x64xf32>
    %55 = tpu.matmul %52, %54, %cst_30 {dimension_numbers = #tpu.dot_dimension_numbers<[1], [0], [0], [1], [0, 0, 1, 1], [], []>} : vector<256x64xbf16>, vector<64x64xbf16>, vector<256x64xf32> -> vector<256x64xf32>
    %56 = arith.addf %50, %55 : vector<256x64xf32>
    %c0_31 = arith.constant 0 : index
    %c0_32 = arith.constant 0 : index
    %57 = vector.load %arg3[%c0_31, %c0_32] : memref<1x64xf32, #tpu.memory_space<vmem>>, vector<1x64xf32>
    %58 = vector.broadcast %57 : vector<1x64xf32> to vector<256x64xf32>
    %59 = arith.addf %56, %58 : vector<256x64xf32>
    %60 = arith.truncf %59 : vector<256x64xf32> to vector<256x64xbf16>
    %c0_33 = arith.constant 0 : index
    %c0_34 = arith.constant 0 : index
    %c0_35 = arith.constant 0 : index
    %61 = vector.load %arg4[%c0_33, %c0_34, %c0_35] : memref<1x256x64xbf16, #tpu.memory_space<vmem>>, vector<1x256x64xbf16>
    %62 = vector.shape_cast %61 : vector<1x256x64xbf16> to vector<256x64xbf16>
    %63 = vector.shape_cast %60 : vector<256x64xbf16> to vector<1x256x64xbf16>
    tpu.vector_store %arg4[%c0_33, %c0_34, %c0_35], %63 {strides = array<i32>} : memref<1x256x64xbf16, #tpu.memory_space<vmem>>, vector<1x256x64xbf16>,
    %cst_36 = arith.constant dense<0.000000e+00> : vector<64xf32>
    %64 = vector.multi_reduction <add>, %59, %cst_36 [0] : vector<256x64xf32> to vector<64xf32>
    %65 = vector.shape_cast %64 : vector<64xf32> to vector<1x64xf32>
    %cst_37 = arith.constant 2.560000e+02 : f32
    %66 = vector.broadcast %cst_37 : f32 to vector<1x64xf32>
    %67 = arith.divf %65, %66 : vector<1x64xf32>
    %c0_38 = arith.constant 0 : index
    %c0_39 = arith.constant 0 : index
    %c0_40 = arith.constant 0 : index
    %68 = vector.load %arg5[%c0_38, %c0_39, %c0_40] : memref<1x1x64xf32, #tpu.memory_space<vmem>>, vector<1x1x64xf32>
    %69 = vector.shape_cast %68 : vector<1x1x64xf32> to vector<1x64xf32>
    %70 = vector.shape_cast %67 : vector<1x64xf32> to vector<1x1x64xf32>
    tpu.vector_store %arg5[%c0_38, %c0_39, %c0_40], %70 {strides = array<i32>} : memref<1x1x64xf32, #tpu.memory_space<vmem>>, vector<1x1x64xf32>,
    return
  }
  func.func @transform_0(%arg0: i32) -> (i32, i32, i32, i32) {
    %c0_i32 = arith.constant 0 : i32
    %c0_i32_0 = arith.constant 0 : i32
    %c0_i32_1 = arith.constant 0 : i32
    %c0_i32_2 = arith.constant 0 : i32
    return %arg0, %c0_i32, %c0_i32_0, %c0_i32_1 : i32, i32, i32, i32
  }
  func.func @transform_1(%arg0: i32) -> (i32, i32, i32) {
    %c0_i32 = arith.constant 0 : i32
    %c0_i32_0 = arith.constant 0 : i32
    %c0_i32_1 = arith.constant 0 : i32
    %c0_i32_2 = arith.constant 0 : i32
    return %c0_i32, %c0_i32_0, %c0_i32_1 : i32, i32, i32
  }
  func.func @transform_2(%arg0: i32) -> (i32, i32) {
    %c0_i32 = arith.constant 0 : i32
    %c0_i32_0 = arith.constant 0 : i32
    %c0_i32_1 = arith.constant 0 : i32
    return %c0_i32, %c0_i32_0 : i32, i32
  }
  func.func @transform_3(%arg0: i32) -> (i32, i32, i32) {
    %c0_i32 = arith.constant 0 : i32
    %c0_i32_0 = arith.constant 0 : i32
    %c0_i32_1 = arith.constant 0 : i32
    return %arg0, %c0_i32, %c0_i32_0 : i32, i32, i32
  }
  func.func @transform_4(%arg0: i32) -> (i32, i32, i32) {
    %c0_i32 = arith.constant 0 : i32
    %c0_i32_0 = arith.constant 0 : i32
    %c0_i32_1 = arith.constant 0 : i32
    return %arg0, %c0_i32, %c0_i32_0 : i32, i32, i32
  }
}

module attributes {stable_mosaic.version = 11 : i64} {
  func.func @_conv3x3_bn_kernel(%arg0: i32, %arg1: memref<1x18x18x64xbf16, #tpu.memory_space<vmem>>, %arg2: memref<9x64x64xbf16, #tpu.memory_space<vmem>>, %arg3: memref<1x64xf32, #tpu.memory_space<vmem>>, %arg4: memref<1x256x64xbf16, #tpu.memory_space<vmem>>) attributes {dimension_semantics = [#tpu.dimension_semantics<parallel>], iteration_bounds = array<i64: 2>, scalar_prefetch = 0 : i64, scratch_operands = 0 : i64, tpu.core_type = #tpu.core_type<tc>, window_params = [{transform_indices = @transform_0, window_bounds = array<i64: 1, 18, 18, 64>}, {pipeline_mode = #tpu.pipeline_mode<synchronous>, transform_indices = @transform_1, window_bounds = array<i64: 9, 64, 64>}, {pipeline_mode = #tpu.pipeline_mode<synchronous>, transform_indices = @transform_2, window_bounds = array<i64: 1, 64>}, {transform_indices = @transform_3, window_bounds = array<i64: 1, 256, 64>}]} {
    %c0 = arith.constant 0 : index
    %c0_0 = arith.constant 0 : index
    %c0_1 = arith.constant 0 : index
    %c0_2 = arith.constant 0 : index
    %0 = vector.load %arg1[%c0, %c0_0, %c0_1, %c0_2] : memref<1x18x18x64xbf16, #tpu.memory_space<vmem>>, vector<1x18x18x64xbf16>
    %1 = vector.shape_cast %0 : vector<1x18x18x64xbf16> to vector<18x18x64xbf16>
    %cst = arith.constant 0.000000e+00 : f32
    %2 = vector.broadcast %cst : f32 to vector<256x64xf32>
    %3 = vector.extract_strided_slice %1 {offsets = [0, 0, 0], sizes = [16, 16, 64], strides = [1, 1, 1]} : vector<18x18x64xbf16> to vector<16x16x64xbf16>
    %4 = vector.shape_cast %3 : vector<16x16x64xbf16> to vector<256x64xbf16>
    %c0_3 = arith.constant 0 : index
    %c0_4 = arith.constant 0 : index
    %c0_5 = arith.constant 0 : index
    %5 = vector.load %arg2[%c0_3, %c0_4, %c0_5] : memref<9x64x64xbf16, #tpu.memory_space<vmem>>, vector<1x64x64xbf16>
    %6 = vector.shape_cast %5 : vector<1x64x64xbf16> to vector<64x64xbf16>
    %cst_6 = arith.constant dense<0.000000e+00> : vector<256x64xf32>
    %7 = tpu.matmul %4, %6, %cst_6 {dimension_numbers = #tpu.dot_dimension_numbers<[1], [0], [0], [1], [0, 0, 1, 1], [], []>} : vector<256x64xbf16>, vector<64x64xbf16>, vector<256x64xf32> -> vector<256x64xf32>
    %8 = arith.addf %2, %7 : vector<256x64xf32>
    %9 = vector.extract_strided_slice %1 {offsets = [0, 1, 0], sizes = [16, 16, 64], strides = [1, 1, 1]} : vector<18x18x64xbf16> to vector<16x16x64xbf16>
    %10 = vector.shape_cast %9 : vector<16x16x64xbf16> to vector<256x64xbf16>
    %c1 = arith.constant 1 : index
    %c0_7 = arith.constant 0 : index
    %c0_8 = arith.constant 0 : index
    %11 = vector.load %arg2[%c1, %c0_7, %c0_8] : memref<9x64x64xbf16, #tpu.memory_space<vmem>>, vector<1x64x64xbf16>
    %12 = vector.shape_cast %11 : vector<1x64x64xbf16> to vector<64x64xbf16>
    %cst_9 = arith.constant dense<0.000000e+00> : vector<256x64xf32>
    %13 = tpu.matmul %10, %12, %cst_9 {dimension_numbers = #tpu.dot_dimension_numbers<[1], [0], [0], [1], [0, 0, 1, 1], [], []>} : vector<256x64xbf16>, vector<64x64xbf16>, vector<256x64xf32> -> vector<256x64xf32>
    %14 = arith.addf %8, %13 : vector<256x64xf32>
    %15 = vector.extract_strided_slice %1 {offsets = [0, 2, 0], sizes = [16, 16, 64], strides = [1, 1, 1]} : vector<18x18x64xbf16> to vector<16x16x64xbf16>
    %16 = vector.shape_cast %15 : vector<16x16x64xbf16> to vector<256x64xbf16>
    %c2 = arith.constant 2 : index
    %c0_10 = arith.constant 0 : index
    %c0_11 = arith.constant 0 : index
    %17 = vector.load %arg2[%c2, %c0_10, %c0_11] : memref<9x64x64xbf16, #tpu.memory_space<vmem>>, vector<1x64x64xbf16>
    %18 = vector.shape_cast %17 : vector<1x64x64xbf16> to vector<64x64xbf16>
    %cst_12 = arith.constant dense<0.000000e+00> : vector<256x64xf32>
    %19 = tpu.matmul %16, %18, %cst_12 {dimension_numbers = #tpu.dot_dimension_numbers<[1], [0], [0], [1], [0, 0, 1, 1], [], []>} : vector<256x64xbf16>, vector<64x64xbf16>, vector<256x64xf32> -> vector<256x64xf32>
    %20 = arith.addf %14, %19 : vector<256x64xf32>
    %21 = vector.extract_strided_slice %1 {offsets = [1, 0, 0], sizes = [16, 16, 64], strides = [1, 1, 1]} : vector<18x18x64xbf16> to vector<16x16x64xbf16>
    %22 = vector.shape_cast %21 : vector<16x16x64xbf16> to vector<256x64xbf16>
    %c3 = arith.constant 3 : index
    %c0_13 = arith.constant 0 : index
    %c0_14 = arith.constant 0 : index
    %23 = vector.load %arg2[%c3, %c0_13, %c0_14] : memref<9x64x64xbf16, #tpu.memory_space<vmem>>, vector<1x64x64xbf16>
    %24 = vector.shape_cast %23 : vector<1x64x64xbf16> to vector<64x64xbf16>
    %cst_15 = arith.constant dense<0.000000e+00> : vector<256x64xf32>
    %25 = tpu.matmul %22, %24, %cst_15 {dimension_numbers = #tpu.dot_dimension_numbers<[1], [0], [0], [1], [0, 0, 1, 1], [], []>} : vector<256x64xbf16>, vector<64x64xbf16>, vector<256x64xf32> -> vector<256x64xf32>
    %26 = arith.addf %20, %25 : vector<256x64xf32>
    %27 = vector.extract_strided_slice %1 {offsets = [1, 1, 0], sizes = [16, 16, 64], strides = [1, 1, 1]} : vector<18x18x64xbf16> to vector<16x16x64xbf16>
    %28 = vector.shape_cast %27 : vector<16x16x64xbf16> to vector<256x64xbf16>
    %c4 = arith.constant 4 : index
    %c0_16 = arith.constant 0 : index
    %c0_17 = arith.constant 0 : index
    %29 = vector.load %arg2[%c4, %c0_16, %c0_17] : memref<9x64x64xbf16, #tpu.memory_space<vmem>>, vector<1x64x64xbf16>
    %30 = vector.shape_cast %29 : vector<1x64x64xbf16> to vector<64x64xbf16>
    %cst_18 = arith.constant dense<0.000000e+00> : vector<256x64xf32>
    %31 = tpu.matmul %28, %30, %cst_18 {dimension_numbers = #tpu.dot_dimension_numbers<[1], [0], [0], [1], [0, 0, 1, 1], [], []>} : vector<256x64xbf16>, vector<64x64xbf16>, vector<256x64xf32> -> vector<256x64xf32>
    %32 = arith.addf %26, %31 : vector<256x64xf32>
    %33 = vector.extract_strided_slice %1 {offsets = [1, 2, 0], sizes = [16, 16, 64], strides = [1, 1, 1]} : vector<18x18x64xbf16> to vector<16x16x64xbf16>
    %34 = vector.shape_cast %33 : vector<16x16x64xbf16> to vector<256x64xbf16>
    %c5 = arith.constant 5 : index
    %c0_19 = arith.constant 0 : index
    %c0_20 = arith.constant 0 : index
    %35 = vector.load %arg2[%c5, %c0_19, %c0_20] : memref<9x64x64xbf16, #tpu.memory_space<vmem>>, vector<1x64x64xbf16>
    %36 = vector.shape_cast %35 : vector<1x64x64xbf16> to vector<64x64xbf16>
    %cst_21 = arith.constant dense<0.000000e+00> : vector<256x64xf32>
    %37 = tpu.matmul %34, %36, %cst_21 {dimension_numbers = #tpu.dot_dimension_numbers<[1], [0], [0], [1], [0, 0, 1, 1], [], []>} : vector<256x64xbf16>, vector<64x64xbf16>, vector<256x64xf32> -> vector<256x64xf32>
    %38 = arith.addf %32, %37 : vector<256x64xf32>
    %39 = vector.extract_strided_slice %1 {offsets = [2, 0, 0], sizes = [16, 16, 64], strides = [1, 1, 1]} : vector<18x18x64xbf16> to vector<16x16x64xbf16>
    %40 = vector.shape_cast %39 : vector<16x16x64xbf16> to vector<256x64xbf16>
    %c6 = arith.constant 6 : index
    %c0_22 = arith.constant 0 : index
    %c0_23 = arith.constant 0 : index
    %41 = vector.load %arg2[%c6, %c0_22, %c0_23] : memref<9x64x64xbf16, #tpu.memory_space<vmem>>, vector<1x64x64xbf16>
    %42 = vector.shape_cast %41 : vector<1x64x64xbf16> to vector<64x64xbf16>
    %cst_24 = arith.constant dense<0.000000e+00> : vector<256x64xf32>
    %43 = tpu.matmul %40, %42, %cst_24 {dimension_numbers = #tpu.dot_dimension_numbers<[1], [0], [0], [1], [0, 0, 1, 1], [], []>} : vector<256x64xbf16>, vector<64x64xbf16>, vector<256x64xf32> -> vector<256x64xf32>
    %44 = arith.addf %38, %43 : vector<256x64xf32>
    %45 = vector.extract_strided_slice %1 {offsets = [2, 1, 0], sizes = [16, 16, 64], strides = [1, 1, 1]} : vector<18x18x64xbf16> to vector<16x16x64xbf16>
    %46 = vector.shape_cast %45 : vector<16x16x64xbf16> to vector<256x64xbf16>
    %c7 = arith.constant 7 : index
    %c0_25 = arith.constant 0 : index
    %c0_26 = arith.constant 0 : index
    %47 = vector.load %arg2[%c7, %c0_25, %c0_26] : memref<9x64x64xbf16, #tpu.memory_space<vmem>>, vector<1x64x64xbf16>
    %48 = vector.shape_cast %47 : vector<1x64x64xbf16> to vector<64x64xbf16>
    %cst_27 = arith.constant dense<0.000000e+00> : vector<256x64xf32>
    %49 = tpu.matmul %46, %48, %cst_27 {dimension_numbers = #tpu.dot_dimension_numbers<[1], [0], [0], [1], [0, 0, 1, 1], [], []>} : vector<256x64xbf16>, vector<64x64xbf16>, vector<256x64xf32> -> vector<256x64xf32>
    %50 = arith.addf %44, %49 : vector<256x64xf32>
    %51 = vector.extract_strided_slice %1 {offsets = [2, 2, 0], sizes = [16, 16, 64], strides = [1, 1, 1]} : vector<18x18x64xbf16> to vector<16x16x64xbf16>
    %52 = vector.shape_cast %51 : vector<16x16x64xbf16> to vector<256x64xbf16>
    %c8 = arith.constant 8 : index
    %c0_28 = arith.constant 0 : index
    %c0_29 = arith.constant 0 : index
    %53 = vector.load %arg2[%c8, %c0_28, %c0_29] : memref<9x64x64xbf16, #tpu.memory_space<vmem>>, vector<1x64x64xbf16>
    %54 = vector.shape_cast %53 : vector<1x64x64xbf16> to vector<64x64xbf16>
    %cst_30 = arith.constant dense<0.000000e+00> : vector<256x64xf32>
    %55 = tpu.matmul %52, %54, %cst_30 {dimension_numbers = #tpu.dot_dimension_numbers<[1], [0], [0], [1], [0, 0, 1, 1], [], []>} : vector<256x64xbf16>, vector<64x64xbf16>, vector<256x64xf32> -> vector<256x64xf32>
    %56 = arith.addf %50, %55 : vector<256x64xf32>
    %c0_31 = arith.constant 0 : index
    %c0_32 = arith.constant 0 : index
    %57 = vector.load %arg3[%c0_31, %c0_32] : memref<1x64xf32, #tpu.memory_space<vmem>>, vector<1x64xf32>
    %58 = vector.broadcast %57 : vector<1x64xf32> to vector<256x64xf32>
    %59 = arith.addf %56, %58 : vector<256x64xf32>
    %cst_33 = arith.constant 0.000000e+00 : f32
    %60 = vector.broadcast %cst_33 : f32 to vector<256x64xf32>
    %61 = arith.maximumf %59, %60 : vector<256x64xf32>
    %62 = arith.truncf %61 : vector<256x64xf32> to vector<256x64xbf16>
    %c0_34 = arith.constant 0 : index
    %c0_35 = arith.constant 0 : index
    %c0_36 = arith.constant 0 : index
    %63 = vector.load %arg4[%c0_34, %c0_35, %c0_36] : memref<1x256x64xbf16, #tpu.memory_space<vmem>>, vector<1x256x64xbf16>
    %64 = vector.shape_cast %63 : vector<1x256x64xbf16> to vector<256x64xbf16>
    %65 = vector.shape_cast %62 : vector<256x64xbf16> to vector<1x256x64xbf16>
    tpu.vector_store %arg4[%c0_34, %c0_35, %c0_36], %65 {strides = array<i32>} : memref<1x256x64xbf16, #tpu.memory_space<vmem>>, vector<1x256x64xbf16>,
    return
  }
  func.func @transform_0(%arg0: i32) -> (i32, i32, i32, i32) {
    %c0_i32 = arith.constant 0 : i32
    %c0_i32_0 = arith.constant 0 : i32
    %c0_i32_1 = arith.constant 0 : i32
    %c0_i32_2 = arith.constant 0 : i32
    return %arg0, %c0_i32, %c0_i32_0, %c0_i32_1 : i32, i32, i32, i32
  }
  func.func @transform_1(%arg0: i32) -> (i32, i32, i32) {
    %c0_i32 = arith.constant 0 : i32
    %c0_i32_0 = arith.constant 0 : i32
    %c0_i32_1 = arith.constant 0 : i32
    %c0_i32_2 = arith.constant 0 : i32
    return %c0_i32, %c0_i32_0, %c0_i32_1 : i32, i32, i32
  }
  func.func @transform_2(%arg0: i32) -> (i32, i32) {
    %c0_i32 = arith.constant 0 : i32
    %c0_i32_0 = arith.constant 0 : i32
    %c0_i32_1 = arith.constant 0 : i32
    return %c0_i32, %c0_i32_0 : i32, i32
  }
  func.func @transform_3(%arg0: i32) -> (i32, i32, i32) {
    %c0_i32 = arith.constant 0 : i32
    %c0_i32_0 = arith.constant 0 : i32
    %c0_i32_1 = arith.constant 0 : i32
    return %arg0, %c0_i32, %c0_i32_0 : i32, i32, i32
  }
}

module attributes {stable_mosaic.version = 11 : i64} {
  func.func @_se_residual_kernel(%arg0: i32, %arg1: memref<1x256x64xbf16, #tpu.memory_space<vmem>>, %arg2: memref<1x1x64xf32, #tpu.memory_space<vmem>>, %arg3: memref<1x256x64xf32, #tpu.memory_space<vmem>>, %arg4: memref<1x256x64xf32, #tpu.memory_space<vmem>>) attributes {dimension_semantics = [#tpu.dimension_semantics<parallel>], iteration_bounds = array<i64: 2>, scalar_prefetch = 0 : i64, scratch_operands = 0 : i64, tpu.core_type = #tpu.core_type<tc>, window_params = [{transform_indices = @transform_0, window_bounds = array<i64: 1, 256, 64>}, {transform_indices = @transform_1, window_bounds = array<i64: 1, 1, 64>}, {transform_indices = @transform_2, window_bounds = array<i64: 1, 256, 64>}, {transform_indices = @transform_3, window_bounds = array<i64: 1, 256, 64>}]} {
    %c0 = arith.constant 0 : index
    %c0_0 = arith.constant 0 : index
    %c0_1 = arith.constant 0 : index
    %0 = vector.load %arg1[%c0, %c0_0, %c0_1] : memref<1x256x64xbf16, #tpu.memory_space<vmem>>, vector<1x256x64xbf16>
    %1 = vector.shape_cast %0 : vector<1x256x64xbf16> to vector<256x64xbf16>
    %2 = arith.extf %1 : vector<256x64xbf16> to vector<256x64xf32>
    %c0_2 = arith.constant 0 : index
    %c0_3 = arith.constant 0 : index
    %c0_4 = arith.constant 0 : index
    %3 = vector.load %arg2[%c0_2, %c0_3, %c0_4] : memref<1x1x64xf32, #tpu.memory_space<vmem>>, vector<1x1x64xf32>
    %4 = vector.shape_cast %3 : vector<1x1x64xf32> to vector<1x64xf32>
    %5 = vector.broadcast %4 : vector<1x64xf32> to vector<256x64xf32>
    %6 = arith.mulf %2, %5 : vector<256x64xf32>
    %c0_5 = arith.constant 0 : index
    %c0_6 = arith.constant 0 : index
    %c0_7 = arith.constant 0 : index
    %7 = vector.load %arg3[%c0_5, %c0_6, %c0_7] : memref<1x256x64xf32, #tpu.memory_space<vmem>>, vector<1x256x64xf32>
    %8 = vector.shape_cast %7 : vector<1x256x64xf32> to vector<256x64xf32>
    %9 = arith.addf %6, %8 : vector<256x64xf32>
    %cst = arith.constant 0.000000e+00 : f32
    %10 = vector.broadcast %cst : f32 to vector<256x64xf32>
    %11 = arith.maximumf %9, %10 : vector<256x64xf32>
    %c0_8 = arith.constant 0 : index
    %c0_9 = arith.constant 0 : index
    %c0_10 = arith.constant 0 : index
    %12 = vector.load %arg4[%c0_8, %c0_9, %c0_10] : memref<1x256x64xf32, #tpu.memory_space<vmem>>, vector<1x256x64xf32>
    %13 = vector.shape_cast %12 : vector<1x256x64xf32> to vector<256x64xf32>
    %14 = vector.shape_cast %11 : vector<256x64xf32> to vector<1x256x64xf32>
    tpu.vector_store %arg4[%c0_8, %c0_9, %c0_10], %14 {strides = array<i32>} : memref<1x256x64xf32, #tpu.memory_space<vmem>>, vector<1x256x64xf32>,
    return
  }
  func.func @transform_0(%arg0: i32) -> (i32, i32, i32) {
    %c0_i32 = arith.constant 0 : i32
    %c0_i32_0 = arith.constant 0 : i32
    %c0_i32_1 = arith.constant 0 : i32
    return %arg0, %c0_i32, %c0_i32_0 : i32, i32, i32
  }
  func.func @transform_1(%arg0: i32) -> (i32, i32, i32) {
    %c0_i32 = arith.constant 0 : i32
    %c0_i32_0 = arith.constant 0 : i32
    %c0_i32_1 = arith.constant 0 : i32
    return %arg0, %c0_i32, %c0_i32_0 : i32, i32, i32
  }
  func.func @transform_2(%arg0: i32) -> (i32, i32, i32) {
    %c0_i32 = arith.constant 0 : i32
    %c0_i32_0 = arith.constant 0 : i32
    %c0_i32_1 = arith.constant 0 : i32
    return %arg0, %c0_i32, %c0_i32_0 : i32, i32, i32
  }
  func.func @transform_3(%arg0: i32) -> (i32, i32, i32) {
    %c0_i32 = arith.constant 0 : i32
    %c0_i32_0 = arith.constant 0 : i32
    %c0_i32_1 = arith.constant 0 : i32
    return %arg0, %c0_i32, %c0_i32_0 : i32, i32, i32
  }
}

module attributes {stable_mosaic.version = 11 : i64} {
  func.func @_se_excite_kernel(%arg0: memref<2x64xf32, #tpu.memory_space<vmem>>, %arg1: memref<64x128xf32, #tpu.memory_space<vmem>>, %arg2: memref<128x64xf32, #tpu.memory_space<vmem>>, %arg3: memref<2x64xf32, #tpu.memory_space<vmem>>) attributes {dimension_semantics = [], scalar_prefetch = 0 : i64, scratch_operands = 0 : i64, tpu.core_type = #tpu.core_type<tc>} {
    %c0 = arith.constant 0 : index
    %c0_0 = arith.constant 0 : index
    %0 = vector.load %arg0[%c0, %c0_0] : memref<2x64xf32, #tpu.memory_space<vmem>>, vector<2x64xf32>
    %c0_1 = arith.constant 0 : index
    %c0_2 = arith.constant 0 : index
    %1 = vector.load %arg1[%c0_1, %c0_2] : memref<64x128xf32, #tpu.memory_space<vmem>>, vector<64x128xf32>
    %cst = arith.constant dense<0.000000e+00> : vector<2x128xf32>
    %2 = tpu.matmul %0, %1, %cst {dimension_numbers = #tpu.dot_dimension_numbers<[1], [0], [0], [1], [0, 0, 1, 1], [], []>} : vector<2x64xf32>, vector<64x128xf32>, vector<2x128xf32> -> vector<2x128xf32>
    %cst_3 = arith.constant 0.000000e+00 : f32
    %3 = vector.broadcast %cst_3 : f32 to vector<2x128xf32>
    %4 = arith.maximumf %2, %3 : vector<2x128xf32>
    %c0_4 = arith.constant 0 : index
    %c0_5 = arith.constant 0 : index
    %5 = vector.load %arg2[%c0_4, %c0_5] : memref<128x64xf32, #tpu.memory_space<vmem>>, vector<128x64xf32>
    %cst_6 = arith.constant dense<0.000000e+00> : vector<2x64xf32>
    %6 = tpu.matmul %4, %5, %cst_6 {dimension_numbers = #tpu.dot_dimension_numbers<[1], [0], [0], [1], [0, 0, 1, 1], [], []>} : vector<2x128xf32>, vector<128x64xf32>, vector<2x64xf32> -> vector<2x64xf32>
    %7 = arith.negf %6 : vector<2x64xf32>
    %8 = math.exp %7 : vector<2x64xf32>
    %cst_7 = arith.constant 1.000000e+00 : f32
    %9 = vector.broadcast %cst_7 : f32 to vector<2x64xf32>
    %10 = arith.addf %9, %8 : vector<2x64xf32>
    %11 = arith.divf %9, %10 : vector<2x64xf32>
    %c0_8 = arith.constant 0 : index
    %c0_9 = arith.constant 0 : index
    %12 = vector.load %arg3[%c0_8, %c0_9] : memref<2x64xf32, #tpu.memory_space<vmem>>, vector<2x64xf32>
    tpu.vector_store %arg3[%c0_8, %c0_9], %11 {strides = array<i32>} : memref<2x64xf32, #tpu.memory_space<vmem>>, vector<2x64xf32>,
    return
  }
}

</mosaic_0001>

<llo_original>
// kernel: forward.6
$region0: #{forward.6}
  #allocation0 [shape = 'u32[]', space=smem, size = 0x4, offset = 0x4, fixed_abs, tag = 'smem constant byte address 0x4 - core index']
  #allocation1 [shape = 'u32[72,128]{1,0:T(1,128)}', space=vmem, size = 0x9000, scoped, tag = 'internal scratch']
  %s0 = inlined_call_operand.vmem [shape: f32[2,64], index: 0, kind: input, shape index: {}]
  %s1 = inlined_call_operand.vmem [shape: f32[64,128], index: 1, kind: input, shape index: {}]
  %s2 = inlined_call_operand.vmem [shape: f32[128,64], index: 2, kind: input, shape index: {}]
  %s3 = inlined_call_operand.vmem [shape: f32[2,64], index: 3, kind: output, shape index: {}]
  %s4 = sld [smem:[#allocation0]]
  $region22: #{forward.6} parent=0
    _
  %s6 = ssub.s32 1, %s4
  %s7 = scalar_select 0, %s6, %s4
  // Predicated region
  $region2: #{forward.6} parent=0 // pred_check
    _
  $region3: #{forward.6} parent=0 // pred_check_branch
    %9 = sbr.rel (0) target = $region5
  $region4: #{forward.6} parent=0 // pred_region
    _
  $region5: #{forward.6} parent=0 // pred_fallthru
    _
  // Predicated region
  $region6: #{forward.6} parent=0 // pred_check
    _
  $region7: #{forward.6} parent=0 // pred_check_branch
    %11 = sbr.rel (0) target = $region9
  $region8: #{forward.6} parent=0 // pred_region
    _
  $region9: #{forward.6} parent=0 // pred_fallthru
    _
  // Predicated region
  $region10: #{forward.6} parent=0 // pred_check
    _
  $region11: #{forward.6} parent=0 // pred_check_branch
    %13 = sbr.rel (0) target = $region13
  $region12: #{forward.6} parent=0 // pred_region
    _
  $region13: #{forward.6} parent=0 // pred_fallthru
    _
  %v14 = vld [vmem:[%s0] sm:$0x3]
  %v15 = vld [vmem:[%s1] sm:$0xff]
  %v16 = vld [vmem:[%s1 + $0x8] sm:$0xff]
  %v17 = vld [vmem:[%s1 + $0x10] sm:$0xff]
  %v18 = vld [vmem:[%s1 + $0x18] sm:$0xff]
  %v19 = vld [vmem:[%s1 + $0x20] sm:$0xff]
  %v20 = vld [vmem:[%s1 + $0x28] sm:$0xff]
  %v21 = vld [vmem:[%s1 + $0x30] sm:$0xff]
  %v22 = vld [vmem:[%s1 + $0x38] sm:$0xff]
  %vm23 = vcmask 523264
  %v25 = vsel %vm23, %v14, 0
  %27 = vmatpush.msra.mxu0 0.0
  %28 = vmatpush.msra.mxu0 0.0
  %29 = vmatpush.msra.mxu0 0.0
  %30 = vmatpush.msra.mxu0 0.0
  %31 = vmatpush.msra.mxu0 0.0
  %32 = vmatpush.msra.mxu0 0.0
  %33 = vmatpush.msra.mxu0 0.0
  %34 = vmatpush.msra.mxu0 0.0
  %35 = vmatpush.msra.mxu0 %v22
  %36 = vmatpush.msra.mxu0 %v21
  %37 = vmatpush.msra.mxu0 %v20
  %38 = vmatpush.msra.mxu0 %v19
  %39 = vmatpush.msra.mxu0 %v18
  %40 = vmatpush.msra.mxu0 %v17
  %41 = vmatpush.msra.mxu0 %v16
  %42 = vmatpush.msra.mxu0 %v15
  %43 = vmatmul.f32.gmra.mxu0 %v25
  %v44 = vpop.f32.mrf.mxu0
  %v45 = vadd.f32 0.0, %v44
  %46 = vdwg.mxu0
  %v47 = vmax.f32 %v45, 0.0
  %v48 = vld [vmem:[%s2] sm:$0xff]
  %v49 = vld [vmem:[%s2 + $0x8] sm:$0xff]
  %v50 = vld [vmem:[%s2 + $0x10] sm:$0xff]
  %v51 = vld [vmem:[%s2 + $0x18] sm:$0xff]
  %v52 = vld [vmem:[%s2 + $0x20] sm:$0xff]
  %v53 = vld [vmem:[%s2 + $0x28] sm:$0xff]
  %v54 = vld [vmem:[%s2 + $0x30] sm:$0xff]
  %v55 = vld [vmem:[%s2 + $0x38] sm:$0xff]
  %v56 = vld [vmem:[%s2 + $0x40] sm:$0xff]
  %v57 = vld [vmem:[%s2 + $0x48] sm:$0xff]
  %v58 = vld [vmem:[%s2 + $0x50] sm:$0xff]
  %v59 = vld [vmem:[%s2 + $0x58] sm:$0xff]
  %v60 = vld [vmem:[%s2 + $0x60] sm:$0xff]
  %v61 = vld [vmem:[%s2 + $0x68] sm:$0xff]
  %v62 = vld [vmem:[%s2 + $0x70] sm:$0xff]
  %v63 = vld [vmem:[%s2 + $0x78] sm:$0xff]
  %64 = vmatpush.msra.mxu0 %v63
  %65 = vmatpush.msra.mxu0 %v62
  %66 = vmatpush.msra.mxu0 %v61
  %67 = vmatpush.msra.mxu0 %v60
  %68 = vmatpush.msra.mxu0 %v59
  %69 = vmatpush.msra.mxu0 %v58
  %70 = vmatpush.msra.mxu0 %v57
  %71 = vmatpush.msra.mxu0 %v56
  %72 = vmatpush.msra.mxu0 %v55
  %73 = vmatpush.msra.mxu0 %v54
  %74 = vmatpush.msra.mxu0 %v53
  %75 = vmatpush.msra.mxu0 %v52
  %76 = vmatpush.msra.mxu0 %v51
  %77 = vmatpush.msra.mxu0 %v50
  %78 = vmatpush.msra.mxu0 %v49
  %79 = vmatpush.msra.mxu0 %v48
  %80 = vmatmul.f32.gmra.mxu0 %v47
  %v81 = vpop.f32.mrf.mxu0
  %v82 = vadd.f32 0.0, %v81
  %83 = vdwg.mxu0
  %v84 = vxor.u32 %v82, 2147483648
  %v85 = vmul.f32 %v84, 1.442695
  %v86 = vpow.pop %v85
  %v87 = vadd.f32 %v86, 1.0
  %v88 = vrcp.pop %v87
  %v89 = vmul.f32 %v87, %v88
  %v90 = vsub.f32 1.0, %v89
  %v91 = vmul.f32 %v88, %v90
  %v92 = vadd.f32 %v88, %v91
  %vm93 = vweird.f32 %v87
  %vm94 = vweird.f32 %v88
  %vm95 = vmor %vm93, %vm94
  %v96 = vsel %vm95, %v88, %v92
  %v97 = vand.u32 2147483647, %v87
  %vm98 = vcmp.eq.f32.partialorder %v97, 8.507059e+37
  %v99 = vand.u32 %v87, 2147483648
  %v100 = vor.u32 1.1754944e-38, %v99
  %v101 = vsel %vm98, %v100, %v96
  %v102 = vmul.f32 1.0, %v101
  %vm103 = vcmask 517120
  %104 = vst.msk [vmem:[%s3] sm:$0x3] %vm103, %v102
  // Predicated region
  $region14: #{forward.6} parent=0 // pred_check
    _
  $region15: #{forward.6} parent=0 // pred_check_branch
    %106 = sbr.rel (0) target = $region17
  $region16: #{forward.6} parent=0 // pred_region
    _
  $region17: #{forward.6} parent=0 // pred_fallthru
    _
  // Predicated region
  $region18: #{forward.6} parent=0 // pred_check
    _
  $region19: #{forward.6} parent=0 // pred_check_branch
    %108 = sbr.rel (0) target = $region21
  $region20: #{forward.6} parent=0 // pred_region
    _
  $region21: #{forward.6} parent=0 // pred_fallthru
    _

// kernel: forward.7
$region0: #{forward.7}
  #allocation0 [shape = 'u32[]', space=smem, size = 0x4, offset = 0x4, fixed_abs, tag = 'smem constant byte address 0x4 - core index']
  #allocation1 [shape = 'u32[72,128]{1,0:T(1,128)}', space=vmem, size = 0x9000, scoped, tag = 'internal scratch']
  %s0 = inlined_call_operand.vmem [shape: bf16[2,256,64], index: 0, kind: input, shape index: {}]
  %s1 = inlined_call_operand.vmem [shape: f32[2,1,64], index: 1, kind: input, shape index: {}]
  %s2 = inlined_call_operand.vmem [shape: f32[2,256,64], index: 2, kind: input, shape index: {}]
  %s3 = inlined_call_operand.hbm [shape: f32[2,256,64], index: 3, kind: output, shape index: {}]
  %s4 = sld [smem:[#allocation0]]
  $region45: #{forward.7} parent=0
    _
  %s6 = ssub.s32 1, %s4
  %s7 = scalar_select 0, %s6, %s4
  $region1: #{forward.7} parent=0
    #allocation2 [shape = 'u8[262144]{0}', space=vmem, size = 0x40000, scoped, tag = 'output window, operand 0']
    #allocation3 [shape = 's32[2]{0}', space=sflag, size = 0x8, scoped, tag = 'scoped memory for forward.7']
    %8 = vsyncpa [#allocation3], 0
    %s9 = scalar_lea.sflag [#allocation3], 1
    %10 = vsyncpa %s9, 0
    loop: start=0, step=1, limit=4
    $region2: #{forward.7} parent=1 // loop_pre_header
      _
    $region3: #{forward.7} parent=1 // loop_header
      %s12 = sphi 0, %s16
      %p13 = scmp.ge.s32.totalorder %s12, 4
      %s22 = sphi 0, %s24
      %s25 = sphi 0, %s22
      %s26 = sphi 0, %s25
      %s42 = sphi 0, %s26
      %s48 = sphi 0, %s50
      %s51 = sphi 0, %s48
      %s52 = sphi 0, %s51
      %s68 = sphi 0, %s52
      %s74 = sphi 0, %s76
      %s77 = sphi 0, %s74
      %s78 = sphi 0, %s77
      %s94 = sphi 0, %s78
      %s100 = sphi 0, %s102
      %s103 = sphi 0, %s100
      %s104 = sphi 0, %s103
      %s120 = sphi 0, %s104
    $region4: #{forward.7} parent=1 // loop_header_branch
      %15 = sbr.rel (%p13) target = $region8
    $region5: #{forward.7} parent=1 // loop_body
      %s17 = ssub.s32 %s12, 1
      %s18 = ssub.s32 %s12, 2
      %s19 = sadd.s32 %s12, 1
      %s20 = ssub.s32 %s12, %s19
      %p21 = scmp.eq.s32.totalorder %s20, 0
      %s23 = sadd.s32 %s22, 1
      %s24 = scalar_select %p21, %s22, %s23
      %p27 = pneg %p21
      %p28 = scmp.eq.s32.totalorder %s12, 1
      %p29 = por %p27, %p28
      %p30 = scmp.ne.s32.totalorder %s22, %s25
      %p31 = scmp.eq.s32.totalorder %s12, 0
      %p32 = por %p30, %p31
      %p33 = scmp.ne.s32.totalorder %s22, %s25
      %p34 = scmp.eq.s32.totalorder %s17, 1
      %p35 = por %p33, %p34
      %p36 = scmp.ne.s32.totalorder %s25, %s26
      %p37 = scmp.eq.s32.totalorder %s17, 0
      %p38 = por %p36, %p37
      %p39 = scmp.ne.s32.totalorder %s25, %s26
      %p40 = scmp.eq.s32.totalorder %s18, 1
      %p41 = por %p39, %p40
      %p43 = scmp.ne.s32.totalorder %s26, %s42
      %p44 = scmp.eq.s32.totalorder %s18, 0
      %p45 = por %p43, %p44
      %s46 = ssub.s32 %s12, %s19
      %p47 = scmp.eq.s32.totalorder %s46, 0
      %s49 = sadd.s32 %s48, 1
      %s50 = scalar_select %p47, %s48, %s49
      %p53 = pneg %p47
      %p54 = scmp.eq.s32.totalorder %s12, 1
      %p55 = por %p53, %p54
      %p56 = scmp.ne.s32.totalorder %s48, %s51
      %p57 = scmp.eq.s32.totalorder %s12, 0
      %p58 = por %p56, %p57
      %p59 = scmp.ne.s32.totalorder %s48, %s51
      %p60 = scmp.eq.s32.totalorder %s17, 1
      %p61 = por %p59, %p60
      %p62 = scmp.ne.s32.totalorder %s51, %s52
      %p63 = scmp.eq.s32.totalorder %s17, 0
      %p64 = por %p62, %p63
      %p65 = scmp.ne.s32.totalorder %s51, %s52
      %p66 = scmp.eq.s32.totalorder %s18, 1
      %p67 = por %p65, %p66
      %p69 = scmp.ne.s32.totalorder %s52, %s68
      %p70 = scmp.eq.s32.totalorder %s18, 0
      %p71 = por %p69, %p70
      %s72 = ssub.s32 %s12, %s19
      %p73 = scmp.eq.s32.totalorder %s72, 0
      %s75 = sadd.s32 %s74, 1
      %s76 = scalar_select %p73, %s74, %s75
      %p79 = pneg %p73
      %p80 = scmp.eq.s32.totalorder %s12, 1
      %p81 = por %p79, %p80
      %p82 = scmp.ne.s32.totalorder %s74, %s77
      %p83 = scmp.eq.s32.totalorder %s12, 0
      %p84 = por %p82, %p83
      %p85 = scmp.ne.s32.totalorder %s74, %s77
      %p86 = scmp.eq.s32.totalorder %s17, 1
      %p87 = por %p85, %p86
      %p88 = scmp.ne.s32.totalorder %s77, %s78
      %p89 = scmp.eq.s32.totalorder %s17, 0
      %p90 = por %p88, %p89
      %p91 = scmp.ne.s32.totalorder %s77, %s78
      %p92 = scmp.eq.s32.totalorder %s18, 1
      %p93 = por %p91, %p92
      %p95 = scmp.ne.s32.totalorder %s78, %s94
      %p96 = scmp.eq.s32.totalorder %s18, 0
      %p97 = por %p95, %p96
      %s98 = ssub.s32 %s12, %s19
      %p99 = scmp.eq.s32.totalorder %s98, 0
      %s101 = sadd.s32 %s100, 1
      %s102 = scalar_select %p99, %s100, %s101
      %p105 = pneg %p99
      %p106 = scmp.eq.s32.totalorder %s12, 1
      %p107 = por %p105, %p106
      %p108 = scmp.ne.s32.totalorder %s100, %s103
      %p109 = scmp.eq.s32.totalorder %s12, 0
      %p110 = por %p108, %p109
      %p111 = scmp.ne.s32.totalorder %s100, %s103
      %p112 = scmp.eq.s32.totalorder %s17, 1
      %p113 = por %p111, %p112
      %p114 = scmp.ne.s32.totalorder %s103, %s104
      %p115 = scmp.eq.s32.totalorder %s17, 0
      %p116 = por %p114, %p115
      %p117 = scmp.ne.s32.totalorder %s103, %s104
      %p118 = scmp.eq.s32.totalorder %s18, 1
      %p119 = por %p117, %p118
      %p121 = scmp.ne.s32.totalorder %s104, %s120
      %p122 = scmp.eq.s32.totalorder %s18, 0
      %p123 = por %p121, %p122
      %p124 = scmp.le.s32.totalorder 1, %s12
      %p125 = scmp.lt.s32.totalorder %s12, 3
      %p126 = pnand %p124, %p125
      %p127 = pneg %p126
      // Predicated region
      $region9: #{forward.7} parent=5 // pred_check
        _
      $region10: #{forward.7} parent=5 // pred_check_branch
        %129 = sbr.rel (%p126) target = $region12
      $region11: #{forward.7} parent=5 // pred_region
        %s130 = ssub.s32 %s12, 1
      $region12: #{forward.7} parent=5 // pred_fallthru
        _
      %p131 = scmp.lt.s32.totalorder %s12, 2
      // Predicated region
      $region13: #{forward.7} parent=5 // pred_check
        %p132 = pneg %p131
      $region14: #{forward.7} parent=5 // pred_check_branch
        %134 = sbr.rel (%p132) target = $region16
      $region15: #{forward.7} parent=5 // pred_region
        // Predicated region
        $region17: #{forward.7} parent=15 // pred_check
          %p135 = pneg %p32
        $region18: #{forward.7} parent=15 // pred_check_branch
          %137 = sbr.rel (%p135) target = $region20
        $region19: #{forward.7} parent=15 // pred_region
          %p138 = scmp.lt.s32.totalorder %s12, 1
          %s139 = scalar_select %p138, %s12, 1
          %s140 = smul.addr %s139, 32
          %s141 = smul.addr %s140, 4
          %s142 = scalar_lea.vmem %s0, %s141
        $region20: #{forward.7} parent=15 // pred_fallthru
          _
        // Predicated region
        $region21: #{forward.7} parent=15 // pred_check
          %p143 = pneg %p58
        $region22: #{forward.7} parent=15 // pred_check_branch
          %145 = sbr.rel (%p143) target = $region24
        $region23: #{forward.7} parent=15 // pred_region
          %p146 = scmp.lt.s32.totalorder %s12, 1
          %s147 = scalar_select %p146, %s12, 1
          %s148 = scalar_lea.vmem %s1, %s147
        $region24: #{forward.7} parent=15 // pred_fallthru
          _
        // Predicated region
        $region25: #{forward.7} parent=15 // pred_check
          %p149 = pneg %p84
        $region26: #{forward.7} parent=15 // pred_check_branch
          %151 = sbr.rel (%p149) target = $region28
        $region27: #{forward.7} parent=15 // pred_region
          %p152 = scmp.lt.s32.totalorder %s12, 1
          %s153 = scalar_select %p152, %s12, 1
          %s154 = smul.addr %s153, 32
          %s155 = smul.addr %s154, 8
          %s156 = scalar_lea.vmem %s2, %s155
        $region28: #{forward.7} parent=15 // pred_fallthru
          _
      $region16: #{forward.7} parent=5 // pred_fallthru
        _
      %p157 = scmp.le.s32.totalorder 1, %s12
      %p158 = scmp.lt.s32.totalorder %s12, 3
      %p159 = pnand %p157, %p158
      %p160 = pneg %p159
      // Predicated region
      $region29: #{forward.7} parent=5 // pred_check
        _
      $region30: #{forward.7} parent=5 // pred_check_branch
        %162 = sbr.rel (%p159) target = $region32
      $region31: #{forward.7} parent=5 // pred_region
        %s163 = ssub.s32 %s12, 1
        %p164 = scmp.lt.s32.totalorder %s17, 1
        %s165 = scalar_select %p164, %s17, 1
        %s166 = smul.addr %s165, 32
        %s167 = smul.addr %s166, 4
        %s168 = scalar_lea.vmem %s0, %s167
        %p169 = pneg %p38
        %p170 = pneg %p35
        %p171 = scmp.lt.s32.totalorder %s17, 1
        %s172 = scalar_select %p171, %s17, 1
        %s173 = scalar_lea.vmem %s1, %s172
        %p174 = pneg %p64
        %p175 = pneg %p61
        %p176 = scmp.lt.s32.totalorder %s17, 1
        %s177 = scalar_select %p176, %s17, 1
        %s178 = smul.addr %s177, 32
        %s179 = smul.addr %s178, 8
        %s180 = scalar_lea.vmem %s2, %s179
        %p181 = pneg %p90
        %p182 = pneg %p87
        %p183 = pneg %p116
        %p184 = pneg %p113
        %s185 = sand.u32 %s103, 1
        %s186 = scalar_lea.sflag [#allocation3], %s185
        %s187 = sand.u32 %s103, 1
        %s188 = smul.addr %s187, 256
        %s189 = scalar_lea.vmem [#allocation2], %s188
        %p190 = scmp.lt.s32.totalorder %s17, 1
        %s191 = scalar_select %p190, %s17, 1
        %s192 = smul.addr %s191, 32
        %s193 = smul.addr %s192, 4
        %s194 = scalar_lea.vmem %s0, %s193
        %p195 = scmp.lt.s32.totalorder %s17, 1
        %s196 = scalar_select %p195, %s17, 1
        %s197 = scalar_lea.vmem %s1, %s196
        %p198 = scmp.lt.s32.totalorder %s17, 1
        %s199 = scalar_select %p198, %s17, 1
        %s200 = smul.addr %s199, 32
        %s201 = smul.addr %s200, 8
        %s202 = scalar_lea.vmem %s2, %s201
        %v203 = vld [vmem:[%s194] sm:$0xf]
        %v204 = vld [vmem:[%s194 + $0x4] sm:$0xf]
        %v205 = vld [vmem:[%s194 + $0x8] sm:$0xf]
        %v206 = vld [vmem:[%s194 + $0xc] sm:$0xf]
        %v207 = vld [vmem:[%s194 + $0x10] sm:$0xf]
        %v208 = vld [vmem:[%s194 + $0x14] sm:$0xf]
        %v209 = vld [vmem:[%s194 + $0x18] sm:$0xf]
        %v210 = vld [vmem:[%s194 + $0x1c] sm:$0xf]
        %v211 = vld [vmem:[%s194 + $0x20] sm:$0xf]
        %v212 = vld [vmem:[%s194 + $0x24] sm:$0xf]
        %v213 = vld [vmem:[%s194 + $0x28] sm:$0xf]
        %v214 = vld [vmem:[%s194 + $0x2c] sm:$0xf]
        %v215 = vld [vmem:[%s194 + $0x30] sm:$0xf]
        %v216 = vld [vmem:[%s194 + $0x34] sm:$0xf]
        %v217 = vld [vmem:[%s194 + $0x38] sm:$0xf]
        %v218 = vld [vmem:[%s194 + $0x3c] sm:$0xf]
        %v219 = vld [vmem:[%s194 + $0x40] sm:$0xf]
        %v220 = vld [vmem:[%s194 + $0x44] sm:$0xf]
        %v221 = vld [vmem:[%s194 + $0x48] sm:$0xf]
        %v222 = vld [vmem:[%s194 + $0x4c] sm:$0xf]
        %v223 = vld [vmem:[%s194 + $0x50] sm:$0xf]
        %v224 = vld [vmem:[%s194 + $0x54] sm:$0xf]
        %v225 = vld [vmem:[%s194 + $0x58] sm:$0xf]
        %v226 = vld [vmem:[%s194 + $0x5c] sm:$0xf]
        %v227 = vld [vmem:[%s194 + $0x60] sm:$0xf]
        %v228 = vld [vmem:[%s194 + $0x64] sm:$0xf]
        %v229 = vld [vmem:[%s194 + $0x68] sm:$0xf]
        %v230 = vld [vmem:[%s194 + $0x6c] sm:$0xf]
        %v231 = vld [vmem:[%s194 + $0x70] sm:$0xf]
        %v232 = vld [vmem:[%s194 + $0x74] sm:$0xf]
        %v233 = vld [vmem:[%s194 + $0x78] sm:$0xf]
        %v234 = vld [vmem:[%s194 + $0x7c] sm:$0xf]
        %v235 = vunpack.c.l.bf16 %v203
        %v236 = vunpack.c.l.bf16 %v204
        %v237 = vunpack.c.l.bf16 %v205
        %v238 = vunpack.c.l.bf16 %v206
        %v239 = vunpack.c.l.bf16 %v207
        %v240 = vunpack.c.l.bf16 %v208
        %v241 = vunpack.c.l.bf16 %v209
        %v242 = vunpack.c.l.bf16 %v210
        %v243 = vunpack.c.l.bf16 %v211
        %v244 = vunpack.c.l.bf16 %v212
        %v245 = vunpack.c.l.bf16 %v213
        %v246 = vunpack.c.l.bf16 %v214
        %v247 = vunpack.c.l.bf16 %v215
        %v248 = vunpack.c.l.bf16 %v216
        %v249 = vunpack.c.l.bf16 %v217
        %v250 = vunpack.c.l.bf16 %v218
        %v251 = vunpack.c.l.bf16 %v219
        %v252 = vunpack.c.l.bf16 %v220
        %v253 = vunpack.c.l.bf16 %v221
        %v254 = vunpack.c.l.bf16 %v222
        %v255 = vunpack.c.l.bf16 %v223
        %v256 = vunpack.c.l.bf16 %v224
        %v257 = vunpack.c.l.bf16 %v225
        %v258 = vunpack.c.l.bf16 %v226
        %v259 = vunpack.c.l.bf16 %v227
        %v260 = vunpack.c.l.bf16 %v228
        %v261 = vunpack.c.l.bf16 %v229
        %v262 = vunpack.c.l.bf16 %v230
        %v263 = vunpack.c.l.bf16 %v231
        %v264 = vunpack.c.l.bf16 %v232
        %v265 = vunpack.c.l.bf16 %v233
        %v266 = vunpack.c.l.bf16 %v234
        %v267 = vld [vmem:[%s197] sm:$0x1]
        %v269 = vperm.slane %v267, 0
        %v271 = vmul.f32 %v235, %v269
        %v272 = vmul.f32 %v236, %v269
        %v273 = vmul.f32 %v237, %v269
        %v274 = vmul.f32 %v238, %v269
        %v275 = vmul.f32 %v239, %v269
        %v276 = vmul.f32 %v240, %v269
        %v277 = vmul.f32 %v241, %v269
        %v278 = vmul.f32 %v242, %v269
        %v279 = vmul.f32 %v243, %v269
        %v280 = vmul.f32 %v244, %v269
        %v281 = vmul.f32 %v245, %v269
        %v282 = vmul.f32 %v246, %v269
        %v283 = vmul.f32 %v247, %v269
        %v284 = vmul.f32 %v248, %v269
        %v285 = vmul.f32 %v249, %v269
        %v286 = vmul.f32 %v250, %v269
        %v287 = vmul.f32 %v251, %v269
        %v288 = vmul.f32 %v252, %v269
        %v289 = vmul.f32 %v253, %v269
        %v290 = vmul.f32 %v254, %v269
        %v291 = vmul.f32 %v255, %v269
        %v292 = vmul.f32 %v256, %v269
        %v293 = vmul.f32 %v257, %v269
        %v294 = vmul.f32 %v258, %v269
        %v295 = vmul.f32 %v259, %v269
        %v296 = vmul.f32 %v260, %v269
        %v297 = vmul.f32 %v261, %v269
        %v298 = vmul.f32 %v262, %v269
        %v299 = vmul.f32 %v263, %v269
        %v300 = vmul.f32 %v264, %v269
        %v301 = vmul.f32 %v265, %v269
        %v302 = vmul.f32 %v266, %v269
        %v303 = vld [vmem:[%s202] sm:$0xff]
        %v304 = vld [vmem:[%s202 + $0x8] sm:$0xff]
        %v305 = vld [vmem:[%s202 + $0x10] sm:$0xff]
        %v306 = vld [vmem:[%s202 + $0x18] sm:$0xff]
        %v307 = vld [vmem:[%s202 + $0x20] sm:$0xff]
        %v308 = vld [vmem:[%s202 + $0x28] sm:$0xff]
        %v309 = vld [vmem:[%s202 + $0x30] sm:$0xff]
        %v310 = vld [vmem:[%s202 + $0x38] sm:$0xff]
        %v311 = vld [vmem:[%s202 + $0x40] sm:$0xff]
        %v312 = vld [vmem:[%s202 + $0x48] sm:$0xff]
        %v313 = vld [vmem:[%s202 + $0x50] sm:$0xff]
        %v314 = vld [vmem:[%s202 + $0x58] sm:$0xff]
        %v315 = vld [vmem:[%s202 + $0x60] sm:$0xff]
        %v316 = vld [vmem:[%s202 + $0x68] sm:$0xff]
        %v317 = vld [vmem:[%s202 + $0x70] sm:$0xff]
        %v318 = vld [vmem:[%s202 + $0x78] sm:$0xff]
        %v319 = vld [vmem:[%s202 + $0x80] sm:$0xff]
        %v320 = vld [vmem:[%s202 + $0x88] sm:$0xff]
        %v321 = vld [vmem:[%s202 + $0x90] sm:$0xff]
        %v322 = vld [vmem:[%s202 + $0x98] sm:$0xff]
        %v323 = vld [vmem:[%s202 + $0xa0] sm:$0xff]
        %v324 = vld [vmem:[%s202 + $0xa8] sm:$0xff]
        %v325 = vld [vmem:[%s202 + $0xb0] sm:$0xff]
        %v326 = vld [vmem:[%s202 + $0xb8] sm:$0xff]
        %v327 = vld [vmem:[%s202 + $0xc0] sm:$0xff]
        %v328 = vld [vmem:[%s202 + $0xc8] sm:$0xff]
        %v329 = vld [vmem:[%s202 + $0xd0] sm:$0xff]
        %v330 = vld [vmem:[%s202 + $0xd8] sm:$0xff]
        %v331 = vld [vmem:[%s202 + $0xe0] sm:$0xff]
        %v332 = vld [vmem:[%s202 + $0xe8] sm:$0xff]
        %v333 = vld [vmem:[%s202 + $0xf0] sm:$0xff]
        %v334 = vld [vmem:[%s202 + $0xf8] sm:$0xff]
        %v335 = vadd.f32 %v271, %v303
        %v336 = vadd.f32 %v272, %v304
        %v337 = vadd.f32 %v273, %v305
        %v338 = vadd.f32 %v274, %v306
        %v339 = vadd.f32 %v275, %v307
        %v340 = vadd.f32 %v276, %v308
        %v341 = vadd.f32 %v277, %v309
        %v342 = vadd.f32 %v278, %v310
        %v343 = vadd.f32 %v279, %v311
        %v344 = vadd.f32 %v280, %v312
        %v345 = vadd.f32 %v281, %v313
        %v346 = vadd.f32 %v282, %v314
        %v347 = vadd.f32 %v283, %v315
        %v348 = vadd.f32 %v284, %v316
        %v349 = vadd.f32 %v285, %v317
        %v350 = vadd.f32 %v286, %v318
        %v351 = vadd.f32 %v287, %v319
        %v352 = vadd.f32 %v288, %v320
        %v353 = vadd.f32 %v289, %v321
        %v354 = vadd.f32 %v290, %v322
        %v355 = vadd.f32 %v291, %v323
        %v356 = vadd.f32 %v292, %v324
        %v357 = vadd.f32 %v293, %v325
        %v358 = vadd.f32 %v294, %v326
        %v359 = vadd.f32 %v295, %v327
        %v360 = vadd.f32 %v296, %v328
        %v361 = vadd.f32 %v297, %v329
        %v362 = vadd.f32 %v298, %v330
        %v363 = vadd.f32 %v299, %v331
        %v364 = vadd.f32 %v300, %v332
        %v365 = vadd.f32 %v301, %v333
        %v366 = vadd.f32 %v302, %v334
        %v367 = vmax.f32 %v335, 0.0
        %v368 = vmax.f32 %v336, 0.0
        %v369 = vmax.f32 %v337, 0.0
        %v370 = vmax.f32 %v338, 0.0
        %v371 = vmax.f32 %v339, 0.0
        %v372 = vmax.f32 %v340, 0.0
        %v373 = vmax.f32 %v341, 0.0
        %v374 = vmax.f32 %v342, 0.0
        %v375 = vmax.f32 %v343, 0.0
        %v376 = vmax.f32 %v344, 0.0
        %v377 = vmax.f32 %v345, 0.0
        %v378 = vmax.f32 %v346, 0.0
        %v379 = vmax.f32 %v347, 0.0
        %v380 = vmax.f32 %v348, 0.0
        %v381 = vmax.f32 %v349, 0.0
        %v382 = vmax.f32 %v350, 0.0
        %v383 = vmax.f32 %v351, 0.0
        %v384 = vmax.f32 %v352, 0.0
        %v385 = vmax.f32 %v353, 0.0
        %v386 = vmax.f32 %v354, 0.0
        %v387 = vmax.f32 %v355, 0.0
        %v388 = vmax.f32 %v356, 0.0
        %v389 = vmax.f32 %v357, 0.0
        %v390 = vmax.f32 %v358, 0.0
        %v391 = vmax.f32 %v359, 0.0
        %v392 = vmax.f32 %v360, 0.0
        %v393 = vmax.f32 %v361, 0.0
        %v394 = vmax.f32 %v362, 0.0
        %v395 = vmax.f32 %v363, 0.0
        %v396 = vmax.f32 %v364, 0.0
        %v397 = vmax.f32 %v365, 0.0
        %v398 = vmax.f32 %v366, 0.0
        %vm399 = vcmask 523264
        %400 = vst.msk [vmem:[%s189] sm:$0xff] %vm399, %v367
        %401 = vst.msk [vmem:[%s189 + $0x8] sm:$0xff] %vm399, %v368
        %402 = vst.msk [vmem:[%s189 + $0x10] sm:$0xff] %vm399, %v369
        %403 = vst.msk [vmem:[%s189 + $0x18] sm:$0xff] %vm399, %v370
        %404 = vst.msk [vmem:[%s189 + $0x20] sm:$0xff] %vm399, %v371
        %405 = vst.msk [vmem:[%s189 + $0x28] sm:$0xff] %vm399, %v372
        %406 = vst.msk [vmem:[%s189 + $0x30] sm:$0xff] %vm399, %v373
        %407 = vst.msk [vmem:[%s189 + $0x38] sm:$0xff] %vm399, %v374
        %408 = vst.msk [vmem:[%s189 + $0x40] sm:$0xff] %vm399, %v375
        %409 = vst.msk [vmem:[%s189 + $0x48] sm:$0xff] %vm399, %v376
        %410 = vst.msk [vmem:[%s189 + $0x50] sm:$0xff] %vm399, %v377
        %411 = vst.msk [vmem:[%s189 + $0x58] sm:$0xff] %vm399, %v378
        %412 = vst.msk [vmem:[%s189 + $0x60] sm:$0xff] %vm399, %v379
        %413 = vst.msk [vmem:[%s189 + $0x68] sm:$0xff] %vm399, %v380
        %414 = vst.msk [vmem:[%s189 + $0x70] sm:$0xff] %vm399, %v381
        %415 = vst.msk [vmem:[%s189 + $0x78] sm:$0xff] %vm399, %v382
        %416 = vst.msk [vmem:[%s189 + $0x80] sm:$0xff] %vm399, %v383
        %417 = vst.msk [vmem:[%s189 + $0x88] sm:$0xff] %vm399, %v384
        %418 = vst.msk [vmem:[%s189 + $0x90] sm:$0xff] %vm399, %v385
        %419 = vst.msk [vmem:[%s189 + $0x98] sm:$0xff] %vm399, %v386
        %420 = vst.msk [vmem:[%s189 + $0xa0] sm:$0xff] %vm399, %v387
        %421 = vst.msk [vmem:[%s189 + $0xa8] sm:$0xff] %vm399, %v388
        %422 = vst.msk [vmem:[%s189 + $0xb0] sm:$0xff] %vm399, %v389
        %423 = vst.msk [vmem:[%s189 + $0xb8] sm:$0xff] %vm399, %v390
        %424 = vst.msk [vmem:[%s189 + $0xc0] sm:$0xff] %vm399, %v391
        %425 = vst.msk [vmem:[%s189 + $0xc8] sm:$0xff] %vm399, %v392
        %426 = vst.msk [vmem:[%s189 + $0xd0] sm:$0xff] %vm399, %v393
        %427 = vst.msk [vmem:[%s189 + $0xd8] sm:$0xff] %vm399, %v394
        %428 = vst.msk [vmem:[%s189 + $0xe0] sm:$0xff] %vm399, %v395
        %429 = vst.msk [vmem:[%s189 + $0xe8] sm:$0xff] %vm399, %v396
        %430 = vst.msk [vmem:[%s189 + $0xf0] sm:$0xff] %vm399, %v397
        %431 = vst.msk [vmem:[%s189 + $0xf8] sm:$0xff] %vm399, %v398
        %s432 = sand.u32 %s103, 1
        %s433 = scalar_lea.sflag [#allocation3], %s432
        %s434 = sand.u32 %s103, 1
        %s435 = smul.addr %s434, 256
        %s436 = scalar_lea.vmem [#allocation2], %s435
        // Predicated region
        $region33: #{forward.7} parent=31 // pred_check
          %p437 = pneg %p113
        $region34: #{forward.7} parent=31 // pred_check_branch
          %439 = sbr.rel (%p437) target = $region36
        $region35: #{forward.7} parent=31 // pred_region
          %441 = vsyncadd %s433, 0
          %s442 = smul.addr %s17, 32
          %s443 = smul.addr %s442, 8
          %s444 = scalar_lea.hbm %s3, %s443
          %s445 = sshll.u32 %s436, 4
          %s446 = int_to_ptr.vmem [resolvable:$true] %s445
          %s447 = sshll.u32 %s444, 4
          %s448 = int_to_ptr.hbm [resolvable:$true] %s447
          %453 = dma.vmem_to_hbm [thread:$0]  %s446, 4096, %s448, %s433, 128, 128, 8
        $region36: #{forward.7} parent=31 // pred_fallthru
          _
      $region32: #{forward.7} parent=5 // pred_fallthru
        _
      %p454 = scmp.le.s32.totalorder 2, %s12
      // Predicated region
      $region37: #{forward.7} parent=5 // pred_check
        %p455 = pneg %p454
      $region38: #{forward.7} parent=5 // pred_check_branch
        %457 = sbr.rel (%p455) target = $region40
      $region39: #{forward.7} parent=5 // pred_region
        %s458 = ssub.s32 %s12, 2
        // Predicated region
        $region41: #{forward.7} parent=39 // pred_check
          %p459 = pneg %p119
        $region42: #{forward.7} parent=39 // pred_check_branch
          %461 = sbr.rel (%p459) target = $region44
        $region43: #{forward.7} parent=39 // pred_region
          %s462 = sand.u32 %s104, 1
          %s463 = scalar_lea.sflag [#allocation3], %s462
          %s464 = sand.u32 %s104, 1
          %s465 = smul.addr %s464, 256
          %s466 = scalar_lea.vmem [#allocation2], %s465
          %468 = dma.done %s463, 4096
        $region44: #{forward.7} parent=39 // pred_fallthru
          _
      $region40: #{forward.7} parent=5 // pred_fallthru
        _
    $region6: #{forward.7} parent=1 // loop_footer
      %s16 = sadd.s32 1, %s12
    $region7: #{forward.7} parent=1 // loop_footer_branch
      %11 = sbr.rel target = $region3
    $region8: #{forward.7} parent=1 // loop_exit
      _
    %469 = vsyncpa [#allocation3], 1
    %s470 = scalar_lea.sflag [#allocation3], 1
    %471 = vsyncpa %s470, 1

// kernel: forward.4
$region0: #{forward.4}
  #allocation0 [shape = 'u32[]', space=smem, size = 0x4, offset = 0x4, fixed_abs, tag = 'smem constant byte address 0x4 - core index']
  #allocation1 [shape = 'u32[72,128]{1,0:T(1,128)}', space=vmem, size = 0x9000, scoped, tag = 'internal scratch']
  %s0 = inlined_call_operand.vmem [shape: bf16[2,18,18,64], index: 0, kind: input, shape index: {}]
  %s1 = inlined_call_operand.vmem [shape: bf16[9,64,64], index: 1, kind: input, shape index: {}]
  %s2 = inlined_call_operand.vmem [shape: f32[1,64], index: 2, kind: input, shape index: {}]
  %s3 = inlined_call_operand.vmem [shape: bf16[2,256,64], index: 3, kind: output, shape index: {}]
  %s4 = sld [smem:[#allocation0]]
  $region45: #{forward.4} parent=0
    _
  %s6 = ssub.s32 1, %s4
  %s7 = scalar_select 0, %s6, %s4
  loop: start=0, step=1, limit=4
  $region2: #{forward.4} parent=0 // loop_pre_header
    _
  $region3: #{forward.4} parent=0 // loop_header
    %s9 = sphi 0, %s13
    %p10 = scmp.ge.s32.totalorder %s9, 4
    %s19 = sphi 0, %s21
    %s22 = sphi 0, %s19
    %s23 = sphi 0, %s22
    %s39 = sphi 0, %s23
    %s43 = sphi 0, %s43
    %s45 = sphi 0, %s43
    %s46 = sphi 0, %s45
    %s60 = sphi 0, %s46
    %s64 = sphi 0, %s64
    %s66 = sphi 0, %s64
    %s67 = sphi 0, %s66
    %s81 = sphi 0, %s67
    %s87 = sphi 0, %s89
    %s90 = sphi 0, %s87
    %s91 = sphi 0, %s90
    %s107 = sphi 0, %s91
  $region4: #{forward.4} parent=0 // loop_header_branch
    %12 = sbr.rel (%p10) target = $region8
  $region5: #{forward.4} parent=0 // loop_body
    %s14 = ssub.s32 %s9, 1
    %s15 = ssub.s32 %s9, 2
    %s16 = sadd.s32 %s9, 1
    %s17 = ssub.s32 %s9, %s16
    %p18 = scmp.eq.s32.totalorder %s17, 0
    %s20 = sadd.s32 %s19, 1
    %s21 = scalar_select %p18, %s19, %s20
    %p24 = pneg %p18
    %p25 = scmp.eq.s32.totalorder %s9, 1
    %p26 = por %p24, %p25
    %p27 = scmp.ne.s32.totalorder %s19, %s22
    %p28 = scmp.eq.s32.totalorder %s9, 0
    %p29 = por %p27, %p28
    %p30 = scmp.ne.s32.totalorder %s19, %s22
    %p31 = scmp.eq.s32.totalorder %s14, 1
    %p32 = por %p30, %p31
    %p33 = scmp.ne.s32.totalorder %s22, %s23
    %p34 = scmp.eq.s32.totalorder %s14, 0
    %p35 = por %p33, %p34
    %p36 = scmp.ne.s32.totalorder %s22, %s23
    %p37 = scmp.eq.s32.totalorder %s15, 1
    %p38 = por %p36, %p37
    %p40 = scmp.ne.s32.totalorder %s23, %s39
    %p41 = scmp.eq.s32.totalorder %s15, 0
    %p42 = por %p40, %p41
    %s44 = sadd.s32 %s43, 1
    %p47 = scmp.eq.s32.totalorder %s9, 1
    %p48 = scmp.ne.s32.totalorder %s43, %s45
    %p49 = scmp.eq.s32.totalorder %s9, 0
    %p50 = por %p48, %p49
    %p51 = scmp.ne.s32.totalorder %s43, %s45
    %p52 = scmp.eq.s32.totalorder %s14, 1
    %p53 = por %p51, %p52
    %p54 = scmp.ne.s32.totalorder %s45, %s46
    %p55 = scmp.eq.s32.totalorder %s14, 0
    %p56 = por %p54, %p55
    %p57 = scmp.ne.s32.totalorder %s45, %s46
    %p58 = scmp.eq.s32.totalorder %s15, 1
    %p59 = por %p57, %p58
    %p61 = scmp.ne.s32.totalorder %s46, %s60
    %p62 = scmp.eq.s32.totalorder %s15, 0
    %p63 = por %p61, %p62
    %s65 = sadd.s32 %s64, 1
    %p68 = scmp.eq.s32.totalorder %s9, 1
    %p69 = scmp.ne.s32.totalorder %s64, %s66
    %p70 = scmp.eq.s32.totalorder %s9, 0
    %p71 = por %p69, %p70
    %p72 = scmp.ne.s32.totalorder %s64, %s66
    %p73 = scmp.eq.s32.totalorder %s14, 1
    %p74 = por %p72, %p73
    %p75 = scmp.ne.s32.totalorder %s66, %s67
    %p76 = scmp.eq.s32.totalorder %s14, 0
    %p77 = por %p75, %p76
    %p78 = scmp.ne.s32.totalorder %s66, %s67
    %p79 = scmp.eq.s32.totalorder %s15, 1
    %p80 = por %p78, %p79
    %p82 = scmp.ne.s32.totalorder %s67, %s81
    %p83 = scmp.eq.s32.totalorder %s15, 0
    %p84 = por %p82, %p83
    %s85 = ssub.s32 %s9, %s16
    %p86 = scmp.eq.s32.totalorder %s85, 0
    %s88 = sadd.s32 %s87, 1
    %s89 = scalar_select %p86, %s87, %s88
    %p92 = pneg %p86
    %p93 = scmp.eq.s32.totalorder %s9, 1
    %p94 = por %p92, %p93
    %p95 = scmp.ne.s32.totalorder %s87, %s90
    %p96 = scmp.eq.s32.totalorder %s9, 0
    %p97 = por %p95, %p96
    %p98 = scmp.ne.s32.totalorder %s87, %s90
    %p99 = scmp.eq.s32.totalorder %s14, 1
    %p100 = por %p98, %p99
    %p101 = scmp.ne.s32.totalorder %s90, %s91
    %p102 = scmp.eq.s32.totalorder %s14, 0
    %p103 = por %p101, %p102
    %p104 = scmp.ne.s32.totalorder %s90, %s91
    %p105 = scmp.eq.s32.totalorder %s15, 1
    %p106 = por %p104, %p105
    %p108 = scmp.ne.s32.totalorder %s91, %s107
    %p109 = scmp.eq.s32.totalorder %s15, 0
    %p110 = por %p108, %p109
    %p111 = scmp.le.s32.totalorder 1, %s9
    %p112 = scmp.lt.s32.totalorder %s9, 3
    %p113 = pnand %p111, %p112
    %p114 = pneg %p113
    // Predicated region
    $region9: #{forward.4} parent=5 // pred_check
      _
    $region10: #{forward.4} parent=5 // pred_check_branch
      %116 = sbr.rel (%p113) target = $region12
    $region11: #{forward.4} parent=5 // pred_region
      %s117 = ssub.s32 %s9, 1
      // Predicated region
      $region13: #{forward.4} parent=11 // pred_check
        %p118 = pneg %p56
      $region14: #{forward.4} parent=11 // pred_check_branch
        %120 = sbr.rel (%p118) target = $region16
      $region15: #{forward.4} parent=11 // pred_region
        _
      $region16: #{forward.4} parent=11 // pred_fallthru
        _
      // Predicated region
      $region17: #{forward.4} parent=11 // pred_check
        %p121 = pneg %p77
      $region18: #{forward.4} parent=11 // pred_check_branch
        %123 = sbr.rel (%p121) target = $region20
      $region19: #{forward.4} parent=11 // pred_region
        _
      $region20: #{forward.4} parent=11 // pred_fallthru
        _
    $region12: #{forward.4} parent=5 // pred_fallthru
      _
    %p124 = scmp.lt.s32.totalorder %s9, 2
    // Predicated region
    $region21: #{forward.4} parent=5 // pred_check
      %p125 = pneg %p124
    $region22: #{forward.4} parent=5 // pred_check_branch
      %127 = sbr.rel (%p125) target = $region24
    $region23: #{forward.4} parent=5 // pred_region
      // Predicated region
      $region25: #{forward.4} parent=23 // pred_check
        %p128 = pneg %p29
      $region26: #{forward.4} parent=23 // pred_check_branch
        %130 = sbr.rel (%p128) target = $region28
      $region27: #{forward.4} parent=23 // pred_region
        %p131 = scmp.lt.s32.totalorder %s9, 1
        %s132 = scalar_select %p131, %s9, 1
        %s133 = smul.addr %s132, 54
        %s134 = smul.addr %s133, 4
        %s135 = scalar_lea.vmem %s0, %s134
      $region28: #{forward.4} parent=23 // pred_fallthru
        _
    $region24: #{forward.4} parent=5 // pred_fallthru
      _
    %p136 = scmp.le.s32.totalorder 1, %s9
    %p137 = scmp.lt.s32.totalorder %s9, 3
    %p138 = pnand %p136, %p137
    %p139 = pneg %p138
    // Predicated region
    $region29: #{forward.4} parent=5 // pred_check
      _
    $region30: #{forward.4} parent=5 // pred_check_branch
      %141 = sbr.rel (%p138) target = $region32
    $region31: #{forward.4} parent=5 // pred_region
      %s142 = ssub.s32 %s9, 1
      %p143 = scmp.lt.s32.totalorder %s14, 1
      %s144 = scalar_select %p143, %s14, 1
      %s145 = smul.addr %s144, 54
      %s146 = smul.addr %s145, 4
      %s147 = scalar_lea.vmem %s0, %s146
      %p148 = pneg %p35
      %p149 = pneg %p32
      %p150 = pneg %p56
      %p151 = pneg %p53
      %p152 = pneg %p77
      %p153 = pneg %p74
      %p154 = pneg %p103
      %p155 = pneg %p100
      %p156 = scmp.lt.s32.totalorder %s14, 1
      %s157 = scalar_select %p156, %s14, 1
      %s158 = smul.addr %s157, 32
      %s159 = smul.addr %s158, 4
      %s160 = scalar_lea.vmem %s3, %s159
      %p161 = scmp.lt.s32.totalorder %s14, 1
      %s162 = scalar_select %p161, %s14, 1
      %s163 = smul.addr %s162, 54
      %s164 = smul.addr %s163, 4
      %s165 = scalar_lea.vmem %s0, %s164
      %p166 = scmp.lt.s32.totalorder %s14, 1
      %s167 = scalar_select %p166, %s14, 1
      %s168 = smul.addr %s167, 32
      %s169 = smul.addr %s168, 4
      %s170 = scalar_lea.vmem %s3, %s169
      %v172 = vld [vmem:[%s165] sm:$0xf]
      %v173 = vld [vmem:[%s165 + $0x4] sm:$0xf]
      %v174 = vld [vmem:[%s165 + $0x8] sm:$0x1]
      %v175 = vld [vmem:[%s165 + $0xc] sm:$0xf]
      %v176 = vld [vmem:[%s165 + $0x10] sm:$0xf]
      %v177 = vld [vmem:[%s165 + $0x14] sm:$0x1]
      %v178 = vld [vmem:[%s165 + $0x18] sm:$0xf]
      %v179 = vld [vmem:[%s165 + $0x1c] sm:$0xf]
      %v180 = vld [vmem:[%s165 + $0x20] sm:$0x1]
      %v181 = vld [vmem:[%s165 + $0x24] sm:$0xf]
      %v182 = vld [vmem:[%s165 + $0x28] sm:$0xf]
      %v183 = vld [vmem:[%s165 + $0x2c] sm:$0x1]
      %v184 = vld [vmem:[%s165 + $0x30] sm:$0xf]
      %v185 = vld [vmem:[%s165 + $0x34] sm:$0xf]
      %v186 = vld [vmem:[%s165 + $0x38] sm:$0x1]
      %v187 = vld [vmem:[%s165 + $0x3c] sm:$0xf]
      %v188 = vld [vmem:[%s165 + $0x40] sm:$0xf]
      %v189 = vld [vmem:[%s165 + $0x44] sm:$0x1]
      %v190 = vld [vmem:[%s165 + $0x48] sm:$0xf]
      %v191 = vld [vmem:[%s165 + $0x4c] sm:$0xf]
      %v192 = vld [vmem:[%s165 + $0x50] sm:$0x1]
      %v193 = vld [vmem:[%s165 + $0x54] sm:$0xf]
      %v194 = vld [vmem:[%s165 + $0x58] sm:$0xf]
      %v195 = vld [vmem:[%s165 + $0x5c] sm:$0x1]
      %v196 = vld [vmem:[%s165 + $0x60] sm:$0xf]
      %v197 = vld [vmem:[%s165 + $0x64] sm:$0xf]
      %v198 = vld [vmem:[%s165 + $0x68] sm:$0x1]
      %v199 = vld [vmem:[%s165 + $0x6c] sm:$0xf]
      %v200 = vld [vmem:[%s165 + $0x70] sm:$0xf]
      %v201 = vld [vmem:[%s165 + $0x74] sm:$0x1]
      %v202 = vld [vmem:[%s165 + $0x78] sm:$0xf]
      %v203 = vld [vmem:[%s165 + $0x7c] sm:$0xf]
      %v204 = vld [vmem:[%s165 + $0x80] sm:$0x1]
      %v205 = vld [vmem:[%s165 + $0x84] sm:$0xf]
      %v206 = vld [vmem:[%s165 + $0x88] sm:$0xf]
      %v207 = vld [vmem:[%s165 + $0x8c] sm:$0x1]
      %v208 = vld [vmem:[%s165 + $0x90] sm:$0xf]
      %v209 = vld [vmem:[%s165 + $0x94] sm:$0xf]
      %v210 = vld [vmem:[%s165 + $0x98] sm:$0x1]
      %v211 = vld [vmem:[%s165 + $0x9c] sm:$0xf]
      %v212 = vld [vmem:[%s165 + $0xa0] sm:$0xf]
      %v213 = vld [vmem:[%s165 + $0xa4] sm:$0x1]
      %v214 = vld [vmem:[%s165 + $0xa8] sm:$0xf]
      %v215 = vld [vmem:[%s165 + $0xac] sm:$0xf]
      %v216 = vld [vmem:[%s165 + $0xb0] sm:$0x1]
      %v217 = vld [vmem:[%s165 + $0xb4] sm:$0xf]
      %v218 = vld [vmem:[%s165 + $0xb8] sm:$0xf]
      %v219 = vld [vmem:[%s165 + $0xbc] sm:$0x1]
      %v220 = vld [vmem:[%s165 + $0xc0] sm:$0xf]
      %v221 = vld [vmem:[%s165 + $0xc4] sm:$0xf]
      %v222 = vld [vmem:[%s165 + $0xc8] sm:$0x1]
      %v223 = vld [vmem:[%s165 + $0xcc] sm:$0xf]
      %v224 = vld [vmem:[%s165 + $0xd0] sm:$0xf]
      %v225 = vld [vmem:[%s165 + $0xd4] sm:$0x1]
      %v226 = vld [vmem:[%s1] sm:$0xf]
      %v227 = vld [vmem:[%s1 + $0x4] sm:$0xf]
      %v228 = vld [vmem:[%s1 + $0x8] sm:$0xf]
      %v229 = vld [vmem:[%s1 + $0xc] sm:$0xf]
      %v230 = vld [vmem:[%s1 + $0x10] sm:$0xf]
      %v231 = vld [vmem:[%s1 + $0x14] sm:$0xf]
      %v232 = vld [vmem:[%s1 + $0x18] sm:$0xf]
      %v233 = vld [vmem:[%s1 + $0x1c] sm:$0xf]
      %vm234 = vsmask.f32 3328
      %vm235 = vsmask.f32 7440
      %vm236 = vmor %vm234, %vm235
      %v238 = vshrl.u32 %v172, 16
      %v240 = vrot.slane %v238, 4
      %v241 = vshll.u32 %v172, 16
      %v243 = vrot.slane %v241, 5
      %v244 = vor.u32 %v240, %v243
      %v245 = vrot.slane %v244, 4
      %v247 = vshll.u32 %v173, 16
      %v249 = vrot.slane %v247, 5
      %v250 = vsel %vm236, %v245, %v249
      %v251 = vshrl.u32 %v173, 16
      %v253 = vrot.slane %v251, 4
      %v254 = vor.u32 %v253, %v249
      %v255 = vrot.slane %v254, 4
      %v257 = vshll.u32 %v174, 16
      %v259 = vrot.slane %v257, 5
      %v260 = vsel %vm236, %v255, %v259
      %v262 = vshrl.u32 %v175, 16
      %v264 = vrot.slane %v262, 4
      %v265 = vshll.u32 %v175, 16
      %v267 = vrot.slane %v265, 5
      %v268 = vor.u32 %v264, %v267
      %v269 = vrot.slane %v268, 4
      %v271 = vshll.u32 %v176, 16
      %v273 = vrot.slane %v271, 5
      %v274 = vsel %vm236, %v269, %v273
      %v275 = vshrl.u32 %v176, 16
      %v277 = vrot.slane %v275, 4
      %v278 = vor.u32 %v277, %v273
      %v279 = vrot.slane %v278, 4
      %v281 = vshll.u32 %v177, 16
      %v283 = vrot.slane %v281, 5
      %v284 = vsel %vm236, %v279, %v283
      %v286 = vshrl.u32 %v178, 16
      %v288 = vrot.slane %v286, 4
      %v289 = vshll.u32 %v178, 16
      %v291 = vrot.slane %v289, 5
      %v292 = vor.u32 %v288, %v291
      %v293 = vrot.slane %v292, 4
      %v295 = vshll.u32 %v179, 16
      %v297 = vrot.slane %v295, 5
      %v298 = vsel %vm236, %v293, %v297
      %v299 = vshrl.u32 %v179, 16
      %v301 = vrot.slane %v299, 4
      %v302 = vor.u32 %v301, %v297
      %v303 = vrot.slane %v302, 4
      %v305 = vshll.u32 %v180, 16
      %v307 = vrot.slane %v305, 5
      %v308 = vsel %vm236, %v303, %v307
      %v310 = vshrl.u32 %v181, 16
      %v312 = vrot.slane %v310, 4
      %v313 = vshll.u32 %v181, 16
      %v315 = vrot.slane %v313, 5
      %v316 = vor.u32 %v312, %v315
      %v317 = vrot.slane %v316, 4
      %v319 = vshll.u32 %v182, 16
      %v321 = vrot.slane %v319, 5
      %v322 = vsel %vm236, %v317, %v321
      %v323 = vshrl.u32 %v182, 16
      %v325 = vrot.slane %v323, 4
      %v326 = vor.u32 %v325, %v321
      %v327 = vrot.slane %v326, 4
      %v329 = vshll.u32 %v183, 16
      %v331 = vrot.slane %v329, 5
      %v332 = vsel %vm236, %v327, %v331
      %v334 = vshrl.u32 %v184, 16
      %v336 = vrot.slane %v334, 4
      %v337 = vshll.u32 %v184, 16
      %v339 = vrot.slane %v337, 5
      %v340 = vor.u32 %v336, %v339
      %v341 = vrot.slane %v340, 4
      %v343 = vshll.u32 %v185, 16
      %v345 = vrot.slane %v343, 5
      %v346 = vsel %vm236, %v341, %v345
      %v347 = vshrl.u32 %v185, 16
      %v349 = vrot.slane %v347, 4
      %v350 = vor.u32 %v349, %v345
      %v351 = vrot.slane %v350, 4
      %v353 = vshll.u32 %v186, 16
      %v355 = vrot.slane %v353, 5
      %v356 = vsel %vm236, %v351, %v355
      %v358 = vshrl.u32 %v187, 16
      %v360 = vrot.slane %v358, 4
      %v361 = vshll.u32 %v187, 16
      %v363 = vrot.slane %v361, 5
      %v364 = vor.u32 %v360, %v363
      %v365 = vrot.slane %v364, 4
      %v367 = vshll.u32 %v188, 16
      %v369 = vrot.slane %v367, 5
      %v370 = vsel %vm236, %v365, %v369
      %v371 = vshrl.u32 %v188, 16
      %v373 = vrot.slane %v371, 4
      %v374 = vor.u32 %v373, %v369
      %v375 = vrot.slane %v374, 4
      %v377 = vshll.u32 %v189, 16
      %v379 = vrot.slane %v377, 5
      %v380 = vsel %vm236, %v375, %v379
      %v382 = vshrl.u32 %v190, 16
      %v384 = vrot.slane %v382, 4
      %v385 = vshll.u32 %v190, 16
      %v387 = vrot.slane %v385, 5
      %v388 = vor.u32 %v384, %v387
      %v389 = vrot.slane %v388, 4
      %v391 = vshll.u32 %v191, 16
      %v393 = vrot.slane %v391, 5
      %v394 = vsel %vm236, %v389, %v393
      %v395 = vshrl.u32 %v191, 16
      %v397 = vrot.slane %v395, 4
      %v398 = vor.u32 %v397, %v393
      %v399 = vrot.slane %v398, 4
      %v401 = vshll.u32 %v192, 16
      %v403 = vrot.slane %v401, 5
      %v404 = vsel %vm236, %v399, %v403
      %v406 = vshrl.u32 %v193, 16
      %v408 = vrot.slane %v406, 4
      %v409 = vshll.u32 %v193, 16
      %v411 = vrot.slane %v409, 5
      %v412 = vor.u32 %v408, %v411
      %v413 = vrot.slane %v412, 4
      %v415 = vshll.u32 %v194, 16
      %v417 = vrot.slane %v415, 5
      %v418 = vsel %vm236, %v413, %v417
      %v419 = vshrl.u32 %v194, 16
      %v421 = vrot.slane %v419, 4
      %v422 = vor.u32 %v421, %v417
      %v423 = vrot.slane %v422, 4
      %v425 = vshll.u32 %v195, 16
      %v427 = vrot.slane %v425, 5
      %v428 = vsel %vm236, %v423, %v427
      %v430 = vshrl.u32 %v196, 16
      %v432 = vrot.slane %v430, 4
      %v433 = vshll.u32 %v196, 16
      %v435 = vrot.slane %v433, 5
      %v436 = vor.u32 %v432, %v435
      %v437 = vrot.slane %v436, 4
      %v439 = vshll.u32 %v197, 16
      %v441 = vrot.slane %v439, 5
      %v442 = vsel %vm236, %v437, %v441
      %v443 = vshrl.u32 %v197, 16
      %v445 = vrot.slane %v443, 4
      %v446 = vor.u32 %v445, %v441
      %v447 = vrot.slane %v446, 4
      %v449 = vshll.u32 %v198, 16
      %v451 = vrot.slane %v449, 5
      %v452 = vsel %vm236, %v447, %v451
      %v454 = vshrl.u32 %v199, 16
      %v456 = vrot.slane %v454, 4
      %v457 = vshll.u32 %v199, 16
      %v459 = vrot.slane %v457, 5
      %v460 = vor.u32 %v456, %v459
      %v461 = vrot.slane %v460, 4
      %v463 = vshll.u32 %v200, 16
      %v465 = vrot.slane %v463, 5
      %v466 = vsel %vm236, %v461, %v465
      %v467 = vshrl.u32 %v200, 16
      %v469 = vrot.slane %v467, 4
      %v470 = vor.u32 %v469, %v465
      %v471 = vrot.slane %v470, 4
      %v473 = vshll.u32 %v201, 16
      %v475 = vrot.slane %v473, 5
      %v476 = vsel %vm236, %v471, %v475
      %v478 = vshrl.u32 %v202, 16
      %v480 = vrot.slane %v478, 4
      %v481 = vshll.u32 %v202, 16
      %v483 = vrot.slane %v481, 5
      %v484 = vor.u32 %v480, %v483
      %v485 = vrot.slane %v484, 4
      %v487 = vshll.u32 %v203, 16
      %v489 = vrot.slane %v487, 5
      %v490 = vsel %vm236, %v485, %v489
      %v491 = vshrl.u32 %v203, 16
      %v493 = vrot.slane %v491, 4
      %v494 = vor.u32 %v493, %v489
      %v495 = vrot.slane %v494, 4
      %v497 = vshll.u32 %v204, 16
      %v499 = vrot.slane %v497, 5
      %v500 = vsel %vm236, %v495, %v499
      %v502 = vshrl.u32 %v205, 16
      %v504 = vrot.slane %v502, 4
      %v505 = vshll.u32 %v205, 16
      %v507 = vrot.slane %v505, 5
      %v508 = vor.u32 %v504, %v507
      %v509 = vrot.slane %v508, 4
      %v511 = vshll.u32 %v206, 16
      %v513 = vrot.slane %v511, 5
      %v514 = vsel %vm236, %v509, %v513
      %v515 = vshrl.u32 %v206, 16
      %v517 = vrot.slane %v515, 4
      %v518 = vor.u32 %v517, %v513
      %v519 = vrot.slane %v518, 4
      %v521 = vshll.u32 %v207, 16
      %v523 = vrot.slane %v521, 5
      %v524 = vsel %vm236, %v519, %v523
      %v526 = vshrl.u32 %v208, 16
      %v528 = vrot.slane %v526, 4
      %v529 = vshll.u32 %v208, 16
      %v531 = vrot.slane %v529, 5
      %v532 = vor.u32 %v528, %v531
      %v533 = vrot.slane %v532, 4
      %v535 = vshll.u32 %v209, 16
      %v537 = vrot.slane %v535, 5
      %v538 = vsel %vm236, %v533, %v537
      %v539 = vshrl.u32 %v209, 16
      %v541 = vrot.slane %v539, 4
      %v542 = vor.u32 %v541, %v537
      %v543 = vrot.slane %v542, 4
      %v545 = vshll.u32 %v210, 16
      %v547 = vrot.slane %v545, 5
      %v548 = vsel %vm236, %v543, %v547
      %v550 = vshrl.u32 %v211, 16
      %v552 = vrot.slane %v550, 4
      %v553 = vshll.u32 %v211, 16
      %v555 = vrot.slane %v553, 5
      %v556 = vor.u32 %v552, %v555
      %v557 = vrot.slane %v556, 4
      %v559 = vshll.u32 %v212, 16
      %v561 = vrot.slane %v559, 5
      %v562 = vsel %vm236, %v557, %v561
      %v563 = vshrl.u32 %v212, 16
      %v565 = vrot.slane %v563, 4
      %v566 = vor.u32 %v565, %v561
      %v567 = vrot.slane %v566, 4
      %v569 = vshll.u32 %v213, 16
      %v571 = vrot.slane %v569, 5
      %v572 = vsel %vm236, %v567, %v571
      %v574 = vshrl.u32 %v214, 16
      %v576 = vrot.slane %v574, 4
      %v577 = vshll.u32 %v214, 16
      %v579 = vrot.slane %v577, 5
      %v580 = vor.u32 %v576, %v579
      %v581 = vrot.slane %v580, 4
      %v583 = vshll.u32 %v215, 16
      %v585 = vrot.slane %v583, 5
      %v586 = vsel %vm236, %v581, %v585
      %v587 = vshrl.u32 %v215, 16
      %v589 = vrot.slane %v587, 4
      %v590 = vor.u32 %v589, %v585
      %v591 = vrot.slane %v590, 4
      %v593 = vshll.u32 %v216, 16
      %v595 = vrot.slane %v593, 5
      %v596 = vsel %vm236, %v591, %v595
      %v598 = vshrl.u32 %v217, 16
      %v600 = vrot.slane %v598, 4
      %v601 = vshll.u32 %v217, 16
      %v603 = vrot.slane %v601, 5
      %v604 = vor.u32 %v600, %v603
      %v605 = vrot.slane %v604, 4
      %v607 = vshll.u32 %v218, 16
      %v609 = vrot.slane %v607, 5
      %v610 = vsel %vm236, %v605, %v609
      %v611 = vshrl.u32 %v218, 16
      %v613 = vrot.slane %v611, 4
      %v614 = vor.u32 %v613, %v609
      %v615 = vrot.slane %v614, 4
      %v617 = vshll.u32 %v219, 16
      %v619 = vrot.slane %v617, 5
      %v620 = vsel %vm236, %v615, %v619
      %s621 = scalar_lea.vmem %s1, 32
      %v622 = vld [vmem:[%s621] sm:$0xf]
      %v623 = vld [vmem:[%s621 + $0x4] sm:$0xf]
      %v624 = vld [vmem:[%s621 + $0x8] sm:$0xf]
      %v625 = vld [vmem:[%s621 + $0xc] sm:$0xf]
      %v626 = vld [vmem:[%s621 + $0x10] sm:$0xf]
      %v627 = vld [vmem:[%s621 + $0x14] sm:$0xf]
      %v628 = vld [vmem:[%s621 + $0x18] sm:$0xf]
      %v629 = vld [vmem:[%s621 + $0x1c] sm:$0xf]
      %v630 = vunpack.c.l.b16 %v250
      %v631 = vunpack.c.l.b16 %v260
      %v632 = vunpack.c.l.b16 %v274
      %v633 = vunpack.c.l.b16 %v284
      %v634 = vunpack.c.l.b16 %v298
      %v635 = vunpack.c.l.b16 %v308
      %v636 = vunpack.c.l.b16 %v322
      %v637 = vunpack.c.l.b16 %v332
      %v638 = vunpack.c.l.b16 %v346
      %v639 = vunpack.c.l.b16 %v356
      %v640 = vunpack.c.l.b16 %v370
      %v641 = vunpack.c.l.b16 %v380
      %v642 = vunpack.c.l.b16 %v394
      %v643 = vunpack.c.l.b16 %v404
      %v644 = vunpack.c.l.b16 %v418
      %v645 = vunpack.c.l.b16 %v428
      %v646 = vunpack.c.l.b16 %v442
      %v647 = vunpack.c.l.b16 %v452
      %v648 = vunpack.c.l.b16 %v466
      %v649 = vunpack.c.l.b16 %v476
      %v650 = vunpack.c.l.b16 %v490
      %v651 = vunpack.c.l.b16 %v500
      %v652 = vunpack.c.l.b16 %v514
      %v653 = vunpack.c.l.b16 %v524
      %v654 = vunpack.c.l.b16 %v538
      %v655 = vunpack.c.l.b16 %v548
      %v656 = vunpack.c.l.b16 %v562
      %v657 = vunpack.c.l.b16 %v572
      %v658 = vunpack.c.l.b16 %v586
      %v659 = vunpack.c.l.b16 %v596
      %v660 = vunpack.c.l.b16 %v610
      %v661 = vunpack.c.l.b16 %v620
      %v662 = vpack.c.b16 %v631, %v630
      %v663 = vpack.c.b16 %v633, %v632
      %v664 = vpack.c.b16 %v635, %v634
      %v665 = vpack.c.b16 %v637, %v636
      %v666 = vpack.c.b16 %v639, %v638
      %v667 = vpack.c.b16 %v641, %v640
      %v668 = vpack.c.b16 %v643, %v642
      %v669 = vpack.c.b16 %v645, %v644
      %v670 = vpack.c.b16 %v647, %v646
      %v671 = vpack.c.b16 %v649, %v648
      %v672 = vpack.c.b16 %v651, %v650
      %v673 = vpack.c.b16 %v653, %v652
      %v674 = vpack.c.b16 %v655, %v654
      %v675 = vpack.c.b16 %v657, %v656
      %v676 = vpack.c.b16 %v659, %v658
      %v677 = vpack.c.b16 %v661, %v660
      %v686 = vunpack.c.l.b16 %v622
      %v687 = vunpack.c.l.b16 %v623
      %v688 = vunpack.c.l.b16 %v624
      %v689 = vunpack.c.l.b16 %v625
      %v690 = vunpack.c.l.b16 %v626
      %v691 = vunpack.c.l.b16 %v627
      %v692 = vunpack.c.l.b16 %v628
      %v693 = vunpack.c.l.b16 %v629
      %v694 = vpack.c.b16 %v687, %v686
      %v695 = vpack.c.b16 %v689, %v688
      %v696 = vpack.c.b16 %v691, %v690
      %v697 = vpack.c.b16 %v693, %v692
      %vm702 = vcmask 523264
      %v704 = vsel %vm702, %v662, 0
      %v707 = vsel %vm702, %v663, 0
      %v710 = vsel %vm702, %v664, 0
      %v713 = vsel %vm702, %v665, 0
      %v716 = vsel %vm702, %v666, 0
      %v719 = vsel %vm702, %v667, 0
      %v722 = vsel %vm702, %v668, 0
      %v725 = vsel %vm702, %v669, 0
      %v728 = vsel %vm702, %v670, 0
      %v731 = vsel %vm702, %v671, 0
      %v734 = vsel %vm702, %v672, 0
      %v737 = vsel %vm702, %v673, 0
      %v740 = vsel %vm702, %v674, 0
      %v743 = vsel %vm702, %v675, 0
      %v746 = vsel %vm702, %v676, 0
      %v749 = vsel %vm702, %v677, 0
      %751 = vmatpush.bf16.msra.mxu0 0
      %752 = vmatpush.bf16.msra.mxu0 0
      %753 = vmatpush.bf16.msra.mxu0 0
      %754 = vmatpush.bf16.msra.mxu0 0
      %755 = vmatpush.bf16.msra.mxu0 %v697
      %756 = vmatpush.bf16.msra.mxu0 %v696
      %757 = vmatpush.bf16.msra.mxu0 %v695
      %758 = vmatpush.bf16.msra.mxu0 %v694
      %759 = vmatmul.bf16.gmra.mxu0 %v704
      %v760 = vpop.f32.mrf.mxu0
      %v761 = vadd.f32 0.0, %v760
      %v762 = vpop.f32.mrf.mxu0
      %v763 = vadd.f32 0.0, %v762
      %764 = vmatmul.bf16.gmra.mxu0 %v707
      %v765 = vpop.f32.mrf.mxu0
      %v766 = vadd.f32 0.0, %v765
      %v767 = vpop.f32.mrf.mxu0
      %v768 = vadd.f32 0.0, %v767
      %769 = vmatmul.bf16.gmra.mxu0 %v710
      %v770 = vpop.f32.mrf.mxu0
      %v771 = vadd.f32 0.0, %v770
      %v772 = vpop.f32.mrf.mxu0
      %v773 = vadd.f32 0.0, %v772
      %774 = vmatmul.bf16.gmra.mxu0 %v713
      %v775 = vpop.f32.mrf.mxu0
      %v776 = vadd.f32 0.0, %v775
      %v777 = vpop.f32.mrf.mxu0
      %v778 = vadd.f32 0.0, %v777
      %779 = vmatmul.bf16.gmra.mxu0 %v716
      %v780 = vpop.f32.mrf.mxu0
      %v781 = vadd.f32 0.0, %v780
      %v782 = vpop.f32.mrf.mxu0
      %v783 = vadd.f32 0.0, %v782
      %784 = vmatmul.bf16.gmra.mxu0 %v719
      %v785 = vpop.f32.mrf.mxu0
      %v786 = vadd.f32 0.0, %v785
      %v787 = vpop.f32.mrf.mxu0
      %v788 = vadd.f32 0.0, %v787
      %789 = vmatmul.bf16.gmra.mxu0 %v722
      %v790 = vpop.f32.mrf.mxu0
      %v791 = vadd.f32 0.0, %v790
      %v792 = vpop.f32.mrf.mxu0
      %v793 = vadd.f32 0.0, %v792
      %794 = vmatmul.bf16.gmra.mxu0 %v725
      %v795 = vpop.f32.mrf.mxu0
      %v796 = vadd.f32 0.0, %v795
      %v797 = vpop.f32.mrf.mxu0
      %v798 = vadd.f32 0.0, %v797
      %799 = vmatmul.bf16.gmra.mxu0 %v728
      %v800 = vpop.f32.mrf.mxu0
      %v801 = vadd.f32 0.0, %v800
      %v802 = vpop.f32.mrf.mxu0
      %v803 = vadd.f32 0.0, %v802
      %804 = vmatmul.bf16.gmra.mxu0 %v731
      %v805 = vpop.f32.mrf.mxu0
      %v806 = vadd.f32 0.0, %v805
      %v807 = vpop.f32.mrf.mxu0
      %v808 = vadd.f32 0.0, %v807
      %809 = vmatmul.bf16.gmra.mxu0 %v734
      %v810 = vpop.f32.mrf.mxu0
      %v811 = vadd.f32 0.0, %v810
      %v812 = vpop.f32.mrf.mxu0
      %v813 = vadd.f32 0.0, %v812
      %814 = vmatmul.bf16.gmra.mxu0 %v737
      %v815 = vpop.f32.mrf.mxu0
      %v816 = vadd.f32 0.0, %v815
      %v817 = vpop.f32.mrf.mxu0
      %v818 = vadd.f32 0.0, %v817
      %819 = vmatmul.bf16.gmra.mxu0 %v740
      %v820 = vpop.f32.mrf.mxu0
      %v821 = vadd.f32 0.0, %v820
      %v822 = vpop.f32.mrf.mxu0
      %v823 = vadd.f32 0.0, %v822
      %824 = vmatmul.bf16.gmra.mxu0 %v743
      %v825 = vpop.f32.mrf.mxu0
      %v826 = vadd.f32 0.0, %v825
      %v827 = vpop.f32.mrf.mxu0
      %v828 = vadd.f32 0.0, %v827
      %829 = vmatmul.bf16.gmra.mxu0 %v746
      %v830 = vpop.f32.mrf.mxu0
      %v831 = vadd.f32 0.0, %v830
      %v832 = vpop.f32.mrf.mxu0
      %v833 = vadd.f32 0.0, %v832
      %834 = vmatmul.bf16.gmra.mxu0 %v749
      %v835 = vpop.f32.mrf.mxu0
      %v836 = vadd.f32 0.0, %v835
      %v837 = vpop.f32.mrf.mxu0
      %v838 = vadd.f32 0.0, %v837
      %839 = vdwg.mxu0
      %v872 = vunpack.c.l.b16 %v172
      %v873 = vunpack.c.l.b16 %v173
      %v874 = vunpack.c.l.b16 %v175
      %v875 = vunpack.c.l.b16 %v176
      %v876 = vunpack.c.l.b16 %v178
      %v877 = vunpack.c.l.b16 %v179
      %v878 = vunpack.c.l.b16 %v181
      %v879 = vunpack.c.l.b16 %v182
      %v880 = vunpack.c.l.b16 %v184
      %v881 = vunpack.c.l.b16 %v185
      %v882 = vunpack.c.l.b16 %v187
      %v883 = vunpack.c.l.b16 %v188
      %v884 = vunpack.c.l.b16 %v190
      %v885 = vunpack.c.l.b16 %v191
      %v886 = vunpack.c.l.b16 %v193
      %v887 = vunpack.c.l.b16 %v194
      %v888 = vunpack.c.l.b16 %v196
      %v889 = vunpack.c.l.b16 %v197
      %v890 = vunpack.c.l.b16 %v199
      %v891 = vunpack.c.l.b16 %v200
      %v892 = vunpack.c.l.b16 %v202
      %v893 = vunpack.c.l.b16 %v203
      %v894 = vunpack.c.l.b16 %v205
      %v895 = vunpack.c.l.b16 %v206
      %v896 = vunpack.c.l.b16 %v208
      %v897 = vunpack.c.l.b16 %v209
      %v898 = vunpack.c.l.b16 %v211
      %v899 = vunpack.c.l.b16 %v212
      %v900 = vunpack.c.l.b16 %v214
      %v901 = vunpack.c.l.b16 %v215
      %v902 = vunpack.c.l.b16 %v217
      %v903 = vunpack.c.l.b16 %v218
      %v904 = vpack.c.b16 %v873, %v872
      %v905 = vpack.c.b16 %v875, %v874
      %v906 = vpack.c.b16 %v877, %v876
      %v907 = vpack.c.b16 %v879, %v878
      %v908 = vpack.c.b16 %v881, %v880
      %v909 = vpack.c.b16 %v883, %v882
      %v910 = vpack.c.b16 %v885, %v884
      %v911 = vpack.c.b16 %v887, %v886
      %v912 = vpack.c.b16 %v889, %v888
      %v913 = vpack.c.b16 %v891, %v890
      %v914 = vpack.c.b16 %v893, %v892
      %v915 = vpack.c.b16 %v895, %v894
      %v916 = vpack.c.b16 %v897, %v896
      %v917 = vpack.c.b16 %v899, %v898
      %v918 = vpack.c.b16 %v901, %v900
      %v919 = vpack.c.b16 %v903, %v902
      %v928 = vunpack.c.l.b16 %v226
      %v929 = vunpack.c.l.b16 %v227
      %v930 = vunpack.c.l.b16 %v228
      %v931 = vunpack.c.l.b16 %v229
      %v932 = vunpack.c.l.b16 %v230
      %v933 = vunpack.c.l.b16 %v231
      %v934 = vunpack.c.l.b16 %v232
      %v935 = vunpack.c.l.b16 %v233
      %v936 = vpack.c.b16 %v929, %v928
      %v937 = vpack.c.b16 %v931, %v930
      %v938 = vpack.c.b16 %v933, %v932
      %v939 = vpack.c.b16 %v935, %v934
      %v945 = vsel %vm702, %v904, 0
      %v948 = vsel %vm702, %v905, 0
      %v951 = vsel %vm702, %v906, 0
      %v954 = vsel %vm702, %v907, 0
      %v957 = vsel %vm702, %v908, 0
      %v960 = vsel %vm702, %v909, 0
      %v963 = vsel %vm702, %v910, 0
      %v966 = vsel %vm702, %v911, 0
      %v969 = vsel %vm702, %v912, 0
      %v972 = vsel %vm702, %v913, 0
      %v975 = vsel %vm702, %v914, 0
      %v978 = vsel %vm702, %v915, 0
      %v981 = vsel %vm702, %v916, 0
      %v984 = vsel %vm702, %v917, 0
      %v987 = vsel %vm702, %v918, 0
      %v990 = vsel %vm702, %v919, 0
      %992 = vmatpush.bf16.msra.mxu0 0
      %993 = vmatpush.bf16.msra.mxu0 0
      %994 = vmatpush.bf16.msra.mxu0 0
      %995 = vmatpush.bf16.msra.mxu0 0
      %996 = vmatpush.bf16.msra.mxu0 %v939
      %997 = vmatpush.bf16.msra.mxu0 %v938
      %998 = vmatpush.bf16.msra.mxu0 %v937
      %999 = vmatpush.bf16.msra.mxu0 %v936
      %1000 = vmatmul.bf16.gmra.mxu0 %v945
      %v1001 = vpop.f32.mrf.mxu0
      %v1002 = vadd.f32 %v761, %v1001
      %v1003 = vpop.f32.mrf.mxu0
      %v1004 = vadd.f32 %v763, %v1003
      %1005 = vmatmul.bf16.gmra.mxu0 %v948
      %v1006 = vpop.f32.mrf.mxu0
      %v1007 = vadd.f32 %v766, %v1006
      %v1008 = vpop.f32.mrf.mxu0
      %v1009 = vadd.f32 %v768, %v1008
      %1010 = vmatmul.bf16.gmra.mxu0 %v951
      %v1011 = vpop.f32.mrf.mxu0
      %v1012 = vadd.f32 %v771, %v1011
      %v1013 = vpop.f32.mrf.mxu0
      %v1014 = vadd.f32 %v773, %v1013
      %1015 = vmatmul.bf16.gmra.mxu0 %v954
      %v1016 = vpop.f32.mrf.mxu0
      %v1017 = vadd.f32 %v776, %v1016
      %v1018 = vpop.f32.mrf.mxu0
      %v1019 = vadd.f32 %v778, %v1018
      %1020 = vmatmul.bf16.gmra.mxu0 %v957
      %v1021 = vpop.f32.mrf.mxu0
      %v1022 = vadd.f32 %v781, %v1021
      %v1023 = vpop.f32.mrf.mxu0
      %v1024 = vadd.f32 %v783, %v1023
      %1025 = vmatmul.bf16.gmra.mxu0 %v960
      %v1026 = vpop.f32.mrf.mxu0
      %v1027 = vadd.f32 %v786, %v1026
      %v1028 = vpop.f32.mrf.mxu0
      %v1029 = vadd.f32 %v788, %v1028
      %1030 = vmatmul.bf16.gmra.mxu0 %v963
      %v1031 = vpop.f32.mrf.mxu0
      %v1032 = vadd.f32 %v791, %v1031
      %v1033 = vpop.f32.mrf.mxu0
      %v1034 = vadd.f32 %v793, %v1033
      %1035 = vmatmul.bf16.gmra.mxu0 %v966
      %v1036 = vpop.f32.mrf.mxu0
      %v1037 = vadd.f32 %v796, %v1036
      %v1038 = vpop.f32.mrf.mxu0
      %v1039 = vadd.f32 %v798, %v1038
      %1040 = vmatmul.bf16.gmra.mxu0 %v969
      %v1041 = vpop.f32.mrf.mxu0
      %v1042 = vadd.f32 %v801, %v1041
      %v1043 = vpop.f32.mrf.mxu0
      %v1044 = vadd.f32 %v803, %v1043
      %1045 = vmatmul.bf16.gmra.mxu0 %v972
      %v1046 = vpop.f32.mrf.mxu0
      %v1047 = vadd.f32 %v806, %v1046
      %v1048 = vpop.f32.mrf.mxu0
      %v1049 = vadd.f32 %v808, %v1048
      %1050 = vmatmul.bf16.gmra.mxu0 %v975
      %v1051 = vpop.f32.mrf.mxu0
      %v1052 = vadd.f32 %v811, %v1051
      %v1053 = vpop.f32.mrf.mxu0
      %v1054 = vadd.f32 %v813, %v1053
      %1055 = vmatmul.bf16.gmra.mxu0 %v978
      %v1056 = vpop.f32.mrf.mxu0
      %v1057 = vadd.f32 %v816, %v1056
      %v1058 = vpop.f32.mrf.mxu0
      %v1059 = vadd.f32 %v818, %v1058
      %1060 = vmatmul.bf16.gmra.mxu0 %v981
      %v1061 = vpop.f32.mrf.mxu0
      %v1062 = vadd.f32 %v821, %v1061
      %v1063 = vpop.f32.mrf.mxu0
      %v1064 = vadd.f32 %v823, %v1063
      %1065 = vmatmul.bf16.gmra.mxu0 %v984
      %v1066 = vpop.f32.mrf.mxu0
      %v1067 = vadd.f32 %v826, %v1066
      %v1068 = vpop.f32.mrf.mxu0
      %v1069 = vadd.f32 %v828, %v1068
      %1070 = vmatmul.bf16.gmra.mxu0 %v987
      %v1071 = vpop.f32.mrf.mxu0
      %v1072 = vadd.f32 %v831, %v1071
      %v1073 = vpop.f32.mrf.mxu0
      %v1074 = vadd.f32 %v833, %v1073
      %1075 = vmatmul.bf16.gmra.mxu0 %v990
      %v1076 = vpop.f32.mrf.mxu0
      %v1077 = vadd.f32 %v836, %v1076
      %v1078 = vpop.f32.mrf.mxu0
      %v1079 = vadd.f32 %v838, %v1078
      %1080 = vdwg.mxu0
      %vm1097 = vcmask 1042432
      %vm1098 = vcmask 1046532
      %vm1099 = vmor %vm1097, %vm1098
      %v1100 = vrot.slane %v172, 5
      %v1101 = vrot.slane %v1100, 4
      %v1102 = vrot.slane %v173, 5
      %v1103 = vsel %vm1099, %v1101, %v1102
      %v1104 = vrot.slane %v1102, 4
      %v1105 = vrot.slane %v174, 5
      %v1106 = vsel %vm1099, %v1104, %v1105
      %v1107 = vrot.slane %v175, 5
      %v1108 = vrot.slane %v1107, 4
      %v1109 = vrot.slane %v176, 5
      %v1110 = vsel %vm1099, %v1108, %v1109
      %v1111 = vrot.slane %v1109, 4
      %v1112 = vrot.slane %v177, 5
      %v1113 = vsel %vm1099, %v1111, %v1112
      %v1114 = vrot.slane %v178, 5
      %v1115 = vrot.slane %v1114, 4
      %v1116 = vrot.slane %v179, 5
      %v1117 = vsel %vm1099, %v1115, %v1116
      %v1118 = vrot.slane %v1116, 4
      %v1119 = vrot.slane %v180, 5
      %v1120 = vsel %vm1099, %v1118, %v1119
      %v1121 = vrot.slane %v181, 5
      %v1122 = vrot.slane %v1121, 4
      %v1123 = vrot.slane %v182, 5
      %v1124 = vsel %vm1099, %v1122, %v1123
      %v1125 = vrot.slane %v1123, 4
      %v1126 = vrot.slane %v183, 5
      %v1127 = vsel %vm1099, %v1125, %v1126
      %v1128 = vrot.slane %v184, 5
      %v1129 = vrot.slane %v1128, 4
      %v1130 = vrot.slane %v185, 5
      %v1131 = vsel %vm1099, %v1129, %v1130
      %v1132 = vrot.slane %v1130, 4
      %v1133 = vrot.slane %v186, 5
      %v1134 = vsel %vm1099, %v1132, %v1133
      %v1135 = vrot.slane %v187, 5
      %v1136 = vrot.slane %v1135, 4
      %v1137 = vrot.slane %v188, 5
      %v1138 = vsel %vm1099, %v1136, %v1137
      %v1139 = vrot.slane %v1137, 4
      %v1140 = vrot.slane %v189, 5
      %v1141 = vsel %vm1099, %v1139, %v1140
      %v1142 = vrot.slane %v190, 5
      %v1143 = vrot.slane %v1142, 4
      %v1144 = vrot.slane %v191, 5
      %v1145 = vsel %vm1099, %v1143, %v1144
      %v1146 = vrot.slane %v1144, 4
      %v1147 = vrot.slane %v192, 5
      %v1148 = vsel %vm1099, %v1146, %v1147
      %v1149 = vrot.slane %v193, 5
      %v1150 = vrot.slane %v1149, 4
      %v1151 = vrot.slane %v194, 5
      %v1152 = vsel %vm1099, %v1150, %v1151
      %v1153 = vrot.slane %v1151, 4
      %v1154 = vrot.slane %v195, 5
      %v1155 = vsel %vm1099, %v1153, %v1154
      %v1156 = vrot.slane %v196, 5
      %v1157 = vrot.slane %v1156, 4
      %v1158 = vrot.slane %v197, 5
      %v1159 = vsel %vm1099, %v1157, %v1158
      %v1160 = vrot.slane %v1158, 4
      %v1161 = vrot.slane %v198, 5
      %v1162 = vsel %vm1099, %v1160, %v1161
      %v1163 = vrot.slane %v199, 5
      %v1164 = vrot.slane %v1163, 4
      %v1165 = vrot.slane %v200, 5
      %v1166 = vsel %vm1099, %v1164, %v1165
      %v1167 = vrot.slane %v1165, 4
      %v1168 = vrot.slane %v201, 5
      %v1169 = vsel %vm1099, %v1167, %v1168
      %v1170 = vrot.slane %v202, 5
      %v1171 = vrot.slane %v1170, 4
      %v1172 = vrot.slane %v203, 5
      %v1173 = vsel %vm1099, %v1171, %v1172
      %v1174 = vrot.slane %v1172, 4
      %v1175 = vrot.slane %v204, 5
      %v1176 = vsel %vm1099, %v1174, %v1175
      %v1177 = vrot.slane %v205, 5
      %v1178 = vrot.slane %v1177, 4
      %v1179 = vrot.slane %v206, 5
      %v1180 = vsel %vm1099, %v1178, %v1179
      %v1181 = vrot.slane %v1179, 4
      %v1182 = vrot.slane %v207, 5
      %v1183 = vsel %vm1099, %v1181, %v1182
      %v1184 = vrot.slane %v208, 5
      %v1185 = vrot.slane %v1184, 4
      %v1186 = vrot.slane %v209, 5
      %v1187 = vsel %vm1099, %v1185, %v1186
      %v1188 = vrot.slane %v1186, 4
      %v1189 = vrot.slane %v210, 5
      %v1190 = vsel %vm1099, %v1188, %v1189
      %v1191 = vrot.slane %v211, 5
      %v1192 = vrot.slane %v1191, 4
      %v1193 = vrot.slane %v212, 5
      %v1194 = vsel %vm1099, %v1192, %v1193
      %v1195 = vrot.slane %v1193, 4
      %v1196 = vrot.slane %v213, 5
      %v1197 = vsel %vm1099, %v1195, %v1196
      %v1198 = vrot.slane %v214, 5
      %v1199 = vrot.slane %v1198, 4
      %v1200 = vrot.slane %v215, 5
      %v1201 = vsel %vm1099, %v1199, %v1200
      %v1202 = vrot.slane %v1200, 4
      %v1203 = vrot.slane %v216, 5
      %v1204 = vsel %vm1099, %v1202, %v1203
      %v1205 = vrot.slane %v217, 5
      %v1206 = vrot.slane %v1205, 4
      %v1207 = vrot.slane %v218, 5
      %v1208 = vsel %vm1099, %v1206, %v1207
      %v1209 = vrot.slane %v1207, 4
      %v1210 = vrot.slane %v219, 5
      %v1211 = vsel %vm1099, %v1209, %v1210
      %s1212 = scalar_lea.vmem %s1, 64
      %v1213 = vld [vmem:[%s1212] sm:$0xf]
      %v1214 = vld [vmem:[%s1212 + $0x4] sm:$0xf]
      %v1215 = vld [vmem:[%s1212 + $0x8] sm:$0xf]
      %v1216 = vld [vmem:[%s1212 + $0xc] sm:$0xf]
      %v1217 = vld [vmem:[%s1212 + $0x10] sm:$0xf]
      %v1218 = vld [vmem:[%s1212 + $0x14] sm:$0xf]
      %v1219 = vld [vmem:[%s1212 + $0x18] sm:$0xf]
      %v1220 = vld [vmem:[%s1212 + $0x1c] sm:$0xf]
      %v1221 = vunpack.c.l.b16 %v1103
      %v1222 = vunpack.c.l.b16 %v1106
      %v1223 = vunpack.c.l.b16 %v1110
      %v1224 = vunpack.c.l.b16 %v1113
      %v1225 = vunpack.c.l.b16 %v1117
      %v1226 = vunpack.c.l.b16 %v1120
      %v1227 = vunpack.c.l.b16 %v1124
      %v1228 = vunpack.c.l.b16 %v1127
      %v1229 = vunpack.c.l.b16 %v1131
      %v1230 = vunpack.c.l.b16 %v1134
      %v1231 = vunpack.c.l.b16 %v1138
      %v1232 = vunpack.c.l.b16 %v1141
      %v1233 = vunpack.c.l.b16 %v1145
      %v1234 = vunpack.c.l.b16 %v1148
      %v1235 = vunpack.c.l.b16 %v1152
      %v1236 = vunpack.c.l.b16 %v1155
      %v1237 = vunpack.c.l.b16 %v1159
      %v1238 = vunpack.c.l.b16 %v1162
      %v1239 = vunpack.c.l.b16 %v1166
      %v1240 = vunpack.c.l.b16 %v1169
      %v1241 = vunpack.c.l.b16 %v1173
      %v1242 = vunpack.c.l.b16 %v1176
      %v1243 = vunpack.c.l.b16 %v1180
      %v1244 = vunpack.c.l.b16 %v1183
      %v1245 = vunpack.c.l.b16 %v1187
      %v1246 = vunpack.c.l.b16 %v1190
      %v1247 = vunpack.c.l.b16 %v1194
      %v1248 = vunpack.c.l.b16 %v1197
      %v1249 = vunpack.c.l.b16 %v1201
      %v1250 = vunpack.c.l.b16 %v1204
      %v1251 = vunpack.c.l.b16 %v1208
      %v1252 = vunpack.c.l.b16 %v1211
      %v1253 = vpack.c.b16 %v1222, %v1221
      %v1254 = vpack.c.b16 %v1224, %v1223
      %v1255 = vpack.c.b16 %v1226, %v1225
      %v1256 = vpack.c.b16 %v1228, %v1227
      %v1257 = vpack.c.b16 %v1230, %v1229
      %v1258 = vpack.c.b16 %v1232, %v1231
      %v1259 = vpack.c.b16 %v1234, %v1233
      %v1260 = vpack.c.b16 %v1236, %v1235
      %v1261 = vpack.c.b16 %v1238, %v1237
      %v1262 = vpack.c.b16 %v1240, %v1239
      %v1263 = vpack.c.b16 %v1242, %v1241
      %v1264 = vpack.c.b16 %v1244, %v1243
      %v1265 = vpack.c.b16 %v1246, %v1245
      %v1266 = vpack.c.b16 %v1248, %v1247
      %v1267 = vpack.c.b16 %v1250, %v1249
      %v1268 = vpack.c.b16 %v1252, %v1251
      %v1277 = vunpack.c.l.b16 %v1213
      %v1278 = vunpack.c.l.b16 %v1214
      %v1279 = vunpack.c.l.b16 %v1215
      %v1280 = vunpack.c.l.b16 %v1216
      %v1281 = vunpack.c.l.b16 %v1217
      %v1282 = vunpack.c.l.b16 %v1218
      %v1283 = vunpack.c.l.b16 %v1219
      %v1284 = vunpack.c.l.b16 %v1220
      %v1285 = vpack.c.b16 %v1278, %v1277
      %v1286 = vpack.c.b16 %v1280, %v1279
      %v1287 = vpack.c.b16 %v1282, %v1281
      %v1288 = vpack.c.b16 %v1284, %v1283
      %v1294 = vsel %vm702, %v1253, 0
      %v1297 = vsel %vm702, %v1254, 0
      %v1300 = vsel %vm702, %v1255, 0
      %v1303 = vsel %vm702, %v1256, 0
      %v1306 = vsel %vm702, %v1257, 0
      %v1309 = vsel %vm702, %v1258, 0
      %v1312 = vsel %vm702, %v1259, 0
      %v1315 = vsel %vm702, %v1260, 0
      %v1318 = vsel %vm702, %v1261, 0
      %v1321 = vsel %vm702, %v1262, 0
      %v1324 = vsel %vm702, %v1263, 0
      %v1327 = vsel %vm702, %v1264, 0
      %v1330 = vsel %vm702, %v1265, 0
      %v1333 = vsel %vm702, %v1266, 0
      %v1336 = vsel %vm702, %v1267, 0
      %v1339 = vsel %vm702, %v1268, 0
      %1341 = vmatpush.bf16.msra.mxu0 0
      %1342 = vmatpush.bf16.msra.mxu0 0
      %1343 = vmatpush.bf16.msra.mxu0 0
      %1344 = vmatpush.bf16.msra.mxu0 0
      %1345 = vmatpush.bf16.msra.mxu0 %v1288
      %1346 = vmatpush.bf16.msra.mxu0 %v1287
      %1347 = vmatpush.bf16.msra.mxu0 %v1286
      %1348 = vmatpush.bf16.msra.mxu0 %v1285
      %1349 = vmatmul.bf16.gmra.mxu0 %v1294
      %v1350 = vpop.f32.mrf.mxu0
      %v1351 = vadd.f32 0.0, %v1350
      %v1352 = vpop.f32.mrf.mxu0
      %v1353 = vadd.f32 0.0, %v1352
      %1354 = vmatmul.bf16.gmra.mxu0 %v1297
      %v1355 = vpop.f32.mrf.mxu0
      %v1356 = vadd.f32 0.0, %v1355
      %v1357 = vpop.f32.mrf.mxu0
      %v1358 = vadd.f32 0.0, %v1357
      %1359 = vmatmul.bf16.gmra.mxu0 %v1300
      %v1360 = vpop.f32.mrf.mxu0
      %v1361 = vadd.f32 0.0, %v1360
      %v1362 = vpop.f32.mrf.mxu0
      %v1363 = vadd.f32 0.0, %v1362
      %1364 = vmatmul.bf16.gmra.mxu0 %v1303
      %v1365 = vpop.f32.mrf.mxu0
      %v1366 = vadd.f32 0.0, %v1365
      %v1367 = vpop.f32.mrf.mxu0
      %v1368 = vadd.f32 0.0, %v1367
      %1369 = vmatmul.bf16.gmra.mxu0 %v1306
      %v1370 = vpop.f32.mrf.mxu0
      %v1371 = vadd.f32 0.0, %v1370
      %v1372 = vpop.f32.mrf.mxu0
      %v1373 = vadd.f32 0.0, %v1372
      %1374 = vmatmul.bf16.gmra.mxu0 %v1309
      %v1375 = vpop.f32.mrf.mxu0
      %v1376 = vadd.f32 0.0, %v1375
      %v1377 = vpop.f32.mrf.mxu0
      %v1378 = vadd.f32 0.0, %v1377
      %1379 = vmatmul.bf16.gmra.mxu0 %v1312
      %v1380 = vpop.f32.mrf.mxu0
      %v1381 = vadd.f32 0.0, %v1380
      %v1382 = vpop.f32.mrf.mxu0
      %v1383 = vadd.f32 0.0, %v1382
      %1384 = vmatmul.bf16.gmra.mxu0 %v1315
      %v1385 = vpop.f32.mrf.mxu0
      %v1386 = vadd.f32 0.0, %v1385
      %v1387 = vpop.f32.mrf.mxu0
      %v1388 = vadd.f32 0.0, %v1387
      %1389 = vmatmul.bf16.gmra.mxu0 %v1318
      %v1390 = vpop.f32.mrf.mxu0
      %v1391 = vadd.f32 0.0, %v1390
      %v1392 = vpop.f32.mrf.mxu0
      %v1393 = vadd.f32 0.0, %v1392
      %1394 = vmatmul.bf16.gmra.mxu0 %v1321
      %v1395 = vpop.f32.mrf.mxu0
      %v1396 = vadd.f32 0.0, %v1395
      %v1397 = vpop.f32.mrf.mxu0
      %v1398 = vadd.f32 0.0, %v1397
      %1399 = vmatmul.bf16.gmra.mxu0 %v1324
      %v1400 = vpop.f32.mrf.mxu0
      %v1401 = vadd.f32 0.0, %v1400
      %v1402 = vpop.f32.mrf.mxu0
      %v1403 = vadd.f32 0.0, %v1402
      %1404 = vmatmul.bf16.gmra.mxu0 %v1327
      %v1405 = vpop.f32.mrf.mxu0
      %v1406 = vadd.f32 0.0, %v1405
      %v1407 = vpop.f32.mrf.mxu0
      %v1408 = vadd.f32 0.0, %v1407
      %1409 = vmatmul.bf16.gmra.mxu0 %v1330
      %v1410 = vpop.f32.mrf.mxu0
      %v1411 = vadd.f32 0.0, %v1410
      %v1412 = vpop.f32.mrf.mxu0
      %v1413 = vadd.f32 0.0, %v1412
      %1414 = vmatmul.bf16.gmra.mxu0 %v1333
      %v1415 = vpop.f32.mrf.mxu0
      %v1416 = vadd.f32 0.0, %v1415
      %v1417 = vpop.f32.mrf.mxu0
      %v1418 = vadd.f32 0.0, %v1417
      %1419 = vmatmul.bf16.gmra.mxu0 %v1336
      %v1420 = vpop.f32.mrf.mxu0
      %v1421 = vadd.f32 0.0, %v1420
      %v1422 = vpop.f32.mrf.mxu0
      %v1423 = vadd.f32 0.0, %v1422
      %1424 = vmatmul.bf16.gmra.mxu0 %v1339
      %v1425 = vpop.f32.mrf.mxu0
      %v1426 = vadd.f32 0.0, %v1425
      %v1427 = vpop.f32.mrf.mxu0
      %v1428 = vadd.f32 0.0, %v1427
      %1429 = vdwg.mxu0
      %v1430 = vadd.f32 %v1002, %v1351
      %v1431 = vadd.f32 %v1004, %v1353
      %v1432 = vadd.f32 %v1007, %v1356
      %v1433 = vadd.f32 %v1009, %v1358
      %v1434 = vadd.f32 %v1012, %v1361
      %v1435 = vadd.f32 %v1014, %v1363
      %v1436 = vadd.f32 %v1017, %v1366
      %v1437 = vadd.f32 %v1019, %v1368
      %v1438 = vadd.f32 %v1022, %v1371
      %v1439 = vadd.f32 %v1024, %v1373
      %v1440 = vadd.f32 %v1027, %v1376
      %v1441 = vadd.f32 %v1029, %v1378
      %v1442 = vadd.f32 %v1032, %v1381
      %v1443 = vadd.f32 %v1034, %v1383
      %v1444 = vadd.f32 %v1037, %v1386
      %v1445 = vadd.f32 %v1039, %v1388
      %v1446 = vadd.f32 %v1042, %v1391
      %v1447 = vadd.f32 %v1044, %v1393
      %v1448 = vadd.f32 %v1047, %v1396
      %v1449 = vadd.f32 %v1049, %v1398
      %v1450 = vadd.f32 %v1052, %v1401
      %v1451 = vadd.f32 %v1054, %v1403
      %v1452 = vadd.f32 %v1057, %v1406
      %v1453 = vadd.f32 %v1059, %v1408
      %v1454 = vadd.f32 %v1062, %v1411
      %v1455 = vadd.f32 %v1064, %v1413
      %v1456 = vadd.f32 %v1067, %v1416
      %v1457 = vadd.f32 %v1069, %v1418
      %v1458 = vadd.f32 %v1072, %v1421
      %v1459 = vadd.f32 %v1074, %v1423
      %v1460 = vadd.f32 %v1077, %v1426
      %v1461 = vadd.f32 %v1079, %v1428
      %s1462 = scalar_lea.vmem %s1, 96
      %v1463 = vld [vmem:[%s1462] sm:$0xf]
      %v1464 = vld [vmem:[%s1462 + $0x4] sm:$0xf]
      %v1465 = vld [vmem:[%s1462 + $0x8] sm:$0xf]
      %v1466 = vld [vmem:[%s1462 + $0xc] sm:$0xf]
      %v1467 = vld [vmem:[%s1462 + $0x10] sm:$0xf]
      %v1468 = vld [vmem:[%s1462 + $0x14] sm:$0xf]
      %v1469 = vld [vmem:[%s1462 + $0x18] sm:$0xf]
      %v1470 = vld [vmem:[%s1462 + $0x1c] sm:$0xf]
      %v1473 = vunpack.c.l.b16 %v220
      %v1474 = vunpack.c.l.b16 %v221
      %v1475 = vpack.c.b16 %v1474, %v1473
      %v1484 = vunpack.c.l.b16 %v1463
      %v1485 = vunpack.c.l.b16 %v1464
      %v1486 = vunpack.c.l.b16 %v1465
      %v1487 = vunpack.c.l.b16 %v1466
      %v1488 = vunpack.c.l.b16 %v1467
      %v1489 = vunpack.c.l.b16 %v1468
      %v1490 = vunpack.c.l.b16 %v1469
      %v1491 = vunpack.c.l.b16 %v1470
      %v1492 = vpack.c.b16 %v1485, %v1484
      %v1493 = vpack.c.b16 %v1487, %v1486
      %v1494 = vpack.c.b16 %v1489, %v1488
      %v1495 = vpack.c.b16 %v1491, %v1490
      %v1501 = vsel %vm702, %v1475, 0
      %1503 = vmatpush.bf16.msra.mxu0 0
      %1504 = vmatpush.bf16.msra.mxu0 0
      %1505 = vmatpush.bf16.msra.mxu0 0
      %1506 = vmatpush.bf16.msra.mxu0 0
      %1507 = vmatpush.bf16.msra.mxu0 %v1495
      %1508 = vmatpush.bf16.msra.mxu0 %v1494
      %1509 = vmatpush.bf16.msra.mxu0 %v1493
      %1510 = vmatpush.bf16.msra.mxu0 %v1492
      %1511 = vmatmul.bf16.gmra.mxu0 %v948
      %v1512 = vpop.f32.mrf.mxu0
      %v1513 = vadd.f32 0.0, %v1512
      %v1514 = vpop.f32.mrf.mxu0
      %v1515 = vadd.f32 0.0, %v1514
      %1516 = vmatmul.bf16.gmra.mxu0 %v951
      %v1517 = vpop.f32.mrf.mxu0
      %v1518 = vadd.f32 0.0, %v1517
      %v1519 = vpop.f32.mrf.mxu0
      %v1520 = vadd.f32 0.0, %v1519
      %1521 = vmatmul.bf16.gmra.mxu0 %v954
      %v1522 = vpop.f32.mrf.mxu0
      %v1523 = vadd.f32 0.0, %v1522
      %v1524 = vpop.f32.mrf.mxu0
      %v1525 = vadd.f32 0.0, %v1524
      %1526 = vmatmul.bf16.gmra.mxu0 %v957
      %v1527 = vpop.f32.mrf.mxu0
      %v1528 = vadd.f32 0.0, %v1527
      %v1529 = vpop.f32.mrf.mxu0
      %v1530 = vadd.f32 0.0, %v1529
      %1531 = vmatmul.bf16.gmra.mxu0 %v960
      %v1532 = vpop.f32.mrf.mxu0
      %v1533 = vadd.f32 0.0, %v1532
      %v1534 = vpop.f32.mrf.mxu0
      %v1535 = vadd.f32 0.0, %v1534
      %1536 = vmatmul.bf16.gmra.mxu0 %v963
      %v1537 = vpop.f32.mrf.mxu0
      %v1538 = vadd.f32 0.0, %v1537
      %v1539 = vpop.f32.mrf.mxu0
      %v1540 = vadd.f32 0.0, %v1539
      %1541 = vmatmul.bf16.gmra.mxu0 %v966
      %v1542 = vpop.f32.mrf.mxu0
      %v1543 = vadd.f32 0.0, %v1542
      %v1544 = vpop.f32.mrf.mxu0
      %v1545 = vadd.f32 0.0, %v1544
      %1546 = vmatmul.bf16.gmra.mxu0 %v969
      %v1547 = vpop.f32.mrf.mxu0
      %v1548 = vadd.f32 0.0, %v1547
      %v1549 = vpop.f32.mrf.mxu0
      %v1550 = vadd.f32 0.0, %v1549
      %1551 = vmatmul.bf16.gmra.mxu0 %v972
      %v1552 = vpop.f32.mrf.mxu0
      %v1553 = vadd.f32 0.0, %v1552
      %v1554 = vpop.f32.mrf.mxu0
      %v1555 = vadd.f32 0.0, %v1554
      %1556 = vmatmul.bf16.gmra.mxu0 %v975
      %v1557 = vpop.f32.mrf.mxu0
      %v1558 = vadd.f32 0.0, %v1557
      %v1559 = vpop.f32.mrf.mxu0
      %v1560 = vadd.f32 0.0, %v1559
      %1561 = vmatmul.bf16.gmra.mxu0 %v978
      %v1562 = vpop.f32.mrf.mxu0
      %v1563 = vadd.f32 0.0, %v1562
      %v1564 = vpop.f32.mrf.mxu0
      %v1565 = vadd.f32 0.0, %v1564
      %1566 = vmatmul.bf16.gmra.mxu0 %v981
      %v1567 = vpop.f32.mrf.mxu0
      %v1568 = vadd.f32 0.0, %v1567
      %v1569 = vpop.f32.mrf.mxu0
      %v1570 = vadd.f32 0.0, %v1569
      %1571 = vmatmul.bf16.gmra.mxu0 %v984
      %v1572 = vpop.f32.mrf.mxu0
      %v1573 = vadd.f32 0.0, %v1572
      %v1574 = vpop.f32.mrf.mxu0
      %v1575 = vadd.f32 0.0, %v1574
      %1576 = vmatmul.bf16.gmra.mxu0 %v987
      %v1577 = vpop.f32.mrf.mxu0
      %v1578 = vadd.f32 0.0, %v1577
      %v1579 = vpop.f32.mrf.mxu0
      %v1580 = vadd.f32 0.0, %v1579
      %1581 = vmatmul.bf16.gmra.mxu0 %v990
      %v1582 = vpop.f32.mrf.mxu0
      %v1583 = vadd.f32 0.0, %v1582
      %v1584 = vpop.f32.mrf.mxu0
      %v1585 = vadd.f32 0.0, %v1584
      %1586 = vmatmul.bf16.gmra.mxu0 %v1501
      %v1587 = vpop.f32.mrf.mxu0
      %v1588 = vadd.f32 0.0, %v1587
      %v1589 = vpop.f32.mrf.mxu0
      %v1590 = vadd.f32 0.0, %v1589
      %1591 = vdwg.mxu0
      %v1592 = vadd.f32 %v1430, %v1513
      %v1593 = vadd.f32 %v1431, %v1515
      %v1594 = vadd.f32 %v1432, %v1518
      %v1595 = vadd.f32 %v1433, %v1520
      %v1596 = vadd.f32 %v1434, %v1523
      %v1597 = vadd.f32 %v1435, %v1525
      %v1598 = vadd.f32 %v1436, %v1528
      %v1599 = vadd.f32 %v1437, %v1530
      %v1600 = vadd.f32 %v1438, %v1533
      %v1601 = vadd.f32 %v1439, %v1535
      %v1602 = vadd.f32 %v1440, %v1538
      %v1603 = vadd.f32 %v1441, %v1540
      %v1604 = vadd.f32 %v1442, %v1543
      %v1605 = vadd.f32 %v1443, %v1545
      %v1606 = vadd.f32 %v1444, %v1548
      %v1607 = vadd.f32 %v1445, %v1550
      %v1608 = vadd.f32 %v1446, %v1553
      %v1609 = vadd.f32 %v1447, %v1555
      %v1610 = vadd.f32 %v1448, %v1558
      %v1611 = vadd.f32 %v1449, %v1560
      %v1612 = vadd.f32 %v1450, %v1563
      %v1613 = vadd.f32 %v1451, %v1565
      %v1614 = vadd.f32 %v1452, %v1568
      %v1615 = vadd.f32 %v1453, %v1570
      %v1616 = vadd.f32 %v1454, %v1573
      %v1617 = vadd.f32 %v1455, %v1575
      %v1618 = vadd.f32 %v1456, %v1578
      %v1619 = vadd.f32 %v1457, %v1580
      %v1620 = vadd.f32 %v1458, %v1583
      %v1621 = vadd.f32 %v1459, %v1585
      %v1622 = vadd.f32 %v1460, %v1588
      %v1623 = vadd.f32 %v1461, %v1590
      %v1625 = vshrl.u32 %v220, 16
      %v1627 = vrot.slane %v1625, 4
      %v1628 = vshll.u32 %v220, 16
      %v1630 = vrot.slane %v1628, 5
      %v1631 = vor.u32 %v1627, %v1630
      %v1632 = vrot.slane %v1631, 4
      %v1634 = vshll.u32 %v221, 16
      %v1636 = vrot.slane %v1634, 5
      %v1637 = vsel %vm236, %v1632, %v1636
      %v1638 = vshrl.u32 %v221, 16
      %v1640 = vrot.slane %v1638, 4
      %v1641 = vor.u32 %v1640, %v1636
      %v1642 = vrot.slane %v1641, 4
      %v1644 = vshll.u32 %v222, 16
      %v1646 = vrot.slane %v1644, 5
      %v1647 = vsel %vm236, %v1642, %v1646
      %s1648 = scalar_lea.vmem %s1, 128
      %v1649 = vld [vmem:[%s1648] sm:$0xf]
      %v1650 = vld [vmem:[%s1648 + $0x4] sm:$0xf]
      %v1651 = vld [vmem:[%s1648 + $0x8] sm:$0xf]
      %v1652 = vld [vmem:[%s1648 + $0xc] sm:$0xf]
      %v1653 = vld [vmem:[%s1648 + $0x10] sm:$0xf]
      %v1654 = vld [vmem:[%s1648 + $0x14] sm:$0xf]
      %v1655 = vld [vmem:[%s1648 + $0x18] sm:$0xf]
      %v1656 = vld [vmem:[%s1648 + $0x1c] sm:$0xf]
      %v1657 = vunpack.c.l.b16 %v1637
      %v1658 = vunpack.c.l.b16 %v1647
      %v1659 = vpack.c.b16 %v1658, %v1657
      %v1668 = vunpack.c.l.b16 %v1649
      %v1669 = vunpack.c.l.b16 %v1650
      %v1670 = vunpack.c.l.b16 %v1651
      %v1671 = vunpack.c.l.b16 %v1652
      %v1672 = vunpack.c.l.b16 %v1653
      %v1673 = vunpack.c.l.b16 %v1654
      %v1674 = vunpack.c.l.b16 %v1655
      %v1675 = vunpack.c.l.b16 %v1656
      %v1676 = vpack.c.b16 %v1669, %v1668
      %v1677 = vpack.c.b16 %v1671, %v1670
      %v1678 = vpack.c.b16 %v1673, %v1672
      %v1679 = vpack.c.b16 %v1675, %v1674
      %v1685 = vsel %vm702, %v1659, 0
      %1687 = vmatpush.bf16.msra.mxu0 0
      %1688 = vmatpush.bf16.msra.mxu0 0
      %1689 = vmatpush.bf16.msra.mxu0 0
      %1690 = vmatpush.bf16.msra.mxu0 0
      %1691 = vmatpush.bf16.msra.mxu0 %v1679
      %1692 = vmatpush.bf16.msra.mxu0 %v1678
      %1693 = vmatpush.bf16.msra.mxu0 %v1677
      %1694 = vmatpush.bf16.msra.mxu0 %v1676
      %1695 = vmatmul.bf16.gmra.mxu0 %v707
      %v1696 = vpop.f32.mrf.mxu0
      %v1697 = vadd.f32 0.0, %v1696
      %v1698 = vpop.f32.mrf.mxu0
      %v1699 = vadd.f32 0.0, %v1698
      %1700 = vmatmul.bf16.gmra.mxu0 %v710
      %v1701 = vpop.f32.mrf.mxu0
      %v1702 = vadd.f32 0.0, %v1701
      %v1703 = vpop.f32.mrf.mxu0
      %v1704 = vadd.f32 0.0, %v1703
      %1705 = vmatmul.bf16.gmra.mxu0 %v713
      %v1706 = vpop.f32.mrf.mxu0
      %v1707 = vadd.f32 0.0, %v1706
      %v1708 = vpop.f32.mrf.mxu0
      %v1709 = vadd.f32 0.0, %v1708
      %1710 = vmatmul.bf16.gmra.mxu0 %v716
      %v1711 = vpop.f32.mrf.mxu0
      %v1712 = vadd.f32 0.0, %v1711
      %v1713 = vpop.f32.mrf.mxu0
      %v1714 = vadd.f32 0.0, %v1713
      %1715 = vmatmul.bf16.gmra.mxu0 %v719
      %v1716 = vpop.f32.mrf.mxu0
      %v1717 = vadd.f32 0.0, %v1716
      %v1718 = vpop.f32.mrf.mxu0
      %v1719 = vadd.f32 0.0, %v1718
      %1720 = vmatmul.bf16.gmra.mxu0 %v722
      %v1721 = vpop.f32.mrf.mxu0
      %v1722 = vadd.f32 0.0, %v1721
      %v1723 = vpop.f32.mrf.mxu0
      %v1724 = vadd.f32 0.0, %v1723
      %1725 = vmatmul.bf16.gmra.mxu0 %v725
      %v1726 = vpop.f32.mrf.mxu0
      %v1727 = vadd.f32 0.0, %v1726
      %v1728 = vpop.f32.mrf.mxu0
      %v1729 = vadd.f32 0.0, %v1728
      %1730 = vmatmul.bf16.gmra.mxu0 %v728
      %v1731 = vpop.f32.mrf.mxu0
      %v1732 = vadd.f32 0.0, %v1731
      %v1733 = vpop.f32.mrf.mxu0
      %v1734 = vadd.f32 0.0, %v1733
      %1735 = vmatmul.bf16.gmra.mxu0 %v731
      %v1736 = vpop.f32.mrf.mxu0
      %v1737 = vadd.f32 0.0, %v1736
      %v1738 = vpop.f32.mrf.mxu0
      %v1739 = vadd.f32 0.0, %v1738
      %1740 = vmatmul.bf16.gmra.mxu0 %v734
      %v1741 = vpop.f32.mrf.mxu0
      %v1742 = vadd.f32 0.0, %v1741
      %v1743 = vpop.f32.mrf.mxu0
      %v1744 = vadd.f32 0.0, %v1743
      %1745 = vmatmul.bf16.gmra.mxu0 %v737
      %v1746 = vpop.f32.mrf.mxu0
      %v1747 = vadd.f32 0.0, %v1746
      %v1748 = vpop.f32.mrf.mxu0
      %v1749 = vadd.f32 0.0, %v1748
      %1750 = vmatmul.bf16.gmra.mxu0 %v740
      %v1751 = vpop.f32.mrf.mxu0
      %v1752 = vadd.f32 0.0, %v1751
      %v1753 = vpop.f32.mrf.mxu0
      %v1754 = vadd.f32 0.0, %v1753
      %1755 = vmatmul.bf16.gmra.mxu0 %v743
      %v1756 = vpop.f32.mrf.mxu0
      %v1757 = vadd.f32 0.0, %v1756
      %v1758 = vpop.f32.mrf.mxu0
      %v1759 = vadd.f32 0.0, %v1758
      %1760 = vmatmul.bf16.gmra.mxu0 %v746
      %v1761 = vpop.f32.mrf.mxu0
      %v1762 = vadd.f32 0.0, %v1761
      %v1763 = vpop.f32.mrf.mxu0
      %v1764 = vadd.f32 0.0, %v1763
      %1765 = vmatmul.bf16.gmra.mxu0 %v749
      %v1766 = vpop.f32.mrf.mxu0
      %v1767 = vadd.f32 0.0, %v1766
      %v1768 = vpop.f32.mrf.mxu0
      %v1769 = vadd.f32 0.0, %v1768
      %1770 = vmatmul.bf16.gmra.mxu0 %v1685
      %v1771 = vpop.f32.mrf.mxu0
      %v1772 = vadd.f32 0.0, %v1771
      %v1773 = vpop.f32.mrf.mxu0
      %v1774 = vadd.f32 0.0, %v1773
      %1775 = vdwg.mxu0
      %v1776 = vadd.f32 %v1592, %v1697
      %v1777 = vadd.f32 %v1593, %v1699
      %v1778 = vadd.f32 %v1594, %v1702
      %v1779 = vadd.f32 %v1595, %v1704
      %v1780 = vadd.f32 %v1596, %v1707
      %v1781 = vadd.f32 %v1597, %v1709
      %v1782 = vadd.f32 %v1598, %v1712
      %v1783 = vadd.f32 %v1599, %v1714
      %v1784 = vadd.f32 %v1600, %v1717
      %v1785 = vadd.f32 %v1601, %v1719
      %v1786 = vadd.f32 %v1602, %v1722
      %v1787 = vadd.f32 %v1603, %v1724
      %v1788 = vadd.f32 %v1604, %v1727
      %v1789 = vadd.f32 %v1605, %v1729
      %v1790 = vadd.f32 %v1606, %v1732
      %v1791 = vadd.f32 %v1607, %v1734
      %v1792 = vadd.f32 %v1608, %v1737
      %v1793 = vadd.f32 %v1609, %v1739
      %v1794 = vadd.f32 %v1610, %v1742
      %v1795 = vadd.f32 %v1611, %v1744
      %v1796 = vadd.f32 %v1612, %v1747
      %v1797 = vadd.f32 %v1613, %v1749
      %v1798 = vadd.f32 %v1614, %v1752
      %v1799 = vadd.f32 %v1615, %v1754
      %v1800 = vadd.f32 %v1616, %v1757
      %v1801 = vadd.f32 %v1617, %v1759
      %v1802 = vadd.f32 %v1618, %v1762
      %v1803 = vadd.f32 %v1619, %v1764
      %v1804 = vadd.f32 %v1620, %v1767
      %v1805 = vadd.f32 %v1621, %v1769
      %v1806 = vadd.f32 %v1622, %v1772
      %v1807 = vadd.f32 %v1623, %v1774
      %v1809 = vrot.slane %v220, 5
      %v1810 = vrot.slane %v1809, 4
      %v1811 = vrot.slane %v221, 5
      %v1812 = vsel %vm1099, %v1810, %v1811
      %v1813 = vrot.slane %v1811, 4
      %v1814 = vrot.slane %v222, 5
      %v1815 = vsel %vm1099, %v1813, %v1814
      %s1816 = scalar_lea.vmem %s1, 160
      %v1817 = vld [vmem:[%s1816] sm:$0xf]
      %v1818 = vld [vmem:[%s1816 + $0x4] sm:$0xf]
      %v1819 = vld [vmem:[%s1816 + $0x8] sm:$0xf]
      %v1820 = vld [vmem:[%s1816 + $0xc] sm:$0xf]
      %v1821 = vld [vmem:[%s1816 + $0x10] sm:$0xf]
      %v1822 = vld [vmem:[%s1816 + $0x14] sm:$0xf]
      %v1823 = vld [vmem:[%s1816 + $0x18] sm:$0xf]
      %v1824 = vld [vmem:[%s1816 + $0x1c] sm:$0xf]
      %v1825 = vunpack.c.l.b16 %v1812
      %v1826 = vunpack.c.l.b16 %v1815
      %v1827 = vpack.c.b16 %v1826, %v1825
      %v1836 = vunpack.c.l.b16 %v1817
      %v1837 = vunpack.c.l.b16 %v1818
      %v1838 = vunpack.c.l.b16 %v1819
      %v1839 = vunpack.c.l.b16 %v1820
      %v1840 = vunpack.c.l.b16 %v1821
      %v1841 = vunpack.c.l.b16 %v1822
      %v1842 = vunpack.c.l.b16 %v1823
      %v1843 = vunpack.c.l.b16 %v1824
      %v1844 = vpack.c.b16 %v1837, %v1836
      %v1845 = vpack.c.b16 %v1839, %v1838
      %v1846 = vpack.c.b16 %v1841, %v1840
      %v1847 = vpack.c.b16 %v1843, %v1842
      %v1853 = vsel %vm702, %v1827, 0
      %1855 = vmatpush.bf16.msra.mxu0 0
      %1856 = vmatpush.bf16.msra.mxu0 0
      %1857 = vmatpush.bf16.msra.mxu0 0
      %1858 = vmatpush.bf16.msra.mxu0 0
      %1859 = vmatpush.bf16.msra.mxu0 %v1847
      %1860 = vmatpush.bf16.msra.mxu0 %v1846
      %1861 = vmatpush.bf16.msra.mxu0 %v1845
      %1862 = vmatpush.bf16.msra.mxu0 %v1844
      %1863 = vmatmul.bf16.gmra.mxu0 %v1297
      %v1864 = vpop.f32.mrf.mxu0
      %v1865 = vadd.f32 0.0, %v1864
      %v1866 = vpop.f32.mrf.mxu0
      %v1867 = vadd.f32 0.0, %v1866
      %1868 = vmatmul.bf16.gmra.mxu0 %v1300
      %v1869 = vpop.f32.mrf.mxu0
      %v1870 = vadd.f32 0.0, %v1869
      %v1871 = vpop.f32.mrf.mxu0
      %v1872 = vadd.f32 0.0, %v1871
      %1873 = vmatmul.bf16.gmra.mxu0 %v1303
      %v1874 = vpop.f32.mrf.mxu0
      %v1875 = vadd.f32 0.0, %v1874
      %v1876 = vpop.f32.mrf.mxu0
      %v1877 = vadd.f32 0.0, %v1876
      %1878 = vmatmul.bf16.gmra.mxu0 %v1306
      %v1879 = vpop.f32.mrf.mxu0
      %v1880 = vadd.f32 0.0, %v1879
      %v1881 = vpop.f32.mrf.mxu0
      %v1882 = vadd.f32 0.0, %v1881
      %1883 = vmatmul.bf16.gmra.mxu0 %v1309
      %v1884 = vpop.f32.mrf.mxu0
      %v1885 = vadd.f32 0.0, %v1884
      %v1886 = vpop.f32.mrf.mxu0
      %v1887 = vadd.f32 0.0, %v1886
      %1888 = vmatmul.bf16.gmra.mxu0 %v1312
      %v1889 = vpop.f32.mrf.mxu0
      %v1890 = vadd.f32 0.0, %v1889
      %v1891 = vpop.f32.mrf.mxu0
      %v1892 = vadd.f32 0.0, %v1891
      %1893 = vmatmul.bf16.gmra.mxu0 %v1315
      %v1894 = vpop.f32.mrf.mxu0
      %v1895 = vadd.f32 0.0, %v1894
      %v1896 = vpop.f32.mrf.mxu0
      %v1897 = vadd.f32 0.0, %v1896
      %1898 = vmatmul.bf16.gmra.mxu0 %v1318
      %v1899 = vpop.f32.mrf.mxu0
      %v1900 = vadd.f32 0.0, %v1899
      %v1901 = vpop.f32.mrf.mxu0
      %v1902 = vadd.f32 0.0, %v1901
      %1903 = vmatmul.bf16.gmra.mxu0 %v1321
      %v1904 = vpop.f32.mrf.mxu0
      %v1905 = vadd.f32 0.0, %v1904
      %v1906 = vpop.f32.mrf.mxu0
      %v1907 = vadd.f32 0.0, %v1906
      %1908 = vmatmul.bf16.gmra.mxu0 %v1324
      %v1909 = vpop.f32.mrf.mxu0
      %v1910 = vadd.f32 0.0, %v1909
      %v1911 = vpop.f32.mrf.mxu0
      %v1912 = vadd.f32 0.0, %v1911
      %1913 = vmatmul.bf16.gmra.mxu0 %v1327
      %v1914 = vpop.f32.mrf.mxu0
      %v1915 = vadd.f32 0.0, %v1914
      %v1916 = vpop.f32.mrf.mxu0
      %v1917 = vadd.f32 0.0, %v1916
      %1918 = vmatmul.bf16.gmra.mxu0 %v1330
      %v1919 = vpop.f32.mrf.mxu0
      %v1920 = vadd.f32 0.0, %v1919
      %v1921 = vpop.f32.mrf.mxu0
      %v1922 = vadd.f32 0.0, %v1921
      %1923 = vmatmul.bf16.gmra.mxu0 %v1333
      %v1924 = vpop.f32.mrf.mxu0
      %v1925 = vadd.f32 0.0, %v1924
      %v1926 = vpop.f32.mrf.mxu0
      %v1927 = vadd.f32 0.0, %v1926
      %1928 = vmatmul.bf16.gmra.mxu0 %v1336
      %v1929 = vpop.f32.mrf.mxu0
      %v1930 = vadd.f32 0.0, %v1929
      %v1931 = vpop.f32.mrf.mxu0
      %v1932 = vadd.f32 0.0, %v1931
      %1933 = vmatmul.bf16.gmra.mxu0 %v1339
      %v1934 = vpop.f32.mrf.mxu0
      %v1935 = vadd.f32 0.0, %v1934
      %v1936 = vpop.f32.mrf.mxu0
      %v1937 = vadd.f32 0.0, %v1936
      %1938 = vmatmul.bf16.gmra.mxu0 %v1853
      %v1939 = vpop.f32.mrf.mxu0
      %v1940 = vadd.f32 0.0, %v1939
      %v1941 = vpop.f32.mrf.mxu0
      %v1942 = vadd.f32 0.0, %v1941
      %1943 = vdwg.mxu0
      %v1944 = vadd.f32 %v1776, %v1865
      %v1945 = vadd.f32 %v1777, %v1867
      %v1946 = vadd.f32 %v1778, %v1870
      %v1947 = vadd.f32 %v1779, %v1872
      %v1948 = vadd.f32 %v1780, %v1875
      %v1949 = vadd.f32 %v1781, %v1877
      %v1950 = vadd.f32 %v1782, %v1880
      %v1951 = vadd.f32 %v1783, %v1882
      %v1952 = vadd.f32 %v1784, %v1885
      %v1953 = vadd.f32 %v1785, %v1887
      %v1954 = vadd.f32 %v1786, %v1890
      %v1955 = vadd.f32 %v1787, %v1892
      %v1956 = vadd.f32 %v1788, %v1895
      %v1957 = vadd.f32 %v1789, %v1897
      %v1958 = vadd.f32 %v1790, %v1900
      %v1959 = vadd.f32 %v1791, %v1902
      %v1960 = vadd.f32 %v1792, %v1905
      %v1961 = vadd.f32 %v1793, %v1907
      %v1962 = vadd.f32 %v1794, %v1910
      %v1963 = vadd.f32 %v1795, %v1912
      %v1964 = vadd.f32 %v1796, %v1915
      %v1965 = vadd.f32 %v1797, %v1917
      %v1966 = vadd.f32 %v1798, %v1920
      %v1967 = vadd.f32 %v1799, %v1922
      %v1968 = vadd.f32 %v1800, %v1925
      %v1969 = vadd.f32 %v1801, %v1927
      %v1970 = vadd.f32 %v1802, %v1930
      %v1971 = vadd.f32 %v1803, %v1932
      %v1972 = vadd.f32 %v1804, %v1935
      %v1973 = vadd.f32 %v1805, %v1937
      %v1974 = vadd.f32 %v1806, %v1940
      %v1975 = vadd.f32 %v1807, %v1942
      %s1976 = scalar_lea.vmem %s1, 192
      %v1977 = vld [vmem:[%s1976] sm:$0xf]
      %v1978 = vld [vmem:[%s1976 + $0x4] sm:$0xf]
      %v1979 = vld [vmem:[%s1976 + $0x8] sm:$0xf]
      %v1980 = vld [vmem:[%s1976 + $0xc] sm:$0xf]
      %v1981 = vld [vmem:[%s1976 + $0x10] sm:$0xf]
      %v1982 = vld [vmem:[%s1976 + $0x14] sm:$0xf]
      %v1983 = vld [vmem:[%s1976 + $0x18] sm:$0xf]
      %v1984 = vld [vmem:[%s1976 + $0x1c] sm:$0xf]
      %v1987 = vunpack.c.l.b16 %v223
      %v1988 = vunpack.c.l.b16 %v224
      %v1989 = vpack.c.b16 %v1988, %v1987
      %v1998 = vunpack.c.l.b16 %v1977
      %v1999 = vunpack.c.l.b16 %v1978
      %v2000 = vunpack.c.l.b16 %v1979
      %v2001 = vunpack.c.l.b16 %v1980
      %v2002 = vunpack.c.l.b16 %v1981
      %v2003 = vunpack.c.l.b16 %v1982
      %v2004 = vunpack.c.l.b16 %v1983
      %v2005 = vunpack.c.l.b16 %v1984
      %v2006 = vpack.c.b16 %v1999, %v1998
      %v2007 = vpack.c.b16 %v2001, %v2000
      %v2008 = vpack.c.b16 %v2003, %v2002
      %v2009 = vpack.c.b16 %v2005, %v2004
      %v2015 = vsel %vm702, %v1989, 0
      %2017 = vmatpush.bf16.msra.mxu0 0
      %2018 = vmatpush.bf16.msra.mxu0 0
      %2019 = vmatpush.bf16.msra.mxu0 0
      %2020 = vmatpush.bf16.msra.mxu0 0
      %2021 = vmatpush.bf16.msra.mxu0 %v2009
      %2022 = vmatpush.bf16.msra.mxu0 %v2008
      %2023 = vmatpush.bf16.msra.mxu0 %v2007
      %2024 = vmatpush.bf16.msra.mxu0 %v2006
      %2025 = vmatmul.bf16.gmra.mxu0 %v951
      %v2026 = vpop.f32.mrf.mxu0
      %v2027 = vadd.f32 0.0, %v2026
      %v2028 = vpop.f32.mrf.mxu0
      %v2029 = vadd.f32 0.0, %v2028
      %2030 = vmatmul.bf16.gmra.mxu0 %v954
      %v2031 = vpop.f32.mrf.mxu0
      %v2032 = vadd.f32 0.0, %v2031
      %v2033 = vpop.f32.mrf.mxu0
      %v2034 = vadd.f32 0.0, %v2033
      %2035 = vmatmul.bf16.gmra.mxu0 %v957
      %v2036 = vpop.f32.mrf.mxu0
      %v2037 = vadd.f32 0.0, %v2036
      %v2038 = vpop.f32.mrf.mxu0
      %v2039 = vadd.f32 0.0, %v2038
      %2040 = vmatmul.bf16.gmra.mxu0 %v960
      %v2041 = vpop.f32.mrf.mxu0
      %v2042 = vadd.f32 0.0, %v2041
      %v2043 = vpop.f32.mrf.mxu0
      %v2044 = vadd.f32 0.0, %v2043
      %2045 = vmatmul.bf16.gmra.mxu0 %v963
      %v2046 = vpop.f32.mrf.mxu0
      %v2047 = vadd.f32 0.0, %v2046
      %v2048 = vpop.f32.mrf.mxu0
      %v2049 = vadd.f32 0.0, %v2048
      %2050 = vmatmul.bf16.gmra.mxu0 %v966
      %v2051 = vpop.f32.mrf.mxu0
      %v2052 = vadd.f32 0.0, %v2051
      %v2053 = vpop.f32.mrf.mxu0
      %v2054 = vadd.f32 0.0, %v2053
      %2055 = vmatmul.bf16.gmra.mxu0 %v969
      %v2056 = vpop.f32.mrf.mxu0
      %v2057 = vadd.f32 0.0, %v2056
      %v2058 = vpop.f32.mrf.mxu0
      %v2059 = vadd.f32 0.0, %v2058
      %2060 = vmatmul.bf16.gmra.mxu0 %v972
      %v2061 = vpop.f32.mrf.mxu0
      %v2062 = vadd.f32 0.0, %v2061
      %v2063 = vpop.f32.mrf.mxu0
      %v2064 = vadd.f32 0.0, %v2063
      %2065 = vmatmul.bf16.gmra.mxu0 %v975
      %v2066 = vpop.f32.mrf.mxu0
      %v2067 = vadd.f32 0.0, %v2066
      %v2068 = vpop.f32.mrf.mxu0
      %v2069 = vadd.f32 0.0, %v2068
      %2070 = vmatmul.bf16.gmra.mxu0 %v978
      %v2071 = vpop.f32.mrf.mxu0
      %v2072 = vadd.f32 0.0, %v2071
      %v2073 = vpop.f32.mrf.mxu0
      %v2074 = vadd.f32 0.0, %v2073
      %2075 = vmatmul.bf16.gmra.mxu0 %v981
      %v2076 = vpop.f32.mrf.mxu0
      %v2077 = vadd.f32 0.0, %v2076
      %v2078 = vpop.f32.mrf.mxu0
      %v2079 = vadd.f32 0.0, %v2078
      %2080 = vmatmul.bf16.gmra.mxu0 %v984
      %v2081 = vpop.f32.mrf.mxu0
      %v2082 = vadd.f32 0.0, %v2081
      %v2083 = vpop.f32.mrf.mxu0
      %v2084 = vadd.f32 0.0, %v2083
      %2085 = vmatmul.bf16.gmra.mxu0 %v987
      %v2086 = vpop.f32.mrf.mxu0
      %v2087 = vadd.f32 0.0, %v2086
      %v2088 = vpop.f32.mrf.mxu0
      %v2089 = vadd.f32 0.0, %v2088
      %2090 = vmatmul.bf16.gmra.mxu0 %v990
      %v2091 = vpop.f32.mrf.mxu0
      %v2092 = vadd.f32 0.0, %v2091
      %v2093 = vpop.f32.mrf.mxu0
      %v2094 = vadd.f32 0.0, %v2093
      %2095 = vmatmul.bf16.gmra.mxu0 %v1501
      %v2096 = vpop.f32.mrf.mxu0
      %v2097 = vadd.f32 0.0, %v2096
      %v2098 = vpop.f32.mrf.mxu0
      %v2099 = vadd.f32 0.0, %v2098
      %2100 = vmatmul.bf16.gmra.mxu0 %v2015
      %v2101 = vpop.f32.mrf.mxu0
      %v2102 = vadd.f32 0.0, %v2101
      %v2103 = vpop.f32.mrf.mxu0
      %v2104 = vadd.f32 0.0, %v2103
      %2105 = vdwg.mxu0
      %v2106 = vadd.f32 %v1944, %v2027
      %v2107 = vadd.f32 %v1945, %v2029
      %v2108 = vadd.f32 %v1946, %v2032
      %v2109 = vadd.f32 %v1947, %v2034
      %v2110 = vadd.f32 %v1948, %v2037
      %v2111 = vadd.f32 %v1949, %v2039
      %v2112 = vadd.f32 %v1950, %v2042
      %v2113 = vadd.f32 %v1951, %v2044
      %v2114 = vadd.f32 %v1952, %v2047
      %v2115 = vadd.f32 %v1953, %v2049
      %v2116 = vadd.f32 %v1954, %v2052
      %v2117 = vadd.f32 %v1955, %v2054
      %v2118 = vadd.f32 %v1956, %v2057
      %v2119 = vadd.f32 %v1957, %v2059
      %v2120 = vadd.f32 %v1958, %v2062
      %v2121 = vadd.f32 %v1959, %v2064
      %v2122 = vadd.f32 %v1960, %v2067
      %v2123 = vadd.f32 %v1961, %v2069
      %v2124 = vadd.f32 %v1962, %v2072
      %v2125 = vadd.f32 %v1963, %v2074
      %v2126 = vadd.f32 %v1964, %v2077
      %v2127 = vadd.f32 %v1965, %v2079
      %v2128 = vadd.f32 %v1966, %v2082
      %v2129 = vadd.f32 %v1967, %v2084
      %v2130 = vadd.f32 %v1968, %v2087
      %v2131 = vadd.f32 %v1969, %v2089
      %v2132 = vadd.f32 %v1970, %v2092
      %v2133 = vadd.f32 %v1971, %v2094
      %v2134 = vadd.f32 %v1972, %v2097
      %v2135 = vadd.f32 %v1973, %v2099
      %v2136 = vadd.f32 %v1974, %v2102
      %v2137 = vadd.f32 %v1975, %v2104
      %v2139 = vshrl.u32 %v223, 16
      %v2141 = vrot.slane %v2139, 4
      %v2142 = vshll.u32 %v223, 16
      %v2144 = vrot.slane %v2142, 5
      %v2145 = vor.u32 %v2141, %v2144
      %v2146 = vrot.slane %v2145, 4
      %v2148 = vshll.u32 %v224, 16
      %v2150 = vrot.slane %v2148, 5
      %v2151 = vsel %vm236, %v2146, %v2150
      %v2152 = vshrl.u32 %v224, 16
      %v2154 = vrot.slane %v2152, 4
      %v2155 = vor.u32 %v2154, %v2150
      %v2156 = vrot.slane %v2155, 4
      %v2158 = vshll.u32 %v225, 16
      %v2160 = vrot.slane %v2158, 5
      %v2161 = vsel %vm236, %v2156, %v2160
      %s2162 = scalar_lea.vmem %s1, 224
      %v2163 = vld [vmem:[%s2162] sm:$0xf]
      %v2164 = vld [vmem:[%s2162 + $0x4] sm:$0xf]
      %v2165 = vld [vmem:[%s2162 + $0x8] sm:$0xf]
      %v2166 = vld [vmem:[%s2162 + $0xc] sm:$0xf]
      %v2167 = vld [vmem:[%s2162 + $0x10] sm:$0xf]
      %v2168 = vld [vmem:[%s2162 + $0x14] sm:$0xf]
      %v2169 = vld [vmem:[%s2162 + $0x18] sm:$0xf]
      %v2170 = vld [vmem:[%s2162 + $0x1c] sm:$0xf]
      %v2171 = vunpack.c.l.b16 %v2151
      %v2172 = vunpack.c.l.b16 %v2161
      %v2173 = vpack.c.b16 %v2172, %v2171
      %v2182 = vunpack.c.l.b16 %v2163
      %v2183 = vunpack.c.l.b16 %v2164
      %v2184 = vunpack.c.l.b16 %v2165
      %v2185 = vunpack.c.l.b16 %v2166
      %v2186 = vunpack.c.l.b16 %v2167
      %v2187 = vunpack.c.l.b16 %v2168
      %v2188 = vunpack.c.l.b16 %v2169
      %v2189 = vunpack.c.l.b16 %v2170
      %v2190 = vpack.c.b16 %v2183, %v2182
      %v2191 = vpack.c.b16 %v2185, %v2184
      %v2192 = vpack.c.b16 %v2187, %v2186
      %v2193 = vpack.c.b16 %v2189, %v2188
      %v2199 = vsel %vm702, %v2173, 0
      %2201 = vmatpush.bf16.msra.mxu0 0
      %2202 = vmatpush.bf16.msra.mxu0 0
      %2203 = vmatpush.bf16.msra.mxu0 0
      %2204 = vmatpush.bf16.msra.mxu0 0
      %2205 = vmatpush.bf16.msra.mxu0 %v2193
      %2206 = vmatpush.bf16.msra.mxu0 %v2192
      %2207 = vmatpush.bf16.msra.mxu0 %v2191
      %2208 = vmatpush.bf16.msra.mxu0 %v2190
      %2209 = vmatmul.bf16.gmra.mxu0 %v710
      %v2210 = vpop.f32.mrf.mxu0
      %v2211 = vadd.f32 0.0, %v2210
      %v2212 = vpop.f32.mrf.mxu0
      %v2213 = vadd.f32 0.0, %v2212
      %2214 = vmatmul.bf16.gmra.mxu0 %v713
      %v2215 = vpop.f32.mrf.mxu0
      %v2216 = vadd.f32 0.0, %v2215
      %v2217 = vpop.f32.mrf.mxu0
      %v2218 = vadd.f32 0.0, %v2217
      %2219 = vmatmul.bf16.gmra.mxu0 %v716
      %v2220 = vpop.f32.mrf.mxu0
      %v2221 = vadd.f32 0.0, %v2220
      %v2222 = vpop.f32.mrf.mxu0
      %v2223 = vadd.f32 0.0, %v2222
      %2224 = vmatmul.bf16.gmra.mxu0 %v719
      %v2225 = vpop.f32.mrf.mxu0
      %v2226 = vadd.f32 0.0, %v2225
      %v2227 = vpop.f32.mrf.mxu0
      %v2228 = vadd.f32 0.0, %v2227
      %2229 = vmatmul.bf16.gmra.mxu0 %v722
      %v2230 = vpop.f32.mrf.mxu0
      %v2231 = vadd.f32 0.0, %v2230
      %v2232 = vpop.f32.mrf.mxu0
      %v2233 = vadd.f32 0.0, %v2232
      %2234 = vmatmul.bf16.gmra.mxu0 %v725
      %v2235 = vpop.f32.mrf.mxu0
      %v2236 = vadd.f32 0.0, %v2235
      %v2237 = vpop.f32.mrf.mxu0
      %v2238 = vadd.f32 0.0, %v2237
      %2239 = vmatmul.bf16.gmra.mxu0 %v728
      %v2240 = vpop.f32.mrf.mxu0
      %v2241 = vadd.f32 0.0, %v2240
      %v2242 = vpop.f32.mrf.mxu0
      %v2243 = vadd.f32 0.0, %v2242
      %2244 = vmatmul.bf16.gmra.mxu0 %v731
      %v2245 = vpop.f32.mrf.mxu0
      %v2246 = vadd.f32 0.0, %v2245
      %v2247 = vpop.f32.mrf.mxu0
      %v2248 = vadd.f32 0.0, %v2247
      %2249 = vmatmul.bf16.gmra.mxu0 %v734
      %v2250 = vpop.f32.mrf.mxu0
      %v2251 = vadd.f32 0.0, %v2250
      %v2252 = vpop.f32.mrf.mxu0
      %v2253 = vadd.f32 0.0, %v2252
      %2254 = vmatmul.bf16.gmra.mxu0 %v737
      %v2255 = vpop.f32.mrf.mxu0
      %v2256 = vadd.f32 0.0, %v2255
      %v2257 = vpop.f32.mrf.mxu0
      %v2258 = vadd.f32 0.0, %v2257
      %2259 = vmatmul.bf16.gmra.mxu0 %v740
      %v2260 = vpop.f32.mrf.mxu0
      %v2261 = vadd.f32 0.0, %v2260
      %v2262 = vpop.f32.mrf.mxu0
      %v2263 = vadd.f32 0.0, %v2262
      %2264 = vmatmul.bf16.gmra.mxu0 %v743
      %v2265 = vpop.f32.mrf.mxu0
      %v2266 = vadd.f32 0.0, %v2265
      %v2267 = vpop.f32.mrf.mxu0
      %v2268 = vadd.f32 0.0, %v2267
      %2269 = vmatmul.bf16.gmra.mxu0 %v746
      %v2270 = vpop.f32.mrf.mxu0
      %v2271 = vadd.f32 0.0, %v2270
      %v2272 = vpop.f32.mrf.mxu0
      %v2273 = vadd.f32 0.0, %v2272
      %2274 = vmatmul.bf16.gmra.mxu0 %v749
      %v2275 = vpop.f32.mrf.mxu0
      %v2276 = vadd.f32 0.0, %v2275
      %v2277 = vpop.f32.mrf.mxu0
      %v2278 = vadd.f32 0.0, %v2277
      %2279 = vmatmul.bf16.gmra.mxu0 %v1685
      %v2280 = vpop.f32.mrf.mxu0
      %v2281 = vadd.f32 0.0, %v2280
      %v2282 = vpop.f32.mrf.mxu0
      %v2283 = vadd.f32 0.0, %v2282
      %2284 = vmatmul.bf16.gmra.mxu0 %v2199
      %v2285 = vpop.f32.mrf.mxu0
      %v2286 = vadd.f32 0.0, %v2285
      %v2287 = vpop.f32.mrf.mxu0
      %v2288 = vadd.f32 0.0, %v2287
      %2289 = vdwg.mxu0
      %v2290 = vadd.f32 %v2106, %v2211
      %v2291 = vadd.f32 %v2107, %v2213
      %v2292 = vadd.f32 %v2108, %v2216
      %v2293 = vadd.f32 %v2109, %v2218
      %v2294 = vadd.f32 %v2110, %v2221
      %v2295 = vadd.f32 %v2111, %v2223
      %v2296 = vadd.f32 %v2112, %v2226
      %v2297 = vadd.f32 %v2113, %v2228
      %v2298 = vadd.f32 %v2114, %v2231
      %v2299 = vadd.f32 %v2115, %v2233
      %v2300 = vadd.f32 %v2116, %v2236
      %v2301 = vadd.f32 %v2117, %v2238
      %v2302 = vadd.f32 %v2118, %v2241
      %v2303 = vadd.f32 %v2119, %v2243
      %v2304 = vadd.f32 %v2120, %v2246
      %v2305 = vadd.f32 %v2121, %v2248
      %v2306 = vadd.f32 %v2122, %v2251
      %v2307 = vadd.f32 %v2123, %v2253
      %v2308 = vadd.f32 %v2124, %v2256
      %v2309 = vadd.f32 %v2125, %v2258
      %v2310 = vadd.f32 %v2126, %v2261
      %v2311 = vadd.f32 %v2127, %v2263
      %v2312 = vadd.f32 %v2128, %v2266
      %v2313 = vadd.f32 %v2129, %v2268
      %v2314 = vadd.f32 %v2130, %v2271
      %v2315 = vadd.f32 %v2131, %v2273
      %v2316 = vadd.f32 %v2132, %v2276
      %v2317 = vadd.f32 %v2133, %v2278
      %v2318 = vadd.f32 %v2134, %v2281
      %v2319 = vadd.f32 %v2135, %v2283
      %v2320 = vadd.f32 %v2136, %v2286
      %v2321 = vadd.f32 %v2137, %v2288
      %v2323 = vrot.slane %v223, 5
      %v2324 = vrot.slane %v2323, 4
      %v2325 = vrot.slane %v224, 5
      %v2326 = vsel %vm1099, %v2324, %v2325
      %v2327 = vrot.slane %v2325, 4
      %v2328 = vrot.slane %v225, 5
      %v2329 = vsel %vm1099, %v2327, %v2328
      %s2330 = scalar_lea.vmem %s1, 256
      %v2331 = vld [vmem:[%s2330] sm:$0xf]
      %v2332 = vld [vmem:[%s2330 + $0x4] sm:$0xf]
      %v2333 = vld [vmem:[%s2330 + $0x8] sm:$0xf]
      %v2334 = vld [vmem:[%s2330 + $0xc] sm:$0xf]
      %v2335 = vld [vmem:[%s2330 + $0x10] sm:$0xf]
      %v2336 = vld [vmem:[%s2330 + $0x14] sm:$0xf]
      %v2337 = vld [vmem:[%s2330 + $0x18] sm:$0xf]
      %v2338 = vld [vmem:[%s2330 + $0x1c] sm:$0xf]
      %v2339 = vunpack.c.l.b16 %v2326
      %v2340 = vunpack.c.l.b16 %v2329
      %v2341 = vpack.c.b16 %v2340, %v2339
      %v2350 = vunpack.c.l.b16 %v2331
      %v2351 = vunpack.c.l.b16 %v2332
      %v2352 = vunpack.c.l.b16 %v2333
      %v2353 = vunpack.c.l.b16 %v2334
      %v2354 = vunpack.c.l.b16 %v2335
      %v2355 = vunpack.c.l.b16 %v2336
      %v2356 = vunpack.c.l.b16 %v2337
      %v2357 = vunpack.c.l.b16 %v2338
      %v2358 = vpack.c.b16 %v2351, %v2350
      %v2359 = vpack.c.b16 %v2353, %v2352
      %v2360 = vpack.c.b16 %v2355, %v2354
      %v2361 = vpack.c.b16 %v2357, %v2356
      %v2367 = vsel %vm702, %v2341, 0
      %2369 = vmatpush.bf16.msra.mxu0 0
      %2370 = vmatpush.bf16.msra.mxu0 0
      %2371 = vmatpush.bf16.msra.mxu0 0
      %2372 = vmatpush.bf16.msra.mxu0 0
      %2373 = vmatpush.bf16.msra.mxu0 %v2361
      %2374 = vmatpush.bf16.msra.mxu0 %v2360
      %2375 = vmatpush.bf16.msra.mxu0 %v2359
      %2376 = vmatpush.bf16.msra.mxu0 %v2358
      %2377 = vmatmul.bf16.gmra.mxu0 %v1300
      %v2378 = vpop.f32.mrf.mxu0
      %v2379 = vadd.f32 0.0, %v2378
      %v2380 = vpop.f32.mrf.mxu0
      %v2381 = vadd.f32 0.0, %v2380
      %2382 = vmatmul.bf16.gmra.mxu0 %v1303
      %v2383 = vpop.f32.mrf.mxu0
      %v2384 = vadd.f32 0.0, %v2383
      %v2385 = vpop.f32.mrf.mxu0
      %v2386 = vadd.f32 0.0, %v2385
      %2387 = vmatmul.bf16.gmra.mxu0 %v1306
      %v2388 = vpop.f32.mrf.mxu0
      %v2389 = vadd.f32 0.0, %v2388
      %v2390 = vpop.f32.mrf.mxu0
      %v2391 = vadd.f32 0.0, %v2390
      %2392 = vmatmul.bf16.gmra.mxu0 %v1309
      %v2393 = vpop.f32.mrf.mxu0
      %v2394 = vadd.f32 0.0, %v2393
      %v2395 = vpop.f32.mrf.mxu0
      %v2396 = vadd.f32 0.0, %v2395
      %2397 = vmatmul.bf16.gmra.mxu0 %v1312
      %v2398 = vpop.f32.mrf.mxu0
      %v2399 = vadd.f32 0.0, %v2398
      %v2400 = vpop.f32.mrf.mxu0
      %v2401 = vadd.f32 0.0, %v2400
      %2402 = vmatmul.bf16.gmra.mxu0 %v1315
      %v2403 = vpop.f32.mrf.mxu0
      %v2404 = vadd.f32 0.0, %v2403
      %v2405 = vpop.f32.mrf.mxu0
      %v2406 = vadd.f32 0.0, %v2405
      %2407 = vmatmul.bf16.gmra.mxu0 %v1318
      %v2408 = vpop.f32.mrf.mxu0
      %v2409 = vadd.f32 0.0, %v2408
      %v2410 = vpop.f32.mrf.mxu0
      %v2411 = vadd.f32 0.0, %v2410
      %2412 = vmatmul.bf16.gmra.mxu0 %v1321
      %v2413 = vpop.f32.mrf.mxu0
      %v2414 = vadd.f32 0.0, %v2413
      %v2415 = vpop.f32.mrf.mxu0
      %v2416 = vadd.f32 0.0, %v2415
      %2417 = vmatmul.bf16.gmra.mxu0 %v1324
      %v2418 = vpop.f32.mrf.mxu0
      %v2419 = vadd.f32 0.0, %v2418
      %v2420 = vpop.f32.mrf.mxu0
      %v2421 = vadd.f32 0.0, %v2420
      %2422 = vmatmul.bf16.gmra.mxu0 %v1327
      %v2423 = vpop.f32.mrf.mxu0
      %v2424 = vadd.f32 0.0, %v2423
      %v2425 = vpop.f32.mrf.mxu0
      %v2426 = vadd.f32 0.0, %v2425
      %2427 = vmatmul.bf16.gmra.mxu0 %v1330
      %v2428 = vpop.f32.mrf.mxu0
      %v2429 = vadd.f32 0.0, %v2428
      %v2430 = vpop.f32.mrf.mxu0
      %v2431 = vadd.f32 0.0, %v2430
      %2432 = vmatmul.bf16.gmra.mxu0 %v1333
      %v2433 = vpop.f32.mrf.mxu0
      %v2434 = vadd.f32 0.0, %v2433
      %v2435 = vpop.f32.mrf.mxu0
      %v2436 = vadd.f32 0.0, %v2435
      %2437 = vmatmul.bf16.gmra.mxu0 %v1336
      %v2438 = vpop.f32.mrf.mxu0
      %v2439 = vadd.f32 0.0, %v2438
      %v2440 = vpop.f32.mrf.mxu0
      %v2441 = vadd.f32 0.0, %v2440
      %2442 = vmatmul.bf16.gmra.mxu0 %v1339
      %v2443 = vpop.f32.mrf.mxu0
      %v2444 = vadd.f32 0.0, %v2443
      %v2445 = vpop.f32.mrf.mxu0
      %v2446 = vadd.f32 0.0, %v2445
      %2447 = vmatmul.bf16.gmra.mxu0 %v1853
      %v2448 = vpop.f32.mrf.mxu0
      %v2449 = vadd.f32 0.0, %v2448
      %v2450 = vpop.f32.mrf.mxu0
      %v2451 = vadd.f32 0.0, %v2450
      %2452 = vmatmul.bf16.gmra.mxu0 %v2367
      %v2453 = vpop.f32.mrf.mxu0
      %v2454 = vadd.f32 0.0, %v2453
      %v2455 = vpop.f32.mrf.mxu0
      %v2456 = vadd.f32 0.0, %v2455
      %2457 = vdwg.mxu0
      %v2458 = vadd.f32 %v2290, %v2379
      %v2459 = vadd.f32 %v2291, %v2381
      %v2460 = vadd.f32 %v2292, %v2384
      %v2461 = vadd.f32 %v2293, %v2386
      %v2462 = vadd.f32 %v2294, %v2389
      %v2463 = vadd.f32 %v2295, %v2391
      %v2464 = vadd.f32 %v2296, %v2394
      %v2465 = vadd.f32 %v2297, %v2396
      %v2466 = vadd.f32 %v2298, %v2399
      %v2467 = vadd.f32 %v2299, %v2401
      %v2468 = vadd.f32 %v2300, %v2404
      %v2469 = vadd.f32 %v2301, %v2406
      %v2470 = vadd.f32 %v2302, %v2409
      %v2471 = vadd.f32 %v2303, %v2411
      %v2472 = vadd.f32 %v2304, %v2414
      %v2473 = vadd.f32 %v2305, %v2416
      %v2474 = vadd.f32 %v2306, %v2419
      %v2475 = vadd.f32 %v2307, %v2421
      %v2476 = vadd.f32 %v2308, %v2424
      %v2477 = vadd.f32 %v2309, %v2426
      %v2478 = vadd.f32 %v2310, %v2429
      %v2479 = vadd.f32 %v2311, %v2431
      %v2480 = vadd.f32 %v2312, %v2434
      %v2481 = vadd.f32 %v2313, %v2436
      %v2482 = vadd.f32 %v2314, %v2439
      %v2483 = vadd.f32 %v2315, %v2441
      %v2484 = vadd.f32 %v2316, %v2444
      %v2485 = vadd.f32 %v2317, %v2446
      %v2486 = vadd.f32 %v2318, %v2449
      %v2487 = vadd.f32 %v2319, %v2451
      %v2488 = vadd.f32 %v2320, %v2454
      %v2489 = vadd.f32 %v2321, %v2456
      %v2490 = vld [vmem:[%s2] sm:$0x1]
      %v2492 = vperm.slane %v2490, 0
      %v2494 = vadd.f32 %v2458, %v2492
      %v2495 = vadd.f32 %v2459, %v2492
      %v2496 = vadd.f32 %v2460, %v2492
      %v2497 = vadd.f32 %v2461, %v2492
      %v2498 = vadd.f32 %v2462, %v2492
      %v2499 = vadd.f32 %v2463, %v2492
      %v2500 = vadd.f32 %v2464, %v2492
      %v2501 = vadd.f32 %v2465, %v2492
      %v2502 = vadd.f32 %v2466, %v2492
      %v2503 = vadd.f32 %v2467, %v2492
      %v2504 = vadd.f32 %v2468, %v2492
      %v2505 = vadd.f32 %v2469, %v2492
      %v2506 = vadd.f32 %v2470, %v2492
      %v2507 = vadd.f32 %v2471, %v2492
      %v2508 = vadd.f32 %v2472, %v2492
      %v2509 = vadd.f32 %v2473, %v2492
      %v2510 = vadd.f32 %v2474, %v2492
      %v2511 = vadd.f32 %v2475, %v2492
      %v2512 = vadd.f32 %v2476, %v2492
      %v2513 = vadd.f32 %v2477, %v2492
      %v2514 = vadd.f32 %v2478, %v2492
      %v2515 = vadd.f32 %v2479, %v2492
      %v2516 = vadd.f32 %v2480, %v2492
      %v2517 = vadd.f32 %v2481, %v2492
      %v2518 = vadd.f32 %v2482, %v2492
      %v2519 = vadd.f32 %v2483, %v2492
      %v2520 = vadd.f32 %v2484, %v2492
      %v2521 = vadd.f32 %v2485, %v2492
      %v2522 = vadd.f32 %v2486, %v2492
      %v2523 = vadd.f32 %v2487, %v2492
      %v2524 = vadd.f32 %v2488, %v2492
      %v2525 = vadd.f32 %v2489, %v2492
      %v2526 = vmax.f32 %v2494, 0.0
      %v2527 = vmax.f32 %v2495, 0.0
      %v2528 = vmax.f32 %v2496, 0.0
      %v2529 = vmax.f32 %v2497, 0.0
      %v2530 = vmax.f32 %v2498, 0.0
      %v2531 = vmax.f32 %v2499, 0.0
      %v2532 = vmax.f32 %v2500, 0.0
      %v2533 = vmax.f32 %v2501, 0.0
      %v2534 = vmax.f32 %v2502, 0.0
      %v2535 = vmax.f32 %v2503, 0.0
      %v2536 = vmax.f32 %v2504, 0.0
      %v2537 = vmax.f32 %v2505, 0.0
      %v2538 = vmax.f32 %v2506, 0.0
      %v2539 = vmax.f32 %v2507, 0.0
      %v2540 = vmax.f32 %v2508, 0.0
      %v2541 = vmax.f32 %v2509, 0.0
      %v2542 = vmax.f32 %v2510, 0.0
      %v2543 = vmax.f32 %v2511, 0.0
      %v2544 = vmax.f32 %v2512, 0.0
      %v2545 = vmax.f32 %v2513, 0.0
      %v2546 = vmax.f32 %v2514, 0.0
      %v2547 = vmax.f32 %v2515, 0.0
      %v2548 = vmax.f32 %v2516, 0.0
      %v2549 = vmax.f32 %v2517, 0.0
      %v2550 = vmax.f32 %v2518, 0.0
      %v2551 = vmax.f32 %v2519, 0.0
      %v2552 = vmax.f32 %v2520, 0.0
      %v2553 = vmax.f32 %v2521, 0.0
      %v2554 = vmax.f32 %v2522, 0.0
      %v2555 = vmax.f32 %v2523, 0.0
      %v2556 = vmax.f32 %v2524, 0.0
      %v2557 = vmax.f32 %v2525, 0.0
      %v2558 = vpack.c.bf16 %v2526, %v2526
      %v2559 = vpack.c.bf16 %v2527, %v2527
      %v2560 = vpack.c.bf16 %v2528, %v2528
      %v2561 = vpack.c.bf16 %v2529, %v2529
      %v2562 = vpack.c.bf16 %v2530, %v2530
      %v2563 = vpack.c.bf16 %v2531, %v2531
      %v2564 = vpack.c.bf16 %v2532, %v2532
      %v2565 = vpack.c.bf16 %v2533, %v2533
      %v2566 = vpack.c.bf16 %v2534, %v2534
      %v2567 = vpack.c.bf16 %v2535, %v2535
      %v2568 = vpack.c.bf16 %v2536, %v2536
      %v2569 = vpack.c.bf16 %v2537, %v2537
      %v2570 = vpack.c.bf16 %v2538, %v2538
      %v2571 = vpack.c.bf16 %v2539, %v2539
      %v2572 = vpack.c.bf16 %v2540, %v2540
      %v2573 = vpack.c.bf16 %v2541, %v2541
      %v2574 = vpack.c.bf16 %v2542, %v2542
      %v2575 = vpack.c.bf16 %v2543, %v2543
      %v2576 = vpack.c.bf16 %v2544, %v2544
      %v2577 = vpack.c.bf16 %v2545, %v2545
      %v2578 = vpack.c.bf16 %v2546, %v2546
      %v2579 = vpack.c.bf16 %v2547, %v2547
      %v2580 = vpack.c.bf16 %v2548, %v2548
      %v2581 = vpack.c.bf16 %v2549, %v2549
      %v2582 = vpack.c.bf16 %v2550, %v2550
      %v2583 = vpack.c.bf16 %v2551, %v2551
      %v2584 = vpack.c.bf16 %v2552, %v2552
      %v2585 = vpack.c.bf16 %v2553, %v2553
      %v2586 = vpack.c.bf16 %v2554, %v2554
      %v2587 = vpack.c.bf16 %v2555, %v2555
      %v2588 = vpack.c.bf16 %v2556, %v2556
      %v2589 = vpack.c.bf16 %v2557, %v2557
      %vm2590 = vcmask 519168
      %2591 = vst.msk [vmem:[%s170] sm:$0xf] %vm2590, %v2558
      %2592 = vst.msk [vmem:[%s170 + $0x4] sm:$0xf] %vm2590, %v2559
      %2593 = vst.msk [vmem:[%s170 + $0x8] sm:$0xf] %vm2590, %v2560
      %2594 = vst.msk [vmem:[%s170 + $0xc] sm:$0xf] %vm2590, %v2561
      %2595 = vst.msk [vmem:[%s170 + $0x10] sm:$0xf] %vm2590, %v2562
      %2596 = vst.msk [vmem:[%s170 + $0x14] sm:$0xf] %vm2590, %v2563
      %2597 = vst.msk [vmem:[%s170 + $0x18] sm:$0xf] %vm2590, %v2564
      %2598 = vst.msk [vmem:[%s170 + $0x1c] sm:$0xf] %vm2590, %v2565
      %2599 = vst.msk [vmem:[%s170 + $0x20] sm:$0xf] %vm2590, %v2566
      %2600 = vst.msk [vmem:[%s170 + $0x24] sm:$0xf] %vm2590, %v2567
      %2601 = vst.msk [vmem:[%s170 + $0x28] sm:$0xf] %vm2590, %v2568
      %2602 = vst.msk [vmem:[%s170 + $0x2c] sm:$0xf] %vm2590, %v2569
      %2603 = vst.msk [vmem:[%s170 + $0x30] sm:$0xf] %vm2590, %v2570
      %2604 = vst.msk [vmem:[%s170 + $0x34] sm:$0xf] %vm2590, %v2571
      %2605 = vst.msk [vmem:[%s170 + $0x38] sm:$0xf] %vm2590, %v2572
      %2606 = vst.msk [vmem:[%s170 + $0x3c] sm:$0xf] %vm2590, %v2573
      %2607 = vst.msk [vmem:[%s170 + $0x40] sm:$0xf] %vm2590, %v2574
      %2608 = vst.msk [vmem:[%s170 + $0x44] sm:$0xf] %vm2590, %v2575
      %2609 = vst.msk [vmem:[%s170 + $0x48] sm:$0xf] %vm2590, %v2576
      %2610 = vst.msk [vmem:[%s170 + $0x4c] sm:$0xf] %vm2590, %v2577
      %2611 = vst.msk [vmem:[%s170 + $0x50] sm:$0xf] %vm2590, %v2578
      %2612 = vst.msk [vmem:[%s170 + $0x54] sm:$0xf] %vm2590, %v2579
      %2613 = vst.msk [vmem:[%s170 + $0x58] sm:$0xf] %vm2590, %v2580
      %2614 = vst.msk [vmem:[%s170 + $0x5c] sm:$0xf] %vm2590, %v2581
      %2615 = vst.msk [vmem:[%s170 + $0x60] sm:$0xf] %vm2590, %v2582
      %2616 = vst.msk [vmem:[%s170 + $0x64] sm:$0xf] %vm2590, %v2583
      %2617 = vst.msk [vmem:[%s170 + $0x68] sm:$0xf] %vm2590, %v2584
      %2618 = vst.msk [vmem:[%s170 + $0x6c] sm:$0xf] %vm2590, %v2585
      %2619 = vst.msk [vmem:[%s170 + $0x70] sm:$0xf] %vm2590, %v2586
      %2620 = vst.msk [vmem:[%s170 + $0x74] sm:$0xf] %vm2590, %v2587
      %2621 = vst.msk [vmem:[%s170 + $0x78] sm:$0xf] %vm2590, %v2588
      %2622 = vst.msk [vmem:[%s170 + $0x7c] sm:$0xf] %vm2590, %v2589
      %p2623 = scmp.lt.s32.totalorder %s14, 1
      %s2624 = scalar_select %p2623, %s14, 1
      %s2625 = smul.addr %s2624, 32
      %s2626 = smul.addr %s2625, 4
      %s2627 = scalar_lea.vmem %s3, %s2626
      // Predicated region
      $region33: #{forward.4} parent=31 // pred_check
        %p2628 = pneg %p100
      $region34: #{forward.4} parent=31 // pred_check_branch
        %2630 = sbr.rel (%p2628) target = $region36
      $region35: #{forward.4} parent=31 // pred_region
        _
      $region36: #{forward.4} parent=31 // pred_fallthru
        _
    $region32: #{forward.4} parent=5 // pred_fallthru
      _
    %p2631 = scmp.le.s32.totalorder 2, %s9
    // Predicated region
    $region37: #{forward.4} parent=5 // pred_check
      %p2632 = pneg %p2631
    $region38: #{forward.4} parent=5 // pred_check_branch
      %2634 = sbr.rel (%p2632) target = $region40
    $region39: #{forward.4} parent=5 // pred_region
      %s2635 = ssub.s32 %s9, 2
      // Predicated region
      $region41: #{forward.4} parent=39 // pred_check
        %p2636 = pneg %p106
      $region42: #{forward.4} parent=39 // pred_check_branch
        %2638 = sbr.rel (%p2636) target = $region44
      $region43: #{forward.4} parent=39 // pred_region
        %p2639 = scmp.lt.s32.totalorder %s15, 1
        %s2640 = scalar_select %p2639, %s15, 1
        %s2641 = smul.addr %s2640, 32
        %s2642 = smul.addr %s2641, 4
        %s2643 = scalar_lea.vmem %s3, %s2642
      $region44: #{forward.4} parent=39 // pred_fallthru
        _
    $region40: #{forward.4} parent=5 // pred_fallthru
      _
  $region6: #{forward.4} parent=0 // loop_footer
    %s13 = sadd.s32 1, %s9
  $region7: #{forward.4} parent=0 // loop_footer_branch
    %8 = sbr.rel target = $region3
  $region8: #{forward.4} parent=0 // loop_exit
    _

// kernel: forward.5
$region0: #{forward.5}
  #allocation0 [shape = 'u32[]', space=smem, size = 0x4, offset = 0x4, fixed_abs, tag = 'smem constant byte address 0x4 - core index']
  #allocation1 [shape = 'u32[72,128]{1,0:T(1,128)}', space=vmem, size = 0x9000, scoped, tag = 'internal scratch']
  %s0 = inlined_call_operand.vmem [shape: bf16[2,18,18,64], index: 0, kind: input, shape index: {}]
  %s1 = inlined_call_operand.vmem [shape: bf16[9,64,64], index: 1, kind: input, shape index: {}]
  %s2 = inlined_call_operand.vmem [shape: f32[1,64], index: 2, kind: input, shape index: {}]
  %s3 = inlined_call_operand.vmem [shape: bf16[2,256,64], index: 3, kind: output, shape index: {0}]
  %s4 = inlined_call_operand.vmem [shape: f32[2,1,64], index: 4, kind: output, shape index: {1}]
  %5 = xla_tuple %s3, %s4
  %s6 = sld [smem:[#allocation0]]
  $region53: #{forward.5} parent=0
    _
  %s8 = ssub.s32 1, %s6
  %s9 = scalar_select 0, %s8, %s6
  loop: start=0, step=1, limit=4
  $region2: #{forward.5} parent=0 // loop_pre_header
    _
  $region3: #{forward.5} parent=0 // loop_header
    %s11 = sphi 0, %s15
    %p12 = scmp.ge.s32.totalorder %s11, 4
    %s21 = sphi 0, %s23
    %s24 = sphi 0, %s21
    %s25 = sphi 0, %s24
    %s41 = sphi 0, %s25
    %s45 = sphi 0, %s45
    %s47 = sphi 0, %s45
    %s48 = sphi 0, %s47
    %s62 = sphi 0, %s48
    %s66 = sphi 0, %s66
    %s68 = sphi 0, %s66
    %s69 = sphi 0, %s68
    %s83 = sphi 0, %s69
    %s89 = sphi 0, %s91
    %s92 = sphi 0, %s89
    %s93 = sphi 0, %s92
    %s109 = sphi 0, %s93
    %s115 = sphi 0, %s117
    %s118 = sphi 0, %s115
    %s119 = sphi 0, %s118
    %s135 = sphi 0, %s119
  $region4: #{forward.5} parent=0 // loop_header_branch
    %14 = sbr.rel (%p12) target = $region8
  $region5: #{forward.5} parent=0 // loop_body
    %s16 = ssub.s32 %s11, 1
    %s17 = ssub.s32 %s11, 2
    %s18 = sadd.s32 %s11, 1
    %s19 = ssub.s32 %s11, %s18
    %p20 = scmp.eq.s32.totalorder %s19, 0
    %s22 = sadd.s32 %s21, 1
    %s23 = scalar_select %p20, %s21, %s22
    %p26 = pneg %p20
    %p27 = scmp.eq.s32.totalorder %s11, 1
    %p28 = por %p26, %p27
    %p29 = scmp.ne.s32.totalorder %s21, %s24
    %p30 = scmp.eq.s32.totalorder %s11, 0
    %p31 = por %p29, %p30
    %p32 = scmp.ne.s32.totalorder %s21, %s24
    %p33 = scmp.eq.s32.totalorder %s16, 1
    %p34 = por %p32, %p33
    %p35 = scmp.ne.s32.totalorder %s24, %s25
    %p36 = scmp.eq.s32.totalorder %s16, 0
    %p37 = por %p35, %p36
    %p38 = scmp.ne.s32.totalorder %s24, %s25
    %p39 = scmp.eq.s32.totalorder %s17, 1
    %p40 = por %p38, %p39
    %p42 = scmp.ne.s32.totalorder %s25, %s41
    %p43 = scmp.eq.s32.totalorder %s17, 0
    %p44 = por %p42, %p43
    %s46 = sadd.s32 %s45, 1
    %p49 = scmp.eq.s32.totalorder %s11, 1
    %p50 = scmp.ne.s32.totalorder %s45, %s47
    %p51 = scmp.eq.s32.totalorder %s11, 0
    %p52 = por %p50, %p51
    %p53 = scmp.ne.s32.totalorder %s45, %s47
    %p54 = scmp.eq.s32.totalorder %s16, 1
    %p55 = por %p53, %p54
    %p56 = scmp.ne.s32.totalorder %s47, %s48
    %p57 = scmp.eq.s32.totalorder %s16, 0
    %p58 = por %p56, %p57
    %p59 = scmp.ne.s32.totalorder %s47, %s48
    %p60 = scmp.eq.s32.totalorder %s17, 1
    %p61 = por %p59, %p60
    %p63 = scmp.ne.s32.totalorder %s48, %s62
    %p64 = scmp.eq.s32.totalorder %s17, 0
    %p65 = por %p63, %p64
    %s67 = sadd.s32 %s66, 1
    %p70 = scmp.eq.s32.totalorder %s11, 1
    %p71 = scmp.ne.s32.totalorder %s66, %s68
    %p72 = scmp.eq.s32.totalorder %s11, 0
    %p73 = por %p71, %p72
    %p74 = scmp.ne.s32.totalorder %s66, %s68
    %p75 = scmp.eq.s32.totalorder %s16, 1
    %p76 = por %p74, %p75
    %p77 = scmp.ne.s32.totalorder %s68, %s69
    %p78 = scmp.eq.s32.totalorder %s16, 0
    %p79 = por %p77, %p78
    %p80 = scmp.ne.s32.totalorder %s68, %s69
    %p81 = scmp.eq.s32.totalorder %s17, 1
    %p82 = por %p80, %p81
    %p84 = scmp.ne.s32.totalorder %s69, %s83
    %p85 = scmp.eq.s32.totalorder %s17, 0
    %p86 = por %p84, %p85
    %s87 = ssub.s32 %s11, %s18
    %p88 = scmp.eq.s32.totalorder %s87, 0
    %s90 = sadd.s32 %s89, 1
    %s91 = scalar_select %p88, %s89, %s90
    %p94 = pneg %p88
    %p95 = scmp.eq.s32.totalorder %s11, 1
    %p96 = por %p94, %p95
    %p97 = scmp.ne.s32.totalorder %s89, %s92
    %p98 = scmp.eq.s32.totalorder %s11, 0
    %p99 = por %p97, %p98
    %p100 = scmp.ne.s32.totalorder %s89, %s92
    %p101 = scmp.eq.s32.totalorder %s16, 1
    %p102 = por %p100, %p101
    %p103 = scmp.ne.s32.totalorder %s92, %s93
    %p104 = scmp.eq.s32.totalorder %s16, 0
    %p105 = por %p103, %p104
    %p106 = scmp.ne.s32.totalorder %s92, %s93
    %p107 = scmp.eq.s32.totalorder %s17, 1
    %p108 = por %p106, %p107
    %p110 = scmp.ne.s32.totalorder %s93, %s109
    %p111 = scmp.eq.s32.totalorder %s17, 0
    %p112 = por %p110, %p111
    %s113 = ssub.s32 %s11, %s18
    %p114 = scmp.eq.s32.totalorder %s113, 0
    %s116 = sadd.s32 %s115, 1
    %s117 = scalar_select %p114, %s115, %s116
    %p120 = pneg %p114
    %p121 = scmp.eq.s32.totalorder %s11, 1
    %p122 = por %p120, %p121
    %p123 = scmp.ne.s32.totalorder %s115, %s118
    %p124 = scmp.eq.s32.totalorder %s11, 0
    %p125 = por %p123, %p124
    %p126 = scmp.ne.s32.totalorder %s115, %s118
    %p127 = scmp.eq.s32.totalorder %s16, 1
    %p128 = por %p126, %p127
    %p129 = scmp.ne.s32.totalorder %s118, %s119
    %p130 = scmp.eq.s32.totalorder %s16, 0
    %p131 = por %p129, %p130
    %p132 = scmp.ne.s32.totalorder %s118, %s119
    %p133 = scmp.eq.s32.totalorder %s17, 1
    %p134 = por %p132, %p133
    %p136 = scmp.ne.s32.totalorder %s119, %s135
    %p137 = scmp.eq.s32.totalorder %s17, 0
    %p138 = por %p136, %p137
    %p139 = scmp.le.s32.totalorder 1, %s11
    %p140 = scmp.lt.s32.totalorder %s11, 3
    %p141 = pnand %p139, %p140
    %p142 = pneg %p141
    // Predicated region
    $region9: #{forward.5} parent=5 // pred_check
      _
    $region10: #{forward.5} parent=5 // pred_check_branch
      %144 = sbr.rel (%p141) target = $region12
    $region11: #{forward.5} parent=5 // pred_region
      %s145 = ssub.s32 %s11, 1
      // Predicated region
      $region13: #{forward.5} parent=11 // pred_check
        %p146 = pneg %p58
      $region14: #{forward.5} parent=11 // pred_check_branch
        %148 = sbr.rel (%p146) target = $region16
      $region15: #{forward.5} parent=11 // pred_region
        _
      $region16: #{forward.5} parent=11 // pred_fallthru
        _
      // Predicated region
      $region17: #{forward.5} parent=11 // pred_check
        %p149 = pneg %p79
      $region18: #{forward.5} parent=11 // pred_check_branch
        %151 = sbr.rel (%p149) target = $region20
      $region19: #{forward.5} parent=11 // pred_region
        _
      $region20: #{forward.5} parent=11 // pred_fallthru
        _
    $region12: #{forward.5} parent=5 // pred_fallthru
      _
    %p152 = scmp.lt.s32.totalorder %s11, 2
    // Predicated region
    $region21: #{forward.5} parent=5 // pred_check
      %p153 = pneg %p152
    $region22: #{forward.5} parent=5 // pred_check_branch
      %155 = sbr.rel (%p153) target = $region24
    $region23: #{forward.5} parent=5 // pred_region
      // Predicated region
      $region25: #{forward.5} parent=23 // pred_check
        %p156 = pneg %p31
      $region26: #{forward.5} parent=23 // pred_check_branch
        %158 = sbr.rel (%p156) target = $region28
      $region27: #{forward.5} parent=23 // pred_region
        %p159 = scmp.lt.s32.totalorder %s11, 1
        %s160 = scalar_select %p159, %s11, 1
        %s161 = smul.addr %s160, 54
        %s162 = smul.addr %s161, 4
        %s163 = scalar_lea.vmem %s0, %s162
      $region28: #{forward.5} parent=23 // pred_fallthru
        _
    $region24: #{forward.5} parent=5 // pred_fallthru
      _
    %p164 = scmp.le.s32.totalorder 1, %s11
    %p165 = scmp.lt.s32.totalorder %s11, 3
    %p166 = pnand %p164, %p165
    %p167 = pneg %p166
    // Predicated region
    $region29: #{forward.5} parent=5 // pred_check
      _
    $region30: #{forward.5} parent=5 // pred_check_branch
      %169 = sbr.rel (%p166) target = $region32
    $region31: #{forward.5} parent=5 // pred_region
      %s170 = ssub.s32 %s11, 1
      %p171 = scmp.lt.s32.totalorder %s16, 1
      %s172 = scalar_select %p171, %s16, 1
      %s173 = smul.addr %s172, 54
      %s174 = smul.addr %s173, 4
      %s175 = scalar_lea.vmem %s0, %s174
      %p176 = pneg %p37
      %p177 = pneg %p34
      %p178 = pneg %p58
      %p179 = pneg %p55
      %p180 = pneg %p79
      %p181 = pneg %p76
      %p182 = pneg %p105
      %p183 = pneg %p102
      %p184 = scmp.lt.s32.totalorder %s16, 1
      %s185 = scalar_select %p184, %s16, 1
      %s186 = smul.addr %s185, 32
      %s187 = smul.addr %s186, 4
      %s188 = scalar_lea.vmem %s3, %s187
      %p189 = pneg %p131
      %p190 = pneg %p128
      %p191 = scmp.lt.s32.totalorder %s16, 1
      %s192 = scalar_select %p191, %s16, 1
      %s193 = scalar_lea.vmem %s4, %s192
      %p194 = scmp.lt.s32.totalorder %s16, 1
      %s195 = scalar_select %p194, %s16, 1
      %s196 = smul.addr %s195, 54
      %s197 = smul.addr %s196, 4
      %s198 = scalar_lea.vmem %s0, %s197
      %p199 = scmp.lt.s32.totalorder %s16, 1
      %s200 = scalar_select %p199, %s16, 1
      %s201 = smul.addr %s200, 32
      %s202 = smul.addr %s201, 4
      %s203 = scalar_lea.vmem %s3, %s202
      %p204 = scmp.lt.s32.totalorder %s16, 1
      %s205 = scalar_select %p204, %s16, 1
      %s206 = scalar_lea.vmem %s4, %s205
      %v208 = vld [vmem:[%s198] sm:$0xf]
      %v209 = vld [vmem:[%s198 + $0x4] sm:$0xf]
      %v210 = vld [vmem:[%s198 + $0x8] sm:$0x1]
      %v211 = vld [vmem:[%s198 + $0xc] sm:$0xf]
      %v212 = vld [vmem:[%s198 + $0x10] sm:$0xf]
      %v213 = vld [vmem:[%s198 + $0x14] sm:$0x1]
      %v214 = vld [vmem:[%s198 + $0x18] sm:$0xf]
      %v215 = vld [vmem:[%s198 + $0x1c] sm:$0xf]
      %v216 = vld [vmem:[%s198 + $0x20] sm:$0x1]
      %v217 = vld [vmem:[%s198 + $0x24] sm:$0xf]
      %v218 = vld [vmem:[%s198 + $0x28] sm:$0xf]
      %v219 = vld [vmem:[%s198 + $0x2c] sm:$0x1]
      %v220 = vld [vmem:[%s198 + $0x30] sm:$0xf]
      %v221 = vld [vmem:[%s198 + $0x34] sm:$0xf]
      %v222 = vld [vmem:[%s198 + $0x38] sm:$0x1]
      %v223 = vld [vmem:[%s198 + $0x3c] sm:$0xf]
      %v224 = vld [vmem:[%s198 + $0x40] sm:$0xf]
      %v225 = vld [vmem:[%s198 + $0x44] sm:$0x1]
      %v226 = vld [vmem:[%s198 + $0x48] sm:$0xf]
      %v227 = vld [vmem:[%s198 + $0x4c] sm:$0xf]
      %v228 = vld [vmem:[%s198 + $0x50] sm:$0x1]
      %v229 = vld [vmem:[%s198 + $0x54] sm:$0xf]
      %v230 = vld [vmem:[%s198 + $0x58] sm:$0xf]
      %v231 = vld [vmem:[%s198 + $0x5c] sm:$0x1]
      %v232 = vld [vmem:[%s198 + $0x60] sm:$0xf]
      %v233 = vld [vmem:[%s198 + $0x64] sm:$0xf]
      %v234 = vld [vmem:[%s198 + $0x68] sm:$0x1]
      %v235 = vld [vmem:[%s198 + $0x6c] sm:$0xf]
      %v236 = vld [vmem:[%s198 + $0x70] sm:$0xf]
      %v237 = vld [vmem:[%s198 + $0x74] sm:$0x1]
      %v238 = vld [vmem:[%s198 + $0x78] sm:$0xf]
      %v239 = vld [vmem:[%s198 + $0x7c] sm:$0xf]
      %v240 = vld [vmem:[%s198 + $0x80] sm:$0x1]
      %v241 = vld [vmem:[%s198 + $0x84] sm:$0xf]
      %v242 = vld [vmem:[%s198 + $0x88] sm:$0xf]
      %v243 = vld [vmem:[%s198 + $0x8c] sm:$0x1]
      %v244 = vld [vmem:[%s198 + $0x90] sm:$0xf]
      %v245 = vld [vmem:[%s198 + $0x94] sm:$0xf]
      %v246 = vld [vmem:[%s198 + $0x98] sm:$0x1]
      %v247 = vld [vmem:[%s198 + $0x9c] sm:$0xf]
      %v248 = vld [vmem:[%s198 + $0xa0] sm:$0xf]
      %v249 = vld [vmem:[%s198 + $0xa4] sm:$0x1]
      %v250 = vld [vmem:[%s198 + $0xa8] sm:$0xf]
      %v251 = vld [vmem:[%s198 + $0xac] sm:$0xf]
      %v252 = vld [vmem:[%s198 + $0xb0] sm:$0x1]
      %v253 = vld [vmem:[%s198 + $0xb4] sm:$0xf]
      %v254 = vld [vmem:[%s198 + $0xb8] sm:$0xf]
      %v255 = vld [vmem:[%s198 + $0xbc] sm:$0x1]
      %v256 = vld [vmem:[%s198 + $0xc0] sm:$0xf]
      %v257 = vld [vmem:[%s198 + $0xc4] sm:$0xf]
      %v258 = vld [vmem:[%s198 + $0xc8] sm:$0x1]
      %v259 = vld [vmem:[%s198 + $0xcc] sm:$0xf]
      %v260 = vld [vmem:[%s198 + $0xd0] sm:$0xf]
      %v261 = vld [vmem:[%s198 + $0xd4] sm:$0x1]
      %v262 = vld [vmem:[%s1] sm:$0xf]
      %v263 = vld [vmem:[%s1 + $0x4] sm:$0xf]
      %v264 = vld [vmem:[%s1 + $0x8] sm:$0xf]
      %v265 = vld [vmem:[%s1 + $0xc] sm:$0xf]
      %v266 = vld [vmem:[%s1 + $0x10] sm:$0xf]
      %v267 = vld [vmem:[%s1 + $0x14] sm:$0xf]
      %v268 = vld [vmem:[%s1 + $0x18] sm:$0xf]
      %v269 = vld [vmem:[%s1 + $0x1c] sm:$0xf]
      %vm270 = vsmask.f32 3328
      %vm271 = vsmask.f32 7440
      %vm272 = vmor %vm270, %vm271
      %v274 = vshrl.u32 %v208, 16
      %v276 = vrot.slane %v274, 4
      %v277 = vshll.u32 %v208, 16
      %v279 = vrot.slane %v277, 5
      %v280 = vor.u32 %v276, %v279
      %v281 = vrot.slane %v280, 4
      %v283 = vshll.u32 %v209, 16
      %v285 = vrot.slane %v283, 5
      %v286 = vsel %vm272, %v281, %v285
      %v287 = vshrl.u32 %v209, 16
      %v289 = vrot.slane %v287, 4
      %v290 = vor.u32 %v289, %v285
      %v291 = vrot.slane %v290, 4
      %v293 = vshll.u32 %v210, 16
      %v295 = vrot.slane %v293, 5
      %v296 = vsel %vm272, %v291, %v295
      %v298 = vshrl.u32 %v211, 16
      %v300 = vrot.slane %v298, 4
      %v301 = vshll.u32 %v211, 16
      %v303 = vrot.slane %v301, 5
      %v304 = vor.u32 %v300, %v303
      %v305 = vrot.slane %v304, 4
      %v307 = vshll.u32 %v212, 16
      %v309 = vrot.slane %v307, 5
      %v310 = vsel %vm272, %v305, %v309
      %v311 = vshrl.u32 %v212, 16
      %v313 = vrot.slane %v311, 4
      %v314 = vor.u32 %v313, %v309
      %v315 = vrot.slane %v314, 4
      %v317 = vshll.u32 %v213, 16
      %v319 = vrot.slane %v317, 5
      %v320 = vsel %vm272, %v315, %v319
      %v322 = vshrl.u32 %v214, 16
      %v324 = vrot.slane %v322, 4
      %v325 = vshll.u32 %v214, 16
      %v327 = vrot.slane %v325, 5
      %v328 = vor.u32 %v324, %v327
      %v329 = vrot.slane %v328, 4
      %v331 = vshll.u32 %v215, 16
      %v333 = vrot.slane %v331, 5
      %v334 = vsel %vm272, %v329, %v333
      %v335 = vshrl.u32 %v215, 16
      %v337 = vrot.slane %v335, 4
      %v338 = vor.u32 %v337, %v333
      %v339 = vrot.slane %v338, 4
      %v341 = vshll.u32 %v216, 16
      %v343 = vrot.slane %v341, 5
      %v344 = vsel %vm272, %v339, %v343
      %v346 = vshrl.u32 %v217, 16
      %v348 = vrot.slane %v346, 4
      %v349 = vshll.u32 %v217, 16
      %v351 = vrot.slane %v349, 5
      %v352 = vor.u32 %v348, %v351
      %v353 = vrot.slane %v352, 4
      %v355 = vshll.u32 %v218, 16
      %v357 = vrot.slane %v355, 5
      %v358 = vsel %vm272, %v353, %v357
      %v359 = vshrl.u32 %v218, 16
      %v361 = vrot.slane %v359, 4
      %v362 = vor.u32 %v361, %v357
      %v363 = vrot.slane %v362, 4
      %v365 = vshll.u32 %v219, 16
      %v367 = vrot.slane %v365, 5
      %v368 = vsel %vm272, %v363, %v367
      %v370 = vshrl.u32 %v220, 16
      %v372 = vrot.slane %v370, 4
      %v373 = vshll.u32 %v220, 16
      %v375 = vrot.slane %v373, 5
      %v376 = vor.u32 %v372, %v375
      %v377 = vrot.slane %v376, 4
      %v379 = vshll.u32 %v221, 16
      %v381 = vrot.slane %v379, 5
      %v382 = vsel %vm272, %v377, %v381
      %v383 = vshrl.u32 %v221, 16
      %v385 = vrot.slane %v383, 4
      %v386 = vor.u32 %v385, %v381
      %v387 = vrot.slane %v386, 4
      %v389 = vshll.u32 %v222, 16
      %v391 = vrot.slane %v389, 5
      %v392 = vsel %vm272, %v387, %v391
      %v394 = vshrl.u32 %v223, 16
      %v396 = vrot.slane %v394, 4
      %v397 = vshll.u32 %v223, 16
      %v399 = vrot.slane %v397, 5
      %v400 = vor.u32 %v396, %v399
      %v401 = vrot.slane %v400, 4
      %v403 = vshll.u32 %v224, 16
      %v405 = vrot.slane %v403, 5
      %v406 = vsel %vm272, %v401, %v405
      %v407 = vshrl.u32 %v224, 16
      %v409 = vrot.slane %v407, 4
      %v410 = vor.u32 %v409, %v405
      %v411 = vrot.slane %v410, 4
      %v413 = vshll.u32 %v225, 16
      %v415 = vrot.slane %v413, 5
      %v416 = vsel %vm272, %v411, %v415
      %v418 = vshrl.u32 %v226, 16
      %v420 = vrot.slane %v418, 4
      %v421 = vshll.u32 %v226, 16
      %v423 = vrot.slane %v421, 5
      %v424 = vor.u32 %v420, %v423
      %v425 = vrot.slane %v424, 4
      %v427 = vshll.u32 %v227, 16
      %v429 = vrot.slane %v427, 5
      %v430 = vsel %vm272, %v425, %v429
      %v431 = vshrl.u32 %v227, 16
      %v433 = vrot.slane %v431, 4
      %v434 = vor.u32 %v433, %v429
      %v435 = vrot.slane %v434, 4
      %v437 = vshll.u32 %v228, 16
      %v439 = vrot.slane %v437, 5
      %v440 = vsel %vm272, %v435, %v439
      %v442 = vshrl.u32 %v229, 16
      %v444 = vrot.slane %v442, 4
      %v445 = vshll.u32 %v229, 16
      %v447 = vrot.slane %v445, 5
      %v448 = vor.u32 %v444, %v447
      %v449 = vrot.slane %v448, 4
      %v451 = vshll.u32 %v230, 16
      %v453 = vrot.slane %v451, 5
      %v454 = vsel %vm272, %v449, %v453
      %v455 = vshrl.u32 %v230, 16
      %v457 = vrot.slane %v455, 4
      %v458 = vor.u32 %v457, %v453
      %v459 = vrot.slane %v458, 4
      %v461 = vshll.u32 %v231, 16
      %v463 = vrot.slane %v461, 5
      %v464 = vsel %vm272, %v459, %v463
      %v466 = vshrl.u32 %v232, 16
      %v468 = vrot.slane %v466, 4
      %v469 = vshll.u32 %v232, 16
      %v471 = vrot.slane %v469, 5
      %v472 = vor.u32 %v468, %v471
      %v473 = vrot.slane %v472, 4
      %v475 = vshll.u32 %v233, 16
      %v477 = vrot.slane %v475, 5
      %v478 = vsel %vm272, %v473, %v477
      %v479 = vshrl.u32 %v233, 16
      %v481 = vrot.slane %v479, 4
      %v482 = vor.u32 %v481, %v477
      %v483 = vrot.slane %v482, 4
      %v485 = vshll.u32 %v234, 16
      %v487 = vrot.slane %v485, 5
      %v488 = vsel %vm272, %v483, %v487
      %v490 = vshrl.u32 %v235, 16
      %v492 = vrot.slane %v490, 4
      %v493 = vshll.u32 %v235, 16
      %v495 = vrot.slane %v493, 5
      %v496 = vor.u32 %v492, %v495
      %v497 = vrot.slane %v496, 4
      %v499 = vshll.u32 %v236, 16
      %v501 = vrot.slane %v499, 5
      %v502 = vsel %vm272, %v497, %v501
      %v503 = vshrl.u32 %v236, 16
      %v505 = vrot.slane %v503, 4
      %v506 = vor.u32 %v505, %v501
      %v507 = vrot.slane %v506, 4
      %v509 = vshll.u32 %v237, 16
      %v511 = vrot.slane %v509, 5
      %v512 = vsel %vm272, %v507, %v511
      %v514 = vshrl.u32 %v238, 16
      %v516 = vrot.slane %v514, 4
      %v517 = vshll.u32 %v238, 16
      %v519 = vrot.slane %v517, 5
      %v520 = vor.u32 %v516, %v519
      %v521 = vrot.slane %v520, 4
      %v523 = vshll.u32 %v239, 16
      %v525 = vrot.slane %v523, 5
      %v526 = vsel %vm272, %v521, %v525
      %v527 = vshrl.u32 %v239, 16
      %v529 = vrot.slane %v527, 4
      %v530 = vor.u32 %v529, %v525
      %v531 = vrot.slane %v530, 4
      %v533 = vshll.u32 %v240, 16
      %v535 = vrot.slane %v533, 5
      %v536 = vsel %vm272, %v531, %v535
      %v538 = vshrl.u32 %v241, 16
      %v540 = vrot.slane %v538, 4
      %v541 = vshll.u32 %v241, 16
      %v543 = vrot.slane %v541, 5
      %v544 = vor.u32 %v540, %v543
      %v545 = vrot.slane %v544, 4
      %v547 = vshll.u32 %v242, 16
      %v549 = vrot.slane %v547, 5
      %v550 = vsel %vm272, %v545, %v549
      %v551 = vshrl.u32 %v242, 16
      %v553 = vrot.slane %v551, 4
      %v554 = vor.u32 %v553, %v549
      %v555 = vrot.slane %v554, 4
      %v557 = vshll.u32 %v243, 16
      %v559 = vrot.slane %v557, 5
      %v560 = vsel %vm272, %v555, %v559
      %v562 = vshrl.u32 %v244, 16
      %v564 = vrot.slane %v562, 4
      %v565 = vshll.u32 %v244, 16
      %v567 = vrot.slane %v565, 5
      %v568 = vor.u32 %v564, %v567
      %v569 = vrot.slane %v568, 4
      %v571 = vshll.u32 %v245, 16
      %v573 = vrot.slane %v571, 5
      %v574 = vsel %vm272, %v569, %v573
      %v575 = vshrl.u32 %v245, 16
      %v577 = vrot.slane %v575, 4
      %v578 = vor.u32 %v577, %v573
      %v579 = vrot.slane %v578, 4
      %v581 = vshll.u32 %v246, 16
      %v583 = vrot.slane %v581, 5
      %v584 = vsel %vm272, %v579, %v583
      %v586 = vshrl.u32 %v247, 16
      %v588 = vrot.slane %v586, 4
      %v589 = vshll.u32 %v247, 16
      %v591 = vrot.slane %v589, 5
      %v592 = vor.u32 %v588, %v591
      %v593 = vrot.slane %v592, 4
      %v595 = vshll.u32 %v248, 16
      %v597 = vrot.slane %v595, 5
      %v598 = vsel %vm272, %v593, %v597
      %v599 = vshrl.u32 %v248, 16
      %v601 = vrot.slane %v599, 4
      %v602 = vor.u32 %v601, %v597
      %v603 = vrot.slane %v602, 4
      %v605 = vshll.u32 %v249, 16
      %v607 = vrot.slane %v605, 5
      %v608 = vsel %vm272, %v603, %v607
      %v610 = vshrl.u32 %v250, 16
      %v612 = vrot.slane %v610, 4
      %v613 = vshll.u32 %v250, 16
      %v615 = vrot.slane %v613, 5
      %v616 = vor.u32 %v612, %v615
      %v617 = vrot.slane %v616, 4
      %v619 = vshll.u32 %v251, 16
      %v621 = vrot.slane %v619, 5
      %v622 = vsel %vm272, %v617, %v621
      %v623 = vshrl.u32 %v251, 16
      %v625 = vrot.slane %v623, 4
      %v626 = vor.u32 %v625, %v621
      %v627 = vrot.slane %v626, 4
      %v629 = vshll.u32 %v252, 16
      %v631 = vrot.slane %v629, 5
      %v632 = vsel %vm272, %v627, %v631
      %v634 = vshrl.u32 %v253, 16
      %v636 = vrot.slane %v634, 4
      %v637 = vshll.u32 %v253, 16
      %v639 = vrot.slane %v637, 5
      %v640 = vor.u32 %v636, %v639
      %v641 = vrot.slane %v640, 4
      %v643 = vshll.u32 %v254, 16
      %v645 = vrot.slane %v643, 5
      %v646 = vsel %vm272, %v641, %v645
      %v647 = vshrl.u32 %v254, 16
      %v649 = vrot.slane %v647, 4
      %v650 = vor.u32 %v649, %v645
      %v651 = vrot.slane %v650, 4
      %v653 = vshll.u32 %v255, 16
      %v655 = vrot.slane %v653, 5
      %v656 = vsel %vm272, %v651, %v655
      %s657 = scalar_lea.vmem %s1, 32
      %v658 = vld [vmem:[%s657] sm:$0xf]
      %v659 = vld [vmem:[%s657 + $0x4] sm:$0xf]
      %v660 = vld [vmem:[%s657 + $0x8] sm:$0xf]
      %v661 = vld [vmem:[%s657 + $0xc] sm:$0xf]
      %v662 = vld [vmem:[%s657 + $0x10] sm:$0xf]
      %v663 = vld [vmem:[%s657 + $0x14] sm:$0xf]
      %v664 = vld [vmem:[%s657 + $0x18] sm:$0xf]
      %v665 = vld [vmem:[%s657 + $0x1c] sm:$0xf]
      %v666 = vunpack.c.l.b16 %v286
      %v667 = vunpack.c.l.b16 %v296
      %v668 = vunpack.c.l.b16 %v310
      %v669 = vunpack.c.l.b16 %v320
      %v670 = vunpack.c.l.b16 %v334
      %v671 = vunpack.c.l.b16 %v344
      %v672 = vunpack.c.l.b16 %v358
      %v673 = vunpack.c.l.b16 %v368
      %v674 = vunpack.c.l.b16 %v382
      %v675 = vunpack.c.l.b16 %v392
      %v676 = vunpack.c.l.b16 %v406
      %v677 = vunpack.c.l.b16 %v416
      %v678 = vunpack.c.l.b16 %v430
      %v679 = vunpack.c.l.b16 %v440
      %v680 = vunpack.c.l.b16 %v454
      %v681 = vunpack.c.l.b16 %v464
      %v682 = vunpack.c.l.b16 %v478
      %v683 = vunpack.c.l.b16 %v488
      %v684 = vunpack.c.l.b16 %v502
      %v685 = vunpack.c.l.b16 %v512
      %v686 = vunpack.c.l.b16 %v526
      %v687 = vunpack.c.l.b16 %v536
      %v688 = vunpack.c.l.b16 %v550
      %v689 = vunpack.c.l.b16 %v560
      %v690 = vunpack.c.l.b16 %v574
      %v691 = vunpack.c.l.b16 %v584
      %v692 = vunpack.c.l.b16 %v598
      %v693 = vunpack.c.l.b16 %v608
      %v694 = vunpack.c.l.b16 %v622
      %v695 = vunpack.c.l.b16 %v632
      %v696 = vunpack.c.l.b16 %v646
      %v697 = vunpack.c.l.b16 %v656
      %v698 = vpack.c.b16 %v667, %v666
      %v699 = vpack.c.b16 %v669, %v668
      %v700 = vpack.c.b16 %v671, %v670
      %v701 = vpack.c.b16 %v673, %v672
      %v702 = vpack.c.b16 %v675, %v674
      %v703 = vpack.c.b16 %v677, %v676
      %v704 = vpack.c.b16 %v679, %v678
      %v705 = vpack.c.b16 %v681, %v680
      %v706 = vpack.c.b16 %v683, %v682
      %v707 = vpack.c.b16 %v685, %v684
      %v708 = vpack.c.b16 %v687, %v686
      %v709 = vpack.c.b16 %v689, %v688
      %v710 = vpack.c.b16 %v691, %v690
      %v711 = vpack.c.b16 %v693, %v692
      %v712 = vpack.c.b16 %v695, %v694
      %v713 = vpack.c.b16 %v697, %v696
      %v722 = vunpack.c.l.b16 %v658
      %v723 = vunpack.c.l.b16 %v659
      %v724 = vunpack.c.l.b16 %v660
      %v725 = vunpack.c.l.b16 %v661
      %v726 = vunpack.c.l.b16 %v662
      %v727 = vunpack.c.l.b16 %v663
      %v728 = vunpack.c.l.b16 %v664
      %v729 = vunpack.c.l.b16 %v665
      %v730 = vpack.c.b16 %v723, %v722
      %v731 = vpack.c.b16 %v725, %v724
      %v732 = vpack.c.b16 %v727, %v726
      %v733 = vpack.c.b16 %v729, %v728
      %vm738 = vcmask 523264
      %v740 = vsel %vm738, %v698, 0
      %v743 = vsel %vm738, %v699, 0
      %v746 = vsel %vm738, %v700, 0
      %v749 = vsel %vm738, %v701, 0
      %v752 = vsel %vm738, %v702, 0
      %v755 = vsel %vm738, %v703, 0
      %v758 = vsel %vm738, %v704, 0
      %v761 = vsel %vm738, %v705, 0
      %v764 = vsel %vm738, %v706, 0
      %v767 = vsel %vm738, %v707, 0
      %v770 = vsel %vm738, %v708, 0
      %v773 = vsel %vm738, %v709, 0
      %v776 = vsel %vm738, %v710, 0
      %v779 = vsel %vm738, %v711, 0
      %v782 = vsel %vm738, %v712, 0
      %v785 = vsel %vm738, %v713, 0
      %787 = vmatpush.bf16.msra.mxu0 0
      %788 = vmatpush.bf16.msra.mxu0 0
      %789 = vmatpush.bf16.msra.mxu0 0
      %790 = vmatpush.bf16.msra.mxu0 0
      %791 = vmatpush.bf16.msra.mxu0 %v733
      %792 = vmatpush.bf16.msra.mxu0 %v732
      %793 = vmatpush.bf16.msra.mxu0 %v731
      %794 = vmatpush.bf16.msra.mxu0 %v730
      %795 = vmatmul.bf16.gmra.mxu0 %v740
      %v796 = vpop.f32.mrf.mxu0
      %v797 = vadd.f32 0.0, %v796
      %v798 = vpop.f32.mrf.mxu0
      %v799 = vadd.f32 0.0, %v798
      %800 = vmatmul.bf16.gmra.mxu0 %v743
      %v801 = vpop.f32.mrf.mxu0
      %v802 = vadd.f32 0.0, %v801
      %v803 = vpop.f32.mrf.mxu0
      %v804 = vadd.f32 0.0, %v803
      %805 = vmatmul.bf16.gmra.mxu0 %v746
      %v806 = vpop.f32.mrf.mxu0
      %v807 = vadd.f32 0.0, %v806
      %v808 = vpop.f32.mrf.mxu0
      %v809 = vadd.f32 0.0, %v808
      %810 = vmatmul.bf16.gmra.mxu0 %v749
      %v811 = vpop.f32.mrf.mxu0
      %v812 = vadd.f32 0.0, %v811
      %v813 = vpop.f32.mrf.mxu0
      %v814 = vadd.f32 0.0, %v813
      %815 = vmatmul.bf16.gmra.mxu0 %v752
      %v816 = vpop.f32.mrf.mxu0
      %v817 = vadd.f32 0.0, %v816
      %v818 = vpop.f32.mrf.mxu0
      %v819 = vadd.f32 0.0, %v818
      %820 = vmatmul.bf16.gmra.mxu0 %v755
      %v821 = vpop.f32.mrf.mxu0
      %v822 = vadd.f32 0.0, %v821
      %v823 = vpop.f32.mrf.mxu0
      %v824 = vadd.f32 0.0, %v823
      %825 = vmatmul.bf16.gmra.mxu0 %v758
      %v826 = vpop.f32.mrf.mxu0
      %v827 = vadd.f32 0.0, %v826
      %v828 = vpop.f32.mrf.mxu0
      %v829 = vadd.f32 0.0, %v828
      %830 = vmatmul.bf16.gmra.mxu0 %v761
      %v831 = vpop.f32.mrf.mxu0
      %v832 = vadd.f32 0.0, %v831
      %v833 = vpop.f32.mrf.mxu0
      %v834 = vadd.f32 0.0, %v833
      %835 = vmatmul.bf16.gmra.mxu0 %v764
      %v836 = vpop.f32.mrf.mxu0
      %v837 = vadd.f32 0.0, %v836
      %v838 = vpop.f32.mrf.mxu0
      %v839 = vadd.f32 0.0, %v838
      %840 = vmatmul.bf16.gmra.mxu0 %v767
      %v841 = vpop.f32.mrf.mxu0
      %v842 = vadd.f32 0.0, %v841
      %v843 = vpop.f32.mrf.mxu0
      %v844 = vadd.f32 0.0, %v843
      %845 = vmatmul.bf16.gmra.mxu0 %v770
      %v846 = vpop.f32.mrf.mxu0
      %v847 = vadd.f32 0.0, %v846
      %v848 = vpop.f32.mrf.mxu0
      %v849 = vadd.f32 0.0, %v848
      %850 = vmatmul.bf16.gmra.mxu0 %v773
      %v851 = vpop.f32.mrf.mxu0
      %v852 = vadd.f32 0.0, %v851
      %v853 = vpop.f32.mrf.mxu0
      %v854 = vadd.f32 0.0, %v853
      %855 = vmatmul.bf16.gmra.mxu0 %v776
      %v856 = vpop.f32.mrf.mxu0
      %v857 = vadd.f32 0.0, %v856
      %v858 = vpop.f32.mrf.mxu0
      %v859 = vadd.f32 0.0, %v858
      %860 = vmatmul.bf16.gmra.mxu0 %v779
      %v861 = vpop.f32.mrf.mxu0
      %v862 = vadd.f32 0.0, %v861
      %v863 = vpop.f32.mrf.mxu0
      %v864 = vadd.f32 0.0, %v863
      %865 = vmatmul.bf16.gmra.mxu0 %v782
      %v866 = vpop.f32.mrf.mxu0
      %v867 = vadd.f32 0.0, %v866
      %v868 = vpop.f32.mrf.mxu0
      %v869 = vadd.f32 0.0, %v868
      %870 = vmatmul.bf16.gmra.mxu0 %v785
      %v871 = vpop.f32.mrf.mxu0
      %v872 = vadd.f32 0.0, %v871
      %v873 = vpop.f32.mrf.mxu0
      %v874 = vadd.f32 0.0, %v873
      %875 = vdwg.mxu0
      %v908 = vunpack.c.l.b16 %v208
      %v909 = vunpack.c.l.b16 %v209
      %v910 = vunpack.c.l.b16 %v211
      %v911 = vunpack.c.l.b16 %v212
      %v912 = vunpack.c.l.b16 %v214
      %v913 = vunpack.c.l.b16 %v215
      %v914 = vunpack.c.l.b16 %v217
      %v915 = vunpack.c.l.b16 %v218
      %v916 = vunpack.c.l.b16 %v220
      %v917 = vunpack.c.l.b16 %v221
      %v918 = vunpack.c.l.b16 %v223
      %v919 = vunpack.c.l.b16 %v224
      %v920 = vunpack.c.l.b16 %v226
      %v921 = vunpack.c.l.b16 %v227
      %v922 = vunpack.c.l.b16 %v229
      %v923 = vunpack.c.l.b16 %v230
      %v924 = vunpack.c.l.b16 %v232
      %v925 = vunpack.c.l.b16 %v233
      %v926 = vunpack.c.l.b16 %v235
      %v927 = vunpack.c.l.b16 %v236
      %v928 = vunpack.c.l.b16 %v238
      %v929 = vunpack.c.l.b16 %v239
      %v930 = vunpack.c.l.b16 %v241
      %v931 = vunpack.c.l.b16 %v242
      %v932 = vunpack.c.l.b16 %v244
      %v933 = vunpack.c.l.b16 %v245
      %v934 = vunpack.c.l.b16 %v247
      %v935 = vunpack.c.l.b16 %v248
      %v936 = vunpack.c.l.b16 %v250
      %v937 = vunpack.c.l.b16 %v251
      %v938 = vunpack.c.l.b16 %v253
      %v939 = vunpack.c.l.b16 %v254
      %v940 = vpack.c.b16 %v909, %v908
      %v941 = vpack.c.b16 %v911, %v910
      %v942 = vpack.c.b16 %v913, %v912
      %v943 = vpack.c.b16 %v915, %v914
      %v944 = vpack.c.b16 %v917, %v916
      %v945 = vpack.c.b16 %v919, %v918
      %v946 = vpack.c.b16 %v921, %v920
      %v947 = vpack.c.b16 %v923, %v922
      %v948 = vpack.c.b16 %v925, %v924
      %v949 = vpack.c.b16 %v927, %v926
      %v950 = vpack.c.b16 %v929, %v928
      %v951 = vpack.c.b16 %v931, %v930
      %v952 = vpack.c.b16 %v933, %v932
      %v953 = vpack.c.b16 %v935, %v934
      %v954 = vpack.c.b16 %v937, %v936
      %v955 = vpack.c.b16 %v939, %v938
      %v964 = vunpack.c.l.b16 %v262
      %v965 = vunpack.c.l.b16 %v263
      %v966 = vunpack.c.l.b16 %v264
      %v967 = vunpack.c.l.b16 %v265
      %v968 = vunpack.c.l.b16 %v266
      %v969 = vunpack.c.l.b16 %v267
      %v970 = vunpack.c.l.b16 %v268
      %v971 = vunpack.c.l.b16 %v269
      %v972 = vpack.c.b16 %v965, %v964
      %v973 = vpack.c.b16 %v967, %v966
      %v974 = vpack.c.b16 %v969, %v968
      %v975 = vpack.c.b16 %v971, %v970
      %v981 = vsel %vm738, %v940, 0
      %v984 = vsel %vm738, %v941, 0
      %v987 = vsel %vm738, %v942, 0
      %v990 = vsel %vm738, %v943, 0
      %v993 = vsel %vm738, %v944, 0
      %v996 = vsel %vm738, %v945, 0
      %v999 = vsel %vm738, %v946, 0
      %v1002 = vsel %vm738, %v947, 0
      %v1005 = vsel %vm738, %v948, 0
      %v1008 = vsel %vm738, %v949, 0
      %v1011 = vsel %vm738, %v950, 0
      %v1014 = vsel %vm738, %v951, 0
      %v1017 = vsel %vm738, %v952, 0
      %v1020 = vsel %vm738, %v953, 0
      %v1023 = vsel %vm738, %v954, 0
      %v1026 = vsel %vm738, %v955, 0
      %1028 = vmatpush.bf16.msra.mxu0 0
      %1029 = vmatpush.bf16.msra.mxu0 0
      %1030 = vmatpush.bf16.msra.mxu0 0
      %1031 = vmatpush.bf16.msra.mxu0 0
      %1032 = vmatpush.bf16.msra.mxu0 %v975
      %1033 = vmatpush.bf16.msra.mxu0 %v974
      %1034 = vmatpush.bf16.msra.mxu0 %v973
      %1035 = vmatpush.bf16.msra.mxu0 %v972
      %1036 = vmatmul.bf16.gmra.mxu0 %v981
      %v1037 = vpop.f32.mrf.mxu0
      %v1038 = vadd.f32 %v797, %v1037
      %v1039 = vpop.f32.mrf.mxu0
      %v1040 = vadd.f32 %v799, %v1039
      %1041 = vmatmul.bf16.gmra.mxu0 %v984
      %v1042 = vpop.f32.mrf.mxu0
      %v1043 = vadd.f32 %v802, %v1042
      %v1044 = vpop.f32.mrf.mxu0
      %v1045 = vadd.f32 %v804, %v1044
      %1046 = vmatmul.bf16.gmra.mxu0 %v987
      %v1047 = vpop.f32.mrf.mxu0
      %v1048 = vadd.f32 %v807, %v1047
      %v1049 = vpop.f32.mrf.mxu0
      %v1050 = vadd.f32 %v809, %v1049
      %1051 = vmatmul.bf16.gmra.mxu0 %v990
      %v1052 = vpop.f32.mrf.mxu0
      %v1053 = vadd.f32 %v812, %v1052
      %v1054 = vpop.f32.mrf.mxu0
      %v1055 = vadd.f32 %v814, %v1054
      %1056 = vmatmul.bf16.gmra.mxu0 %v993
      %v1057 = vpop.f32.mrf.mxu0
      %v1058 = vadd.f32 %v817, %v1057
      %v1059 = vpop.f32.mrf.mxu0
      %v1060 = vadd.f32 %v819, %v1059
      %1061 = vmatmul.bf16.gmra.mxu0 %v996
      %v1062 = vpop.f32.mrf.mxu0
      %v1063 = vadd.f32 %v822, %v1062
      %v1064 = vpop.f32.mrf.mxu0
      %v1065 = vadd.f32 %v824, %v1064
      %1066 = vmatmul.bf16.gmra.mxu0 %v999
      %v1067 = vpop.f32.mrf.mxu0
      %v1068 = vadd.f32 %v827, %v1067
      %v1069 = vpop.f32.mrf.mxu0
      %v1070 = vadd.f32 %v829, %v1069
      %1071 = vmatmul.bf16.gmra.mxu0 %v1002
      %v1072 = vpop.f32.mrf.mxu0
      %v1073 = vadd.f32 %v832, %v1072
      %v1074 = vpop.f32.mrf.mxu0
      %v1075 = vadd.f32 %v834, %v1074
      %1076 = vmatmul.bf16.gmra.mxu0 %v1005
      %v1077 = vpop.f32.mrf.mxu0
      %v1078 = vadd.f32 %v837, %v1077
      %v1079 = vpop.f32.mrf.mxu0
      %v1080 = vadd.f32 %v839, %v1079
      %1081 = vmatmul.bf16.gmra.mxu0 %v1008
      %v1082 = vpop.f32.mrf.mxu0
      %v1083 = vadd.f32 %v842, %v1082
      %v1084 = vpop.f32.mrf.mxu0
      %v1085 = vadd.f32 %v844, %v1084
      %1086 = vmatmul.bf16.gmra.mxu0 %v1011
      %v1087 = vpop.f32.mrf.mxu0
      %v1088 = vadd.f32 %v847, %v1087
      %v1089 = vpop.f32.mrf.mxu0
      %v1090 = vadd.f32 %v849, %v1089
      %1091 = vmatmul.bf16.gmra.mxu0 %v1014
      %v1092 = vpop.f32.mrf.mxu0
      %v1093 = vadd.f32 %v852, %v1092
      %v1094 = vpop.f32.mrf.mxu0
      %v1095 = vadd.f32 %v854, %v1094
      %1096 = vmatmul.bf16.gmra.mxu0 %v1017
      %v1097 = vpop.f32.mrf.mxu0
      %v1098 = vadd.f32 %v857, %v1097
      %v1099 = vpop.f32.mrf.mxu0
      %v1100 = vadd.f32 %v859, %v1099
      %1101 = vmatmul.bf16.gmra.mxu0 %v1020
      %v1102 = vpop.f32.mrf.mxu0
      %v1103 = vadd.f32 %v862, %v1102
      %v1104 = vpop.f32.mrf.mxu0
      %v1105 = vadd.f32 %v864, %v1104
      %1106 = vmatmul.bf16.gmra.mxu0 %v1023
      %v1107 = vpop.f32.mrf.mxu0
      %v1108 = vadd.f32 %v867, %v1107
      %v1109 = vpop.f32.mrf.mxu0
      %v1110 = vadd.f32 %v869, %v1109
      %1111 = vmatmul.bf16.gmra.mxu0 %v1026
      %v1112 = vpop.f32.mrf.mxu0
      %v1113 = vadd.f32 %v872, %v1112
      %v1114 = vpop.f32.mrf.mxu0
      %v1115 = vadd.f32 %v874, %v1114
      %1116 = vdwg.mxu0
      %vm1133 = vcmask 1042432
      %vm1134 = vcmask 1046532
      %vm1135 = vmor %vm1133, %vm1134
      %v1136 = vrot.slane %v208, 5
      %v1137 = vrot.slane %v1136, 4
      %v1138 = vrot.slane %v209, 5
      %v1139 = vsel %vm1135, %v1137, %v1138
      %v1140 = vrot.slane %v1138, 4
      %v1141 = vrot.slane %v210, 5
      %v1142 = vsel %vm1135, %v1140, %v1141
      %v1143 = vrot.slane %v211, 5
      %v1144 = vrot.slane %v1143, 4
      %v1145 = vrot.slane %v212, 5
      %v1146 = vsel %vm1135, %v1144, %v1145
      %v1147 = vrot.slane %v1145, 4
      %v1148 = vrot.slane %v213, 5
      %v1149 = vsel %vm1135, %v1147, %v1148
      %v1150 = vrot.slane %v214, 5
      %v1151 = vrot.slane %v1150, 4
      %v1152 = vrot.slane %v215, 5
      %v1153 = vsel %vm1135, %v1151, %v1152
      %v1154 = vrot.slane %v1152, 4
      %v1155 = vrot.slane %v216, 5
      %v1156 = vsel %vm1135, %v1154, %v1155
      %v1157 = vrot.slane %v217, 5
      %v1158 = vrot.slane %v1157, 4
      %v1159 = vrot.slane %v218, 5
      %v1160 = vsel %vm1135, %v1158, %v1159
      %v1161 = vrot.slane %v1159, 4
      %v1162 = vrot.slane %v219, 5
      %v1163 = vsel %vm1135, %v1161, %v1162
      %v1164 = vrot.slane %v220, 5
      %v1165 = vrot.slane %v1164, 4
      %v1166 = vrot.slane %v221, 5
      %v1167 = vsel %vm1135, %v1165, %v1166
      %v1168 = vrot.slane %v1166, 4
      %v1169 = vrot.slane %v222, 5
      %v1170 = vsel %vm1135, %v1168, %v1169
      %v1171 = vrot.slane %v223, 5
      %v1172 = vrot.slane %v1171, 4
      %v1173 = vrot.slane %v224, 5
      %v1174 = vsel %vm1135, %v1172, %v1173
      %v1175 = vrot.slane %v1173, 4
      %v1176 = vrot.slane %v225, 5
      %v1177 = vsel %vm1135, %v1175, %v1176
      %v1178 = vrot.slane %v226, 5
      %v1179 = vrot.slane %v1178, 4
      %v1180 = vrot.slane %v227, 5
      %v1181 = vsel %vm1135, %v1179, %v1180
      %v1182 = vrot.slane %v1180, 4
      %v1183 = vrot.slane %v228, 5
      %v1184 = vsel %vm1135, %v1182, %v1183
      %v1185 = vrot.slane %v229, 5
      %v1186 = vrot.slane %v1185, 4
      %v1187 = vrot.slane %v230, 5
      %v1188 = vsel %vm1135, %v1186, %v1187
      %v1189 = vrot.slane %v1187, 4
      %v1190 = vrot.slane %v231, 5
      %v1191 = vsel %vm1135, %v1189, %v1190
      %v1192 = vrot.slane %v232, 5
      %v1193 = vrot.slane %v1192, 4
      %v1194 = vrot.slane %v233, 5
      %v1195 = vsel %vm1135, %v1193, %v1194
      %v1196 = vrot.slane %v1194, 4
      %v1197 = vrot.slane %v234, 5
      %v1198 = vsel %vm1135, %v1196, %v1197
      %v1199 = vrot.slane %v235, 5
      %v1200 = vrot.slane %v1199, 4
      %v1201 = vrot.slane %v236, 5
      %v1202 = vsel %vm1135, %v1200, %v1201
      %v1203 = vrot.slane %v1201, 4
      %v1204 = vrot.slane %v237, 5
      %v1205 = vsel %vm1135, %v1203, %v1204
      %v1206 = vrot.slane %v238, 5
      %v1207 = vrot.slane %v1206, 4
      %v1208 = vrot.slane %v239, 5
      %v1209 = vsel %vm1135, %v1207, %v1208
      %v1210 = vrot.slane %v1208, 4
      %v1211 = vrot.slane %v240, 5
      %v1212 = vsel %vm1135, %v1210, %v1211
      %v1213 = vrot.slane %v241, 5
      %v1214 = vrot.slane %v1213, 4
      %v1215 = vrot.slane %v242, 5
      %v1216 = vsel %vm1135, %v1214, %v1215
      %v1217 = vrot.slane %v1215, 4
      %v1218 = vrot.slane %v243, 5
      %v1219 = vsel %vm1135, %v1217, %v1218
      %v1220 = vrot.slane %v244, 5
      %v1221 = vrot.slane %v1220, 4
      %v1222 = vrot.slane %v245, 5
      %v1223 = vsel %vm1135, %v1221, %v1222
      %v1224 = vrot.slane %v1222, 4
      %v1225 = vrot.slane %v246, 5
      %v1226 = vsel %vm1135, %v1224, %v1225
      %v1227 = vrot.slane %v247, 5
      %v1228 = vrot.slane %v1227, 4
      %v1229 = vrot.slane %v248, 5
      %v1230 = vsel %vm1135, %v1228, %v1229
      %v1231 = vrot.slane %v1229, 4
      %v1232 = vrot.slane %v249, 5
      %v1233 = vsel %vm1135, %v1231, %v1232
      %v1234 = vrot.slane %v250, 5
      %v1235 = vrot.slane %v1234, 4
      %v1236 = vrot.slane %v251, 5
      %v1237 = vsel %vm1135, %v1235, %v1236
      %v1238 = vrot.slane %v1236, 4
      %v1239 = vrot.slane %v252, 5
      %v1240 = vsel %vm1135, %v1238, %v1239
      %v1241 = vrot.slane %v253, 5
      %v1242 = vrot.slane %v1241, 4
      %v1243 = vrot.slane %v254, 5
      %v1244 = vsel %vm1135, %v1242, %v1243
      %v1245 = vrot.slane %v1243, 4
      %v1246 = vrot.slane %v255, 5
      %v1247 = vsel %vm1135, %v1245, %v1246
      %s1248 = scalar_lea.vmem %s1, 64
      %v1249 = vld [vmem:[%s1248] sm:$0xf]
      %v1250 = vld [vmem:[%s1248 + $0x4] sm:$0xf]
      %v1251 = vld [vmem:[%s1248 + $0x8] sm:$0xf]
      %v1252 = vld [vmem:[%s1248 + $0xc] sm:$0xf]
      %v1253 = vld [vmem:[%s1248 + $0x10] sm:$0xf]
      %v1254 = vld [vmem:[%s1248 + $0x14] sm:$0xf]
      %v1255 = vld [vmem:[%s1248 + $0x18] sm:$0xf]
      %v1256 = vld [vmem:[%s1248 + $0x1c] sm:$0xf]
      %v1257 = vunpack.c.l.b16 %v1139
      %v1258 = vunpack.c.l.b16 %v1142
      %v1259 = vunpack.c.l.b16 %v1146
      %v1260 = vunpack.c.l.b16 %v1149
      %v1261 = vunpack.c.l.b16 %v1153
      %v1262 = vunpack.c.l.b16 %v1156
      %v1263 = vunpack.c.l.b16 %v1160
      %v1264 = vunpack.c.l.b16 %v1163
      %v1265 = vunpack.c.l.b16 %v1167
      %v1266 = vunpack.c.l.b16 %v1170
      %v1267 = vunpack.c.l.b16 %v1174
      %v1268 = vunpack.c.l.b16 %v1177
      %v1269 = vunpack.c.l.b16 %v1181
      %v1270 = vunpack.c.l.b16 %v1184
      %v1271 = vunpack.c.l.b16 %v1188
      %v1272 = vunpack.c.l.b16 %v1191
      %v1273 = vunpack.c.l.b16 %v1195
      %v1274 = vunpack.c.l.b16 %v1198
      %v1275 = vunpack.c.l.b16 %v1202
      %v1276 = vunpack.c.l.b16 %v1205
      %v1277 = vunpack.c.l.b16 %v1209
      %v1278 = vunpack.c.l.b16 %v1212
      %v1279 = vunpack.c.l.b16 %v1216
      %v1280 = vunpack.c.l.b16 %v1219
      %v1281 = vunpack.c.l.b16 %v1223
      %v1282 = vunpack.c.l.b16 %v1226
      %v1283 = vunpack.c.l.b16 %v1230
      %v1284 = vunpack.c.l.b16 %v1233
      %v1285 = vunpack.c.l.b16 %v1237
      %v1286 = vunpack.c.l.b16 %v1240
      %v1287 = vunpack.c.l.b16 %v1244
      %v1288 = vunpack.c.l.b16 %v1247
      %v1289 = vpack.c.b16 %v1258, %v1257
      %v1290 = vpack.c.b16 %v1260, %v1259
      %v1291 = vpack.c.b16 %v1262, %v1261
      %v1292 = vpack.c.b16 %v1264, %v1263
      %v1293 = vpack.c.b16 %v1266, %v1265
      %v1294 = vpack.c.b16 %v1268, %v1267
      %v1295 = vpack.c.b16 %v1270, %v1269
      %v1296 = vpack.c.b16 %v1272, %v1271
      %v1297 = vpack.c.b16 %v1274, %v1273
      %v1298 = vpack.c.b16 %v1276, %v1275
      %v1299 = vpack.c.b16 %v1278, %v1277
      %v1300 = vpack.c.b16 %v1280, %v1279
      %v1301 = vpack.c.b16 %v1282, %v1281
      %v1302 = vpack.c.b16 %v1284, %v1283
      %v1303 = vpack.c.b16 %v1286, %v1285
      %v1304 = vpack.c.b16 %v1288, %v1287
      %v1313 = vunpack.c.l.b16 %v1249
      %v1314 = vunpack.c.l.b16 %v1250
      %v1315 = vunpack.c.l.b16 %v1251
      %v1316 = vunpack.c.l.b16 %v1252
      %v1317 = vunpack.c.l.b16 %v1253
      %v1318 = vunpack.c.l.b16 %v1254
      %v1319 = vunpack.c.l.b16 %v1255
      %v1320 = vunpack.c.l.b16 %v1256
      %v1321 = vpack.c.b16 %v1314, %v1313
      %v1322 = vpack.c.b16 %v1316, %v1315
      %v1323 = vpack.c.b16 %v1318, %v1317
      %v1324 = vpack.c.b16 %v1320, %v1319
      %v1330 = vsel %vm738, %v1289, 0
      %v1333 = vsel %vm738, %v1290, 0
      %v1336 = vsel %vm738, %v1291, 0
      %v1339 = vsel %vm738, %v1292, 0
      %v1342 = vsel %vm738, %v1293, 0
      %v1345 = vsel %vm738, %v1294, 0
      %v1348 = vsel %vm738, %v1295, 0
      %v1351 = vsel %vm738, %v1296, 0
      %v1354 = vsel %vm738, %v1297, 0
      %v1357 = vsel %vm738, %v1298, 0
      %v1360 = vsel %vm738, %v1299, 0
      %v1363 = vsel %vm738, %v1300, 0
      %v1366 = vsel %vm738, %v1301, 0
      %v1369 = vsel %vm738, %v1302, 0
      %v1372 = vsel %vm738, %v1303, 0
      %v1375 = vsel %vm738, %v1304, 0
      %1377 = vmatpush.bf16.msra.mxu0 0
      %1378 = vmatpush.bf16.msra.mxu0 0
      %1379 = vmatpush.bf16.msra.mxu0 0
      %1380 = vmatpush.bf16.msra.mxu0 0
      %1381 = vmatpush.bf16.msra.mxu0 %v1324
      %1382 = vmatpush.bf16.msra.mxu0 %v1323
      %1383 = vmatpush.bf16.msra.mxu0 %v1322
      %1384 = vmatpush.bf16.msra.mxu0 %v1321
      %1385 = vmatmul.bf16.gmra.mxu0 %v1330
      %v1386 = vpop.f32.mrf.mxu0
      %v1387 = vadd.f32 0.0, %v1386
      %v1388 = vpop.f32.mrf.mxu0
      %v1389 = vadd.f32 0.0, %v1388
      %1390 = vmatmul.bf16.gmra.mxu0 %v1333
      %v1391 = vpop.f32.mrf.mxu0
      %v1392 = vadd.f32 0.0, %v1391
      %v1393 = vpop.f32.mrf.mxu0
      %v1394 = vadd.f32 0.0, %v1393
      %1395 = vmatmul.bf16.gmra.mxu0 %v1336
      %v1396 = vpop.f32.mrf.mxu0
      %v1397 = vadd.f32 0.0, %v1396
      %v1398 = vpop.f32.mrf.mxu0
      %v1399 = vadd.f32 0.0, %v1398
      %1400 = vmatmul.bf16.gmra.mxu0 %v1339
      %v1401 = vpop.f32.mrf.mxu0
      %v1402 = vadd.f32 0.0, %v1401
      %v1403 = vpop.f32.mrf.mxu0
      %v1404 = vadd.f32 0.0, %v1403
      %1405 = vmatmul.bf16.gmra.mxu0 %v1342
      %v1406 = vpop.f32.mrf.mxu0
      %v1407 = vadd.f32 0.0, %v1406
      %v1408 = vpop.f32.mrf.mxu0
      %v1409 = vadd.f32 0.0, %v1408
      %1410 = vmatmul.bf16.gmra.mxu0 %v1345
      %v1411 = vpop.f32.mrf.mxu0
      %v1412 = vadd.f32 0.0, %v1411
      %v1413 = vpop.f32.mrf.mxu0
      %v1414 = vadd.f32 0.0, %v1413
      %1415 = vmatmul.bf16.gmra.mxu0 %v1348
      %v1416 = vpop.f32.mrf.mxu0
      %v1417 = vadd.f32 0.0, %v1416
      %v1418 = vpop.f32.mrf.mxu0
      %v1419 = vadd.f32 0.0, %v1418
      %1420 = vmatmul.bf16.gmra.mxu0 %v1351
      %v1421 = vpop.f32.mrf.mxu0
      %v1422 = vadd.f32 0.0, %v1421
      %v1423 = vpop.f32.mrf.mxu0
      %v1424 = vadd.f32 0.0, %v1423
      %1425 = vmatmul.bf16.gmra.mxu0 %v1354
      %v1426 = vpop.f32.mrf.mxu0
      %v1427 = vadd.f32 0.0, %v1426
      %v1428 = vpop.f32.mrf.mxu0
      %v1429 = vadd.f32 0.0, %v1428
      %1430 = vmatmul.bf16.gmra.mxu0 %v1357
      %v1431 = vpop.f32.mrf.mxu0
      %v1432 = vadd.f32 0.0, %v1431
      %v1433 = vpop.f32.mrf.mxu0
      %v1434 = vadd.f32 0.0, %v1433
      %1435 = vmatmul.bf16.gmra.mxu0 %v1360
      %v1436 = vpop.f32.mrf.mxu0
      %v1437 = vadd.f32 0.0, %v1436
      %v1438 = vpop.f32.mrf.mxu0
      %v1439 = vadd.f32 0.0, %v1438
      %1440 = vmatmul.bf16.gmra.mxu0 %v1363
      %v1441 = vpop.f32.mrf.mxu0
      %v1442 = vadd.f32 0.0, %v1441
      %v1443 = vpop.f32.mrf.mxu0
      %v1444 = vadd.f32 0.0, %v1443
      %1445 = vmatmul.bf16.gmra.mxu0 %v1366
      %v1446 = vpop.f32.mrf.mxu0
      %v1447 = vadd.f32 0.0, %v1446
      %v1448 = vpop.f32.mrf.mxu0
      %v1449 = vadd.f32 0.0, %v1448
      %1450 = vmatmul.bf16.gmra.mxu0 %v1369
      %v1451 = vpop.f32.mrf.mxu0
      %v1452 = vadd.f32 0.0, %v1451
      %v1453 = vpop.f32.mrf.mxu0
      %v1454 = vadd.f32 0.0, %v1453
      %1455 = vmatmul.bf16.gmra.mxu0 %v1372
      %v1456 = vpop.f32.mrf.mxu0
      %v1457 = vadd.f32 0.0, %v1456
      %v1458 = vpop.f32.mrf.mxu0
      %v1459 = vadd.f32 0.0, %v1458
      %1460 = vmatmul.bf16.gmra.mxu0 %v1375
      %v1461 = vpop.f32.mrf.mxu0
      %v1462 = vadd.f32 0.0, %v1461
      %v1463 = vpop.f32.mrf.mxu0
      %v1464 = vadd.f32 0.0, %v1463
      %1465 = vdwg.mxu0
      %v1466 = vadd.f32 %v1038, %v1387
      %v1467 = vadd.f32 %v1040, %v1389
      %v1468 = vadd.f32 %v1043, %v1392
      %v1469 = vadd.f32 %v1045, %v1394
      %v1470 = vadd.f32 %v1048, %v1397
      %v1471 = vadd.f32 %v1050, %v1399
      %v1472 = vadd.f32 %v1053, %v1402
      %v1473 = vadd.f32 %v1055, %v1404
      %v1474 = vadd.f32 %v1058, %v1407
      %v1475 = vadd.f32 %v1060, %v1409
      %v1476 = vadd.f32 %v1063, %v1412
      %v1477 = vadd.f32 %v1065, %v1414
      %v1478 = vadd.f32 %v1068, %v1417
      %v1479 = vadd.f32 %v1070, %v1419
      %v1480 = vadd.f32 %v1073, %v1422
      %v1481 = vadd.f32 %v1075, %v1424
      %v1482 = vadd.f32 %v1078, %v1427
      %v1483 = vadd.f32 %v1080, %v1429
      %v1484 = vadd.f32 %v1083, %v1432
      %v1485 = vadd.f32 %v1085, %v1434
      %v1486 = vadd.f32 %v1088, %v1437
      %v1487 = vadd.f32 %v1090, %v1439
      %v1488 = vadd.f32 %v1093, %v1442
      %v1489 = vadd.f32 %v1095, %v1444
      %v1490 = vadd.f32 %v1098, %v1447
      %v1491 = vadd.f32 %v1100, %v1449
      %v1492 = vadd.f32 %v1103, %v1452
      %v1493 = vadd.f32 %v1105, %v1454
      %v1494 = vadd.f32 %v1108, %v1457
      %v1495 = vadd.f32 %v1110, %v1459
      %v1496 = vadd.f32 %v1113, %v1462
      %v1497 = vadd.f32 %v1115, %v1464
      %s1498 = scalar_lea.vmem %s1, 96
      %v1499 = vld [vmem:[%s1498] sm:$0xf]
      %v1500 = vld [vmem:[%s1498 + $0x4] sm:$0xf]
      %v1501 = vld [vmem:[%s1498 + $0x8] sm:$0xf]
      %v1502 = vld [vmem:[%s1498 + $0xc] sm:$0xf]
      %v1503 = vld [vmem:[%s1498 + $0x10] sm:$0xf]
      %v1504 = vld [vmem:[%s1498 + $0x14] sm:$0xf]
      %v1505 = vld [vmem:[%s1498 + $0x18] sm:$0xf]
      %v1506 = vld [vmem:[%s1498 + $0x1c] sm:$0xf]
      %v1509 = vunpack.c.l.b16 %v256
      %v1510 = vunpack.c.l.b16 %v257
      %v1511 = vpack.c.b16 %v1510, %v1509
      %v1520 = vunpack.c.l.b16 %v1499
      %v1521 = vunpack.c.l.b16 %v1500
      %v1522 = vunpack.c.l.b16 %v1501
      %v1523 = vunpack.c.l.b16 %v1502
      %v1524 = vunpack.c.l.b16 %v1503
      %v1525 = vunpack.c.l.b16 %v1504
      %v1526 = vunpack.c.l.b16 %v1505
      %v1527 = vunpack.c.l.b16 %v1506
      %v1528 = vpack.c.b16 %v1521, %v1520
      %v1529 = vpack.c.b16 %v1523, %v1522
      %v1530 = vpack.c.b16 %v1525, %v1524
      %v1531 = vpack.c.b16 %v1527, %v1526
      %v1537 = vsel %vm738, %v1511, 0
      %1539 = vmatpush.bf16.msra.mxu0 0
      %1540 = vmatpush.bf16.msra.mxu0 0
      %1541 = vmatpush.bf16.msra.mxu0 0
      %1542 = vmatpush.bf16.msra.mxu0 0
      %1543 = vmatpush.bf16.msra.mxu0 %v1531
      %1544 = vmatpush.bf16.msra.mxu0 %v1530
      %1545 = vmatpush.bf16.msra.mxu0 %v1529
      %1546 = vmatpush.bf16.msra.mxu0 %v1528
      %1547 = vmatmul.bf16.gmra.mxu0 %v984
      %v1548 = vpop.f32.mrf.mxu0
      %v1549 = vadd.f32 0.0, %v1548
      %v1550 = vpop.f32.mrf.mxu0
      %v1551 = vadd.f32 0.0, %v1550
      %1552 = vmatmul.bf16.gmra.mxu0 %v987
      %v1553 = vpop.f32.mrf.mxu0
      %v1554 = vadd.f32 0.0, %v1553
      %v1555 = vpop.f32.mrf.mxu0
      %v1556 = vadd.f32 0.0, %v1555
      %1557 = vmatmul.bf16.gmra.mxu0 %v990
      %v1558 = vpop.f32.mrf.mxu0
      %v1559 = vadd.f32 0.0, %v1558
      %v1560 = vpop.f32.mrf.mxu0
      %v1561 = vadd.f32 0.0, %v1560
      %1562 = vmatmul.bf16.gmra.mxu0 %v993
      %v1563 = vpop.f32.mrf.mxu0
      %v1564 = vadd.f32 0.0, %v1563
      %v1565 = vpop.f32.mrf.mxu0
      %v1566 = vadd.f32 0.0, %v1565
      %1567 = vmatmul.bf16.gmra.mxu0 %v996
      %v1568 = vpop.f32.mrf.mxu0
      %v1569 = vadd.f32 0.0, %v1568
      %v1570 = vpop.f32.mrf.mxu0
      %v1571 = vadd.f32 0.0, %v1570
      %1572 = vmatmul.bf16.gmra.mxu0 %v999
      %v1573 = vpop.f32.mrf.mxu0
      %v1574 = vadd.f32 0.0, %v1573
      %v1575 = vpop.f32.mrf.mxu0
      %v1576 = vadd.f32 0.0, %v1575
      %1577 = vmatmul.bf16.gmra.mxu0 %v1002
      %v1578 = vpop.f32.mrf.mxu0
      %v1579 = vadd.f32 0.0, %v1578
      %v1580 = vpop.f32.mrf.mxu0
      %v1581 = vadd.f32 0.0, %v1580
      %1582 = vmatmul.bf16.gmra.mxu0 %v1005
      %v1583 = vpop.f32.mrf.mxu0
      %v1584 = vadd.f32 0.0, %v1583
      %v1585 = vpop.f32.mrf.mxu0
      %v1586 = vadd.f32 0.0, %v1585
      %1587 = vmatmul.bf16.gmra.mxu0 %v1008
      %v1588 = vpop.f32.mrf.mxu0
      %v1589 = vadd.f32 0.0, %v1588
      %v1590 = vpop.f32.mrf.mxu0
      %v1591 = vadd.f32 0.0, %v1590
      %1592 = vmatmul.bf16.gmra.mxu0 %v1011
      %v1593 = vpop.f32.mrf.mxu0
      %v1594 = vadd.f32 0.0, %v1593
      %v1595 = vpop.f32.mrf.mxu0
      %v1596 = vadd.f32 0.0, %v1595
      %1597 = vmatmul.bf16.gmra.mxu0 %v1014
      %v1598 = vpop.f32.mrf.mxu0
      %v1599 = vadd.f32 0.0, %v1598
      %v1600 = vpop.f32.mrf.mxu0
      %v1601 = vadd.f32 0.0, %v1600
      %1602 = vmatmul.bf16.gmra.mxu0 %v1017
      %v1603 = vpop.f32.mrf.mxu0
      %v1604 = vadd.f32 0.0, %v1603
      %v1605 = vpop.f32.mrf.mxu0
      %v1606 = vadd.f32 0.0, %v1605
      %1607 = vmatmul.bf16.gmra.mxu0 %v1020
      %v1608 = vpop.f32.mrf.mxu0
      %v1609 = vadd.f32 0.0, %v1608
      %v1610 = vpop.f32.mrf.mxu0
      %v1611 = vadd.f32 0.0, %v1610
      %1612 = vmatmul.bf16.gmra.mxu0 %v1023
      %v1613 = vpop.f32.mrf.mxu0
      %v1614 = vadd.f32 0.0, %v1613
      %v1615 = vpop.f32.mrf.mxu0
      %v1616 = vadd.f32 0.0, %v1615
      %1617 = vmatmul.bf16.gmra.mxu0 %v1026
      %v1618 = vpop.f32.mrf.mxu0
      %v1619 = vadd.f32 0.0, %v1618
      %v1620 = vpop.f32.mrf.mxu0
      %v1621 = vadd.f32 0.0, %v1620
      %1622 = vmatmul.bf16.gmra.mxu0 %v1537
      %v1623 = vpop.f32.mrf.mxu0
      %v1624 = vadd.f32 0.0, %v1623
      %v1625 = vpop.f32.mrf.mxu0
      %v1626 = vadd.f32 0.0, %v1625
      %1627 = vdwg.mxu0
      %v1628 = vadd.f32 %v1466, %v1549
      %v1629 = vadd.f32 %v1467, %v1551
      %v1630 = vadd.f32 %v1468, %v1554
      %v1631 = vadd.f32 %v1469, %v1556
      %v1632 = vadd.f32 %v1470, %v1559
      %v1633 = vadd.f32 %v1471, %v1561
      %v1634 = vadd.f32 %v1472, %v1564
      %v1635 = vadd.f32 %v1473, %v1566
      %v1636 = vadd.f32 %v1474, %v1569
      %v1637 = vadd.f32 %v1475, %v1571
      %v1638 = vadd.f32 %v1476, %v1574
      %v1639 = vadd.f32 %v1477, %v1576
      %v1640 = vadd.f32 %v1478, %v1579
      %v1641 = vadd.f32 %v1479, %v1581
      %v1642 = vadd.f32 %v1480, %v1584
      %v1643 = vadd.f32 %v1481, %v1586
      %v1644 = vadd.f32 %v1482, %v1589
      %v1645 = vadd.f32 %v1483, %v1591
      %v1646 = vadd.f32 %v1484, %v1594
      %v1647 = vadd.f32 %v1485, %v1596
      %v1648 = vadd.f32 %v1486, %v1599
      %v1649 = vadd.f32 %v1487, %v1601
      %v1650 = vadd.f32 %v1488, %v1604
      %v1651 = vadd.f32 %v1489, %v1606
      %v1652 = vadd.f32 %v1490, %v1609
      %v1653 = vadd.f32 %v1491, %v1611
      %v1654 = vadd.f32 %v1492, %v1614
      %v1655 = vadd.f32 %v1493, %v1616
      %v1656 = vadd.f32 %v1494, %v1619
      %v1657 = vadd.f32 %v1495, %v1621
      %v1658 = vadd.f32 %v1496, %v1624
      %v1659 = vadd.f32 %v1497, %v1626
      %v1661 = vshrl.u32 %v256, 16
      %v1663 = vrot.slane %v1661, 4
      %v1664 = vshll.u32 %v256, 16
      %v1666 = vrot.slane %v1664, 5
      %v1667 = vor.u32 %v1663, %v1666
      %v1668 = vrot.slane %v1667, 4
      %v1670 = vshll.u32 %v257, 16
      %v1672 = vrot.slane %v1670, 5
      %v1673 = vsel %vm272, %v1668, %v1672
      %v1674 = vshrl.u32 %v257, 16
      %v1676 = vrot.slane %v1674, 4
      %v1677 = vor.u32 %v1676, %v1672
      %v1678 = vrot.slane %v1677, 4
      %v1680 = vshll.u32 %v258, 16
      %v1682 = vrot.slane %v1680, 5
      %v1683 = vsel %vm272, %v1678, %v1682
      %s1684 = scalar_lea.vmem %s1, 128
      %v1685 = vld [vmem:[%s1684] sm:$0xf]
      %v1686 = vld [vmem:[%s1684 + $0x4] sm:$0xf]
      %v1687 = vld [vmem:[%s1684 + $0x8] sm:$0xf]
      %v1688 = vld [vmem:[%s1684 + $0xc] sm:$0xf]
      %v1689 = vld [vmem:[%s1684 + $0x10] sm:$0xf]
      %v1690 = vld [vmem:[%s1684 + $0x14] sm:$0xf]
      %v1691 = vld [vmem:[%s1684 + $0x18] sm:$0xf]
      %v1692 = vld [vmem:[%s1684 + $0x1c] sm:$0xf]
      %v1693 = vunpack.c.l.b16 %v1673
      %v1694 = vunpack.c.l.b16 %v1683
      %v1695 = vpack.c.b16 %v1694, %v1693
      %v1704 = vunpack.c.l.b16 %v1685
      %v1705 = vunpack.c.l.b16 %v1686
      %v1706 = vunpack.c.l.b16 %v1687
      %v1707 = vunpack.c.l.b16 %v1688
      %v1708 = vunpack.c.l.b16 %v1689
      %v1709 = vunpack.c.l.b16 %v1690
      %v1710 = vunpack.c.l.b16 %v1691
      %v1711 = vunpack.c.l.b16 %v1692
      %v1712 = vpack.c.b16 %v1705, %v1704
      %v1713 = vpack.c.b16 %v1707, %v1706
      %v1714 = vpack.c.b16 %v1709, %v1708
      %v1715 = vpack.c.b16 %v1711, %v1710
      %v1721 = vsel %vm738, %v1695, 0
      %1723 = vmatpush.bf16.msra.mxu0 0
      %1724 = vmatpush.bf16.msra.mxu0 0
      %1725 = vmatpush.bf16.msra.mxu0 0
      %1726 = vmatpush.bf16.msra.mxu0 0
      %1727 = vmatpush.bf16.msra.mxu0 %v1715
      %1728 = vmatpush.bf16.msra.mxu0 %v1714
      %1729 = vmatpush.bf16.msra.mxu0 %v1713
      %1730 = vmatpush.bf16.msra.mxu0 %v1712
      %1731 = vmatmul.bf16.gmra.mxu0 %v743
      %v1732 = vpop.f32.mrf.mxu0
      %v1733 = vadd.f32 0.0, %v1732
      %v1734 = vpop.f32.mrf.mxu0
      %v1735 = vadd.f32 0.0, %v1734
      %1736 = vmatmul.bf16.gmra.mxu0 %v746
      %v1737 = vpop.f32.mrf.mxu0
      %v1738 = vadd.f32 0.0, %v1737
      %v1739 = vpop.f32.mrf.mxu0
      %v1740 = vadd.f32 0.0, %v1739
      %1741 = vmatmul.bf16.gmra.mxu0 %v749
      %v1742 = vpop.f32.mrf.mxu0
      %v1743 = vadd.f32 0.0, %v1742
      %v1744 = vpop.f32.mrf.mxu0
      %v1745 = vadd.f32 0.0, %v1744
      %1746 = vmatmul.bf16.gmra.mxu0 %v752
      %v1747 = vpop.f32.mrf.mxu0
      %v1748 = vadd.f32 0.0, %v1747
      %v1749 = vpop.f32.mrf.mxu0
      %v1750 = vadd.f32 0.0, %v1749
      %1751 = vmatmul.bf16.gmra.mxu0 %v755
      %v1752 = vpop.f32.mrf.mxu0
      %v1753 = vadd.f32 0.0, %v1752
      %v1754 = vpop.f32.mrf.mxu0
      %v1755 = vadd.f32 0.0, %v1754
      %1756 = vmatmul.bf16.gmra.mxu0 %v758
      %v1757 = vpop.f32.mrf.mxu0
      %v1758 = vadd.f32 0.0, %v1757
      %v1759 = vpop.f32.mrf.mxu0
      %v1760 = vadd.f32 0.0, %v1759
      %1761 = vmatmul.bf16.gmra.mxu0 %v761
      %v1762 = vpop.f32.mrf.mxu0
      %v1763 = vadd.f32 0.0, %v1762
      %v1764 = vpop.f32.mrf.mxu0
      %v1765 = vadd.f32 0.0, %v1764
      %1766 = vmatmul.bf16.gmra.mxu0 %v764
      %v1767 = vpop.f32.mrf.mxu0
      %v1768 = vadd.f32 0.0, %v1767
      %v1769 = vpop.f32.mrf.mxu0
      %v1770 = vadd.f32 0.0, %v1769
      %1771 = vmatmul.bf16.gmra.mxu0 %v767
      %v1772 = vpop.f32.mrf.mxu0
      %v1773 = vadd.f32 0.0, %v1772
      %v1774 = vpop.f32.mrf.mxu0
      %v1775 = vadd.f32 0.0, %v1774
      %1776 = vmatmul.bf16.gmra.mxu0 %v770
      %v1777 = vpop.f32.mrf.mxu0
      %v1778 = vadd.f32 0.0, %v1777
      %v1779 = vpop.f32.mrf.mxu0
      %v1780 = vadd.f32 0.0, %v1779
      %1781 = vmatmul.bf16.gmra.mxu0 %v773
      %v1782 = vpop.f32.mrf.mxu0
      %v1783 = vadd.f32 0.0, %v1782
      %v1784 = vpop.f32.mrf.mxu0
      %v1785 = vadd.f32 0.0, %v1784
      %1786 = vmatmul.bf16.gmra.mxu0 %v776
      %v1787 = vpop.f32.mrf.mxu0
      %v1788 = vadd.f32 0.0, %v1787
      %v1789 = vpop.f32.mrf.mxu0
      %v1790 = vadd.f32 0.0, %v1789
      %1791 = vmatmul.bf16.gmra.mxu0 %v779
      %v1792 = vpop.f32.mrf.mxu0
      %v1793 = vadd.f32 0.0, %v1792
      %v1794 = vpop.f32.mrf.mxu0
      %v1795 = vadd.f32 0.0, %v1794
      %1796 = vmatmul.bf16.gmra.mxu0 %v782
      %v1797 = vpop.f32.mrf.mxu0
      %v1798 = vadd.f32 0.0, %v1797
      %v1799 = vpop.f32.mrf.mxu0
      %v1800 = vadd.f32 0.0, %v1799
      %1801 = vmatmul.bf16.gmra.mxu0 %v785
      %v1802 = vpop.f32.mrf.mxu0
      %v1803 = vadd.f32 0.0, %v1802
      %v1804 = vpop.f32.mrf.mxu0
      %v1805 = vadd.f32 0.0, %v1804
      %1806 = vmatmul.bf16.gmra.mxu0 %v1721
      %v1807 = vpop.f32.mrf.mxu0
      %v1808 = vadd.f32 0.0, %v1807
      %v1809 = vpop.f32.mrf.mxu0
      %v1810 = vadd.f32 0.0, %v1809
      %1811 = vdwg.mxu0
      %v1812 = vadd.f32 %v1628, %v1733
      %v1813 = vadd.f32 %v1629, %v1735
      %v1814 = vadd.f32 %v1630, %v1738
      %v1815 = vadd.f32 %v1631, %v1740
      %v1816 = vadd.f32 %v1632, %v1743
      %v1817 = vadd.f32 %v1633, %v1745
      %v1818 = vadd.f32 %v1634, %v1748
      %v1819 = vadd.f32 %v1635, %v1750
      %v1820 = vadd.f32 %v1636, %v1753
      %v1821 = vadd.f32 %v1637, %v1755
      %v1822 = vadd.f32 %v1638, %v1758
      %v1823 = vadd.f32 %v1639, %v1760
      %v1824 = vadd.f32 %v1640, %v1763
      %v1825 = vadd.f32 %v1641, %v1765
      %v1826 = vadd.f32 %v1642, %v1768
      %v1827 = vadd.f32 %v1643, %v1770
      %v1828 = vadd.f32 %v1644, %v1773
      %v1829 = vadd.f32 %v1645, %v1775
      %v1830 = vadd.f32 %v1646, %v1778
      %v1831 = vadd.f32 %v1647, %v1780
      %v1832 = vadd.f32 %v1648, %v1783
      %v1833 = vadd.f32 %v1649, %v1785
      %v1834 = vadd.f32 %v1650, %v1788
      %v1835 = vadd.f32 %v1651, %v1790
      %v1836 = vadd.f32 %v1652, %v1793
      %v1837 = vadd.f32 %v1653, %v1795
      %v1838 = vadd.f32 %v1654, %v1798
      %v1839 = vadd.f32 %v1655, %v1800
      %v1840 = vadd.f32 %v1656, %v1803
      %v1841 = vadd.f32 %v1657, %v1805
      %v1842 = vadd.f32 %v1658, %v1808
      %v1843 = vadd.f32 %v1659, %v1810
      %v1845 = vrot.slane %v256, 5
      %v1846 = vrot.slane %v1845, 4
      %v1847 = vrot.slane %v257, 5
      %v1848 = vsel %vm1135, %v1846, %v1847
      %v1849 = vrot.slane %v1847, 4
      %v1850 = vrot.slane %v258, 5
      %v1851 = vsel %vm1135, %v1849, %v1850
      %s1852 = scalar_lea.vmem %s1, 160
      %v1853 = vld [vmem:[%s1852] sm:$0xf]
      %v1854 = vld [vmem:[%s1852 + $0x4] sm:$0xf]
      %v1855 = vld [vmem:[%s1852 + $0x8] sm:$0xf]
      %v1856 = vld [vmem:[%s1852 + $0xc] sm:$0xf]
      %v1857 = vld [vmem:[%s1852 + $0x10] sm:$0xf]
      %v1858 = vld [vmem:[%s1852 + $0x14] sm:$0xf]
      %v1859 = vld [vmem:[%s1852 + $0x18] sm:$0xf]
      %v1860 = vld [vmem:[%s1852 + $0x1c] sm:$0xf]
      %v1861 = vunpack.c.l.b16 %v1848
      %v1862 = vunpack.c.l.b16 %v1851
      %v1863 = vpack.c.b16 %v1862, %v1861
      %v1872 = vunpack.c.l.b16 %v1853
      %v1873 = vunpack.c.l.b16 %v1854
      %v1874 = vunpack.c.l.b16 %v1855
      %v1875 = vunpack.c.l.b16 %v1856
      %v1876 = vunpack.c.l.b16 %v1857
      %v1877 = vunpack.c.l.b16 %v1858
      %v1878 = vunpack.c.l.b16 %v1859
      %v1879 = vunpack.c.l.b16 %v1860
      %v1880 = vpack.c.b16 %v1873, %v1872
      %v1881 = vpack.c.b16 %v1875, %v1874
      %v1882 = vpack.c.b16 %v1877, %v1876
      %v1883 = vpack.c.b16 %v1879, %v1878
      %v1889 = vsel %vm738, %v1863, 0
      %1891 = vmatpush.bf16.msra.mxu0 0
      %1892 = vmatpush.bf16.msra.mxu0 0
      %1893 = vmatpush.bf16.msra.mxu0 0
      %1894 = vmatpush.bf16.msra.mxu0 0
      %1895 = vmatpush.bf16.msra.mxu0 %v1883
      %1896 = vmatpush.bf16.msra.mxu0 %v1882
      %1897 = vmatpush.bf16.msra.mxu0 %v1881
      %1898 = vmatpush.bf16.msra.mxu0 %v1880
      %1899 = vmatmul.bf16.gmra.mxu0 %v1333
      %v1900 = vpop.f32.mrf.mxu0
      %v1901 = vadd.f32 0.0, %v1900
      %v1902 = vpop.f32.mrf.mxu0
      %v1903 = vadd.f32 0.0, %v1902
      %1904 = vmatmul.bf16.gmra.mxu0 %v1336
      %v1905 = vpop.f32.mrf.mxu0
      %v1906 = vadd.f32 0.0, %v1905
      %v1907 = vpop.f32.mrf.mxu0
      %v1908 = vadd.f32 0.0, %v1907
      %1909 = vmatmul.bf16.gmra.mxu0 %v1339
      %v1910 = vpop.f32.mrf.mxu0
      %v1911 = vadd.f32 0.0, %v1910
      %v1912 = vpop.f32.mrf.mxu0
      %v1913 = vadd.f32 0.0, %v1912
      %1914 = vmatmul.bf16.gmra.mxu0 %v1342
      %v1915 = vpop.f32.mrf.mxu0
      %v1916 = vadd.f32 0.0, %v1915
      %v1917 = vpop.f32.mrf.mxu0
      %v1918 = vadd.f32 0.0, %v1917
      %1919 = vmatmul.bf16.gmra.mxu0 %v1345
      %v1920 = vpop.f32.mrf.mxu0
      %v1921 = vadd.f32 0.0, %v1920
      %v1922 = vpop.f32.mrf.mxu0
      %v1923 = vadd.f32 0.0, %v1922
      %1924 = vmatmul.bf16.gmra.mxu0 %v1348
      %v1925 = vpop.f32.mrf.mxu0
      %v1926 = vadd.f32 0.0, %v1925
      %v1927 = vpop.f32.mrf.mxu0
      %v1928 = vadd.f32 0.0, %v1927
      %1929 = vmatmul.bf16.gmra.mxu0 %v1351
      %v1930 = vpop.f32.mrf.mxu0
      %v1931 = vadd.f32 0.0, %v1930
      %v1932 = vpop.f32.mrf.mxu0
      %v1933 = vadd.f32 0.0, %v1932
      %1934 = vmatmul.bf16.gmra.mxu0 %v1354
      %v1935 = vpop.f32.mrf.mxu0
      %v1936 = vadd.f32 0.0, %v1935
      %v1937 = vpop.f32.mrf.mxu0
      %v1938 = vadd.f32 0.0, %v1937
      %1939 = vmatmul.bf16.gmra.mxu0 %v1357
      %v1940 = vpop.f32.mrf.mxu0
      %v1941 = vadd.f32 0.0, %v1940
      %v1942 = vpop.f32.mrf.mxu0
      %v1943 = vadd.f32 0.0, %v1942
      %1944 = vmatmul.bf16.gmra.mxu0 %v1360
      %v1945 = vpop.f32.mrf.mxu0
      %v1946 = vadd.f32 0.0, %v1945
      %v1947 = vpop.f32.mrf.mxu0
      %v1948 = vadd.f32 0.0, %v1947
      %1949 = vmatmul.bf16.gmra.mxu0 %v1363
      %v1950 = vpop.f32.mrf.mxu0
      %v1951 = vadd.f32 0.0, %v1950
      %v1952 = vpop.f32.mrf.mxu0
      %v1953 = vadd.f32 0.0, %v1952
      %1954 = vmatmul.bf16.gmra.mxu0 %v1366
      %v1955 = vpop.f32.mrf.mxu0
      %v1956 = vadd.f32 0.0, %v1955
      %v1957 = vpop.f32.mrf.mxu0
      %v1958 = vadd.f32 0.0, %v1957
      %1959 = vmatmul.bf16.gmra.mxu0 %v1369
      %v1960 = vpop.f32.mrf.mxu0
      %v1961 = vadd.f32 0.0, %v1960
      %v1962 = vpop.f32.mrf.mxu0
      %v1963 = vadd.f32 0.0, %v1962
      %1964 = vmatmul.bf16.gmra.mxu0 %v1372
      %v1965 = vpop.f32.mrf.mxu0
      %v1966 = vadd.f32 0.0, %v1965
      %v1967 = vpop.f32.mrf.mxu0
      %v1968 = vadd.f32 0.0, %v1967
      %1969 = vmatmul.bf16.gmra.mxu0 %v1375
      %v1970 = vpop.f32.mrf.mxu0
      %v1971 = vadd.f32 0.0, %v1970
      %v1972 = vpop.f32.mrf.mxu0
      %v1973 = vadd.f32 0.0, %v1972
      %1974 = vmatmul.bf16.gmra.mxu0 %v1889
      %v1975 = vpop.f32.mrf.mxu0
      %v1976 = vadd.f32 0.0, %v1975
      %v1977 = vpop.f32.mrf.mxu0
      %v1978 = vadd.f32 0.0, %v1977
      %1979 = vdwg.mxu0
      %v1980 = vadd.f32 %v1812, %v1901
      %v1981 = vadd.f32 %v1813, %v1903
      %v1982 = vadd.f32 %v1814, %v1906
      %v1983 = vadd.f32 %v1815, %v1908
      %v1984 = vadd.f32 %v1816, %v1911
      %v1985 = vadd.f32 %v1817, %v1913
      %v1986 = vadd.f32 %v1818, %v1916
      %v1987 = vadd.f32 %v1819, %v1918
      %v1988 = vadd.f32 %v1820, %v1921
      %v1989 = vadd.f32 %v1821, %v1923
      %v1990 = vadd.f32 %v1822, %v1926
      %v1991 = vadd.f32 %v1823, %v1928
      %v1992 = vadd.f32 %v1824, %v1931
      %v1993 = vadd.f32 %v1825, %v1933
      %v1994 = vadd.f32 %v1826, %v1936
      %v1995 = vadd.f32 %v1827, %v1938
      %v1996 = vadd.f32 %v1828, %v1941
      %v1997 = vadd.f32 %v1829, %v1943
      %v1998 = vadd.f32 %v1830, %v1946
      %v1999 = vadd.f32 %v1831, %v1948
      %v2000 = vadd.f32 %v1832, %v1951
      %v2001 = vadd.f32 %v1833, %v1953
      %v2002 = vadd.f32 %v1834, %v1956
      %v2003 = vadd.f32 %v1835, %v1958
      %v2004 = vadd.f32 %v1836, %v1961
      %v2005 = vadd.f32 %v1837, %v1963
      %v2006 = vadd.f32 %v1838, %v1966
      %v2007 = vadd.f32 %v1839, %v1968
      %v2008 = vadd.f32 %v1840, %v1971
      %v2009 = vadd.f32 %v1841, %v1973
      %v2010 = vadd.f32 %v1842, %v1976
      %v2011 = vadd.f32 %v1843, %v1978
      %s2012 = scalar_lea.vmem %s1, 192
      %v2013 = vld [vmem:[%s2012] sm:$0xf]
      %v2014 = vld [vmem:[%s2012 + $0x4] sm:$0xf]
      %v2015 = vld [vmem:[%s2012 + $0x8] sm:$0xf]
      %v2016 = vld [vmem:[%s2012 + $0xc] sm:$0xf]
      %v2017 = vld [vmem:[%s2012 + $0x10] sm:$0xf]
      %v2018 = vld [vmem:[%s2012 + $0x14] sm:$0xf]
      %v2019 = vld [vmem:[%s2012 + $0x18] sm:$0xf]
      %v2020 = vld [vmem:[%s2012 + $0x1c] sm:$0xf]
      %v2023 = vunpack.c.l.b16 %v259
      %v2024 = vunpack.c.l.b16 %v260
      %v2025 = vpack.c.b16 %v2024, %v2023
      %v2034 = vunpack.c.l.b16 %v2013
      %v2035 = vunpack.c.l.b16 %v2014
      %v2036 = vunpack.c.l.b16 %v2015
      %v2037 = vunpack.c.l.b16 %v2016
      %v2038 = vunpack.c.l.b16 %v2017
      %v2039 = vunpack.c.l.b16 %v2018
      %v2040 = vunpack.c.l.b16 %v2019
      %v2041 = vunpack.c.l.b16 %v2020
      %v2042 = vpack.c.b16 %v2035, %v2034
      %v2043 = vpack.c.b16 %v2037, %v2036
      %v2044 = vpack.c.b16 %v2039, %v2038
      %v2045 = vpack.c.b16 %v2041, %v2040
      %v2051 = vsel %vm738, %v2025, 0
      %2053 = vmatpush.bf16.msra.mxu0 0
      %2054 = vmatpush.bf16.msra.mxu0 0
      %2055 = vmatpush.bf16.msra.mxu0 0
      %2056 = vmatpush.bf16.msra.mxu0 0
      %2057 = vmatpush.bf16.msra.mxu0 %v2045
      %2058 = vmatpush.bf16.msra.mxu0 %v2044
      %2059 = vmatpush.bf16.msra.mxu0 %v2043
      %2060 = vmatpush.bf16.msra.mxu0 %v2042
      %2061 = vmatmul.bf16.gmra.mxu0 %v987
      %v2062 = vpop.f32.mrf.mxu0
      %v2063 = vadd.f32 0.0, %v2062
      %v2064 = vpop.f32.mrf.mxu0
      %v2065 = vadd.f32 0.0, %v2064
      %2066 = vmatmul.bf16.gmra.mxu0 %v990
      %v2067 = vpop.f32.mrf.mxu0
      %v2068 = vadd.f32 0.0, %v2067
      %v2069 = vpop.f32.mrf.mxu0
      %v2070 = vadd.f32 0.0, %v2069
      %2071 = vmatmul.bf16.gmra.mxu0 %v993
      %v2072 = vpop.f32.mrf.mxu0
      %v2073 = vadd.f32 0.0, %v2072
      %v2074 = vpop.f32.mrf.mxu0
      %v2075 = vadd.f32 0.0, %v2074
      %2076 = vmatmul.bf16.gmra.mxu0 %v996
      %v2077 = vpop.f32.mrf.mxu0
      %v2078 = vadd.f32 0.0, %v2077
      %v2079 = vpop.f32.mrf.mxu0
      %v2080 = vadd.f32 0.0, %v2079
      %2081 = vmatmul.bf16.gmra.mxu0 %v999
      %v2082 = vpop.f32.mrf.mxu0
      %v2083 = vadd.f32 0.0, %v2082
      %v2084 = vpop.f32.mrf.mxu0
      %v2085 = vadd.f32 0.0, %v2084
      %2086 = vmatmul.bf16.gmra.mxu0 %v1002
      %v2087 = vpop.f32.mrf.mxu0
      %v2088 = vadd.f32 0.0, %v2087
      %v2089 = vpop.f32.mrf.mxu0
      %v2090 = vadd.f32 0.0, %v2089
      %2091 = vmatmul.bf16.gmra.mxu0 %v1005
      %v2092 = vpop.f32.mrf.mxu0
      %v2093 = vadd.f32 0.0, %v2092
      %v2094 = vpop.f32.mrf.mxu0
      %v2095 = vadd.f32 0.0, %v2094
      %2096 = vmatmul.bf16.gmra.mxu0 %v1008
      %v2097 = vpop.f32.mrf.mxu0
      %v2098 = vadd.f32 0.0, %v2097
      %v2099 = vpop.f32.mrf.mxu0
      %v2100 = vadd.f32 0.0, %v2099
      %2101 = vmatmul.bf16.gmra.mxu0 %v1011
      %v2102 = vpop.f32.mrf.mxu0
      %v2103 = vadd.f32 0.0, %v2102
      %v2104 = vpop.f32.mrf.mxu0
      %v2105 = vadd.f32 0.0, %v2104
      %2106 = vmatmul.bf16.gmra.mxu0 %v1014
      %v2107 = vpop.f32.mrf.mxu0
      %v2108 = vadd.f32 0.0, %v2107
      %v2109 = vpop.f32.mrf.mxu0
      %v2110 = vadd.f32 0.0, %v2109
      %2111 = vmatmul.bf16.gmra.mxu0 %v1017
      %v2112 = vpop.f32.mrf.mxu0
      %v2113 = vadd.f32 0.0, %v2112
      %v2114 = vpop.f32.mrf.mxu0
      %v2115 = vadd.f32 0.0, %v2114
      %2116 = vmatmul.bf16.gmra.mxu0 %v1020
      %v2117 = vpop.f32.mrf.mxu0
      %v2118 = vadd.f32 0.0, %v2117
      %v2119 = vpop.f32.mrf.mxu0
      %v2120 = vadd.f32 0.0, %v2119
      %2121 = vmatmul.bf16.gmra.mxu0 %v1023
      %v2122 = vpop.f32.mrf.mxu0
      %v2123 = vadd.f32 0.0, %v2122
      %v2124 = vpop.f32.mrf.mxu0
      %v2125 = vadd.f32 0.0, %v2124
      %2126 = vmatmul.bf16.gmra.mxu0 %v1026
      %v2127 = vpop.f32.mrf.mxu0
      %v2128 = vadd.f32 0.0, %v2127
      %v2129 = vpop.f32.mrf.mxu0
      %v2130 = vadd.f32 0.0, %v2129
      %2131 = vmatmul.bf16.gmra.mxu0 %v1537
      %v2132 = vpop.f32.mrf.mxu0
      %v2133 = vadd.f32 0.0, %v2132
      %v2134 = vpop.f32.mrf.mxu0
      %v2135 = vadd.f32 0.0, %v2134
      %2136 = vmatmul.bf16.gmra.mxu0 %v2051
      %v2137 = vpop.f32.mrf.mxu0
      %v2138 = vadd.f32 0.0, %v2137
      %v2139 = vpop.f32.mrf.mxu0
      %v2140 = vadd.f32 0.0, %v2139
      %2141 = vdwg.mxu0
      %v2142 = vadd.f32 %v1980, %v2063
      %v2143 = vadd.f32 %v1981, %v2065
      %v2144 = vadd.f32 %v1982, %v2068
      %v2145 = vadd.f32 %v1983, %v2070
      %v2146 = vadd.f32 %v1984, %v2073
      %v2147 = vadd.f32 %v1985, %v2075
      %v2148 = vadd.f32 %v1986, %v2078
      %v2149 = vadd.f32 %v1987, %v2080
      %v2150 = vadd.f32 %v1988, %v2083
      %v2151 = vadd.f32 %v1989, %v2085
      %v2152 = vadd.f32 %v1990, %v2088
      %v2153 = vadd.f32 %v1991, %v2090
      %v2154 = vadd.f32 %v1992, %v2093
      %v2155 = vadd.f32 %v1993, %v2095
      %v2156 = vadd.f32 %v1994, %v2098
      %v2157 = vadd.f32 %v1995, %v2100
      %v2158 = vadd.f32 %v1996, %v2103
      %v2159 = vadd.f32 %v1997, %v2105
      %v2160 = vadd.f32 %v1998, %v2108
      %v2161 = vadd.f32 %v1999, %v2110
      %v2162 = vadd.f32 %v2000, %v2113
      %v2163 = vadd.f32 %v2001, %v2115
      %v2164 = vadd.f32 %v2002, %v2118
      %v2165 = vadd.f32 %v2003, %v2120
      %v2166 = vadd.f32 %v2004, %v2123
      %v2167 = vadd.f32 %v2005, %v2125
      %v2168 = vadd.f32 %v2006, %v2128
      %v2169 = vadd.f32 %v2007, %v2130
      %v2170 = vadd.f32 %v2008, %v2133
      %v2171 = vadd.f32 %v2009, %v2135
      %v2172 = vadd.f32 %v2010, %v2138
      %v2173 = vadd.f32 %v2011, %v2140
      %v2175 = vshrl.u32 %v259, 16
      %v2177 = vrot.slane %v2175, 4
      %v2178 = vshll.u32 %v259, 16
      %v2180 = vrot.slane %v2178, 5
      %v2181 = vor.u32 %v2177, %v2180
      %v2182 = vrot.slane %v2181, 4
      %v2184 = vshll.u32 %v260, 16
      %v2186 = vrot.slane %v2184, 5
      %v2187 = vsel %vm272, %v2182, %v2186
      %v2188 = vshrl.u32 %v260, 16
      %v2190 = vrot.slane %v2188, 4
      %v2191 = vor.u32 %v2190, %v2186
      %v2192 = vrot.slane %v2191, 4
      %v2194 = vshll.u32 %v261, 16
      %v2196 = vrot.slane %v2194, 5
      %v2197 = vsel %vm272, %v2192, %v2196
      %s2198 = scalar_lea.vmem %s1, 224
      %v2199 = vld [vmem:[%s2198] sm:$0xf]
      %v2200 = vld [vmem:[%s2198 + $0x4] sm:$0xf]
      %v2201 = vld [vmem:[%s2198 + $0x8] sm:$0xf]
      %v2202 = vld [vmem:[%s2198 + $0xc] sm:$0xf]
      %v2203 = vld [vmem:[%s2198 + $0x10] sm:$0xf]
      %v2204 = vld [vmem:[%s2198 + $0x14] sm:$0xf]
      %v2205 = vld [vmem:[%s2198 + $0x18] sm:$0xf]
      %v2206 = vld [vmem:[%s2198 + $0x1c] sm:$0xf]
      %v2207 = vunpack.c.l.b16 %v2187
      %v2208 = vunpack.c.l.b16 %v2197
      %v2209 = vpack.c.b16 %v2208, %v2207
      %v2218 = vunpack.c.l.b16 %v2199
      %v2219 = vunpack.c.l.b16 %v2200
      %v2220 = vunpack.c.l.b16 %v2201
      %v2221 = vunpack.c.l.b16 %v2202
      %v2222 = vunpack.c.l.b16 %v2203
      %v2223 = vunpack.c.l.b16 %v2204
      %v2224 = vunpack.c.l.b16 %v2205
      %v2225 = vunpack.c.l.b16 %v2206
      %v2226 = vpack.c.b16 %v2219, %v2218
      %v2227 = vpack.c.b16 %v2221, %v2220
      %v2228 = vpack.c.b16 %v2223, %v2222
      %v2229 = vpack.c.b16 %v2225, %v2224
      %v2235 = vsel %vm738, %v2209, 0
      %2237 = vmatpush.bf16.msra.mxu0 0
      %2238 = vmatpush.bf16.msra.mxu0 0
      %2239 = vmatpush.bf16.msra.mxu0 0
      %2240 = vmatpush.bf16.msra.mxu0 0
      %2241 = vmatpush.bf16.msra.mxu0 %v2229
      %2242 = vmatpush.bf16.msra.mxu0 %v2228
      %2243 = vmatpush.bf16.msra.mxu0 %v2227
      %2244 = vmatpush.bf16.msra.mxu0 %v2226
      %2245 = vmatmul.bf16.gmra.mxu0 %v746
      %v2246 = vpop.f32.mrf.mxu0
      %v2247 = vadd.f32 0.0, %v2246
      %v2248 = vpop.f32.mrf.mxu0
      %v2249 = vadd.f32 0.0, %v2248
      %2250 = vmatmul.bf16.gmra.mxu0 %v749
      %v2251 = vpop.f32.mrf.mxu0
      %v2252 = vadd.f32 0.0, %v2251
      %v2253 = vpop.f32.mrf.mxu0
      %v2254 = vadd.f32 0.0, %v2253
      %2255 = vmatmul.bf16.gmra.mxu0 %v752
      %v2256 = vpop.f32.mrf.mxu0
      %v2257 = vadd.f32 0.0, %v2256
      %v2258 = vpop.f32.mrf.mxu0
      %v2259 = vadd.f32 0.0, %v2258
      %2260 = vmatmul.bf16.gmra.mxu0 %v755
      %v2261 = vpop.f32.mrf.mxu0
      %v2262 = vadd.f32 0.0, %v2261
      %v2263 = vpop.f32.mrf.mxu0
      %v2264 = vadd.f32 0.0, %v2263
      %2265 = vmatmul.bf16.gmra.mxu0 %v758
      %v2266 = vpop.f32.mrf.mxu0
      %v2267 = vadd.f32 0.0, %v2266
      %v2268 = vpop.f32.mrf.mxu0
      %v2269 = vadd.f32 0.0, %v2268
      %2270 = vmatmul.bf16.gmra.mxu0 %v761
      %v2271 = vpop.f32.mrf.mxu0
      %v2272 = vadd.f32 0.0, %v2271
      %v2273 = vpop.f32.mrf.mxu0
      %v2274 = vadd.f32 0.0, %v2273
      %2275 = vmatmul.bf16.gmra.mxu0 %v764
      %v2276 = vpop.f32.mrf.mxu0
      %v2277 = vadd.f32 0.0, %v2276
      %v2278 = vpop.f32.mrf.mxu0
      %v2279 = vadd.f32 0.0, %v2278
      %2280 = vmatmul.bf16.gmra.mxu0 %v767
      %v2281 = vpop.f32.mrf.mxu0
      %v2282 = vadd.f32 0.0, %v2281
      %v2283 = vpop.f32.mrf.mxu0
      %v2284 = vadd.f32 0.0, %v2283
      %2285 = vmatmul.bf16.gmra.mxu0 %v770
      %v2286 = vpop.f32.mrf.mxu0
      %v2287 = vadd.f32 0.0, %v2286
      %v2288 = vpop.f32.mrf.mxu0
      %v2289 = vadd.f32 0.0, %v2288
      %2290 = vmatmul.bf16.gmra.mxu0 %v773
      %v2291 = vpop.f32.mrf.mxu0
      %v2292 = vadd.f32 0.0, %v2291
      %v2293 = vpop.f32.mrf.mxu0
      %v2294 = vadd.f32 0.0, %v2293
      %2295 = vmatmul.bf16.gmra.mxu0 %v776
      %v2296 = vpop.f32.mrf.mxu0
      %v2297 = vadd.f32 0.0, %v2296
      %v2298 = vpop.f32.mrf.mxu0
      %v2299 = vadd.f32 0.0, %v2298
      %2300 = vmatmul.bf16.gmra.mxu0 %v779
      %v2301 = vpop.f32.mrf.mxu0
      %v2302 = vadd.f32 0.0, %v2301
      %v2303 = vpop.f32.mrf.mxu0
      %v2304 = vadd.f32 0.0, %v2303
      %2305 = vmatmul.bf16.gmra.mxu0 %v782
      %v2306 = vpop.f32.mrf.mxu0
      %v2307 = vadd.f32 0.0, %v2306
      %v2308 = vpop.f32.mrf.mxu0
      %v2309 = vadd.f32 0.0, %v2308
      %2310 = vmatmul.bf16.gmra.mxu0 %v785
      %v2311 = vpop.f32.mrf.mxu0
      %v2312 = vadd.f32 0.0, %v2311
      %v2313 = vpop.f32.mrf.mxu0
      %v2314 = vadd.f32 0.0, %v2313
      %2315 = vmatmul.bf16.gmra.mxu0 %v1721
      %v2316 = vpop.f32.mrf.mxu0
      %v2317 = vadd.f32 0.0, %v2316
      %v2318 = vpop.f32.mrf.mxu0
      %v2319 = vadd.f32 0.0, %v2318
      %2320 = vmatmul.bf16.gmra.mxu0 %v2235
      %v2321 = vpop.f32.mrf.mxu0
      %v2322 = vadd.f32 0.0, %v2321
      %v2323 = vpop.f32.mrf.mxu0
      %v2324 = vadd.f32 0.0, %v2323
      %2325 = vdwg.mxu0
      %v2326 = vadd.f32 %v2142, %v2247
      %v2327 = vadd.f32 %v2143, %v2249
      %v2328 = vadd.f32 %v2144, %v2252
      %v2329 = vadd.f32 %v2145, %v2254
      %v2330 = vadd.f32 %v2146, %v2257
      %v2331 = vadd.f32 %v2147, %v2259
      %v2332 = vadd.f32 %v2148, %v2262
      %v2333 = vadd.f32 %v2149, %v2264
      %v2334 = vadd.f32 %v2150, %v2267
      %v2335 = vadd.f32 %v2151, %v2269
      %v2336 = vadd.f32 %v2152, %v2272
      %v2337 = vadd.f32 %v2153, %v2274
      %v2338 = vadd.f32 %v2154, %v2277
      %v2339 = vadd.f32 %v2155, %v2279
      %v2340 = vadd.f32 %v2156, %v2282
      %v2341 = vadd.f32 %v2157, %v2284
      %v2342 = vadd.f32 %v2158, %v2287
      %v2343 = vadd.f32 %v2159, %v2289
      %v2344 = vadd.f32 %v2160, %v2292
      %v2345 = vadd.f32 %v2161, %v2294
      %v2346 = vadd.f32 %v2162, %v2297
      %v2347 = vadd.f32 %v2163, %v2299
      %v2348 = vadd.f32 %v2164, %v2302
      %v2349 = vadd.f32 %v2165, %v2304
      %v2350 = vadd.f32 %v2166, %v2307
      %v2351 = vadd.f32 %v2167, %v2309
      %v2352 = vadd.f32 %v2168, %v2312
      %v2353 = vadd.f32 %v2169, %v2314
      %v2354 = vadd.f32 %v2170, %v2317
      %v2355 = vadd.f32 %v2171, %v2319
      %v2356 = vadd.f32 %v2172, %v2322
      %v2357 = vadd.f32 %v2173, %v2324
      %v2359 = vrot.slane %v259, 5
      %v2360 = vrot.slane %v2359, 4
      %v2361 = vrot.slane %v260, 5
      %v2362 = vsel %vm1135, %v2360, %v2361
      %v2363 = vrot.slane %v2361, 4
      %v2364 = vrot.slane %v261, 5
      %v2365 = vsel %vm1135, %v2363, %v2364
      %s2366 = scalar_lea.vmem %s1, 256
      %v2367 = vld [vmem:[%s2366] sm:$0xf]
      %v2368 = vld [vmem:[%s2366 + $0x4] sm:$0xf]
      %v2369 = vld [vmem:[%s2366 + $0x8] sm:$0xf]
      %v2370 = vld [vmem:[%s2366 + $0xc] sm:$0xf]
      %v2371 = vld [vmem:[%s2366 + $0x10] sm:$0xf]
      %v2372 = vld [vmem:[%s2366 + $0x14] sm:$0xf]
      %v2373 = vld [vmem:[%s2366 + $0x18] sm:$0xf]
      %v2374 = vld [vmem:[%s2366 + $0x1c] sm:$0xf]
      %v2375 = vunpack.c.l.b16 %v2362
      %v2376 = vunpack.c.l.b16 %v2365
      %v2377 = vpack.c.b16 %v2376, %v2375
      %v2386 = vunpack.c.l.b16 %v2367
      %v2387 = vunpack.c.l.b16 %v2368
      %v2388 = vunpack.c.l.b16 %v2369
      %v2389 = vunpack.c.l.b16 %v2370
      %v2390 = vunpack.c.l.b16 %v2371
      %v2391 = vunpack.c.l.b16 %v2372
      %v2392 = vunpack.c.l.b16 %v2373
      %v2393 = vunpack.c.l.b16 %v2374
      %v2394 = vpack.c.b16 %v2387, %v2386
      %v2395 = vpack.c.b16 %v2389, %v2388
      %v2396 = vpack.c.b16 %v2391, %v2390
      %v2397 = vpack.c.b16 %v2393, %v2392
      %v2403 = vsel %vm738, %v2377, 0
      %2405 = vmatpush.bf16.msra.mxu0 0
      %2406 = vmatpush.bf16.msra.mxu0 0
      %2407 = vmatpush.bf16.msra.mxu0 0
      %2408 = vmatpush.bf16.msra.mxu0 0
      %2409 = vmatpush.bf16.msra.mxu0 %v2397
      %2410 = vmatpush.bf16.msra.mxu0 %v2396
      %2411 = vmatpush.bf16.msra.mxu0 %v2395
      %2412 = vmatpush.bf16.msra.mxu0 %v2394
      %2413 = vmatmul.bf16.gmra.mxu0 %v1336
      %v2414 = vpop.f32.mrf.mxu0
      %v2415 = vadd.f32 0.0, %v2414
      %v2416 = vpop.f32.mrf.mxu0
      %v2417 = vadd.f32 0.0, %v2416
      %2418 = vmatmul.bf16.gmra.mxu0 %v1339
      %v2419 = vpop.f32.mrf.mxu0
      %v2420 = vadd.f32 0.0, %v2419
      %v2421 = vpop.f32.mrf.mxu0
      %v2422 = vadd.f32 0.0, %v2421
      %2423 = vmatmul.bf16.gmra.mxu0 %v1342
      %v2424 = vpop.f32.mrf.mxu0
      %v2425 = vadd.f32 0.0, %v2424
      %v2426 = vpop.f32.mrf.mxu0
      %v2427 = vadd.f32 0.0, %v2426
      %2428 = vmatmul.bf16.gmra.mxu0 %v1345
      %v2429 = vpop.f32.mrf.mxu0
      %v2430 = vadd.f32 0.0, %v2429
      %v2431 = vpop.f32.mrf.mxu0
      %v2432 = vadd.f32 0.0, %v2431
      %2433 = vmatmul.bf16.gmra.mxu0 %v1348
      %v2434 = vpop.f32.mrf.mxu0
      %v2435 = vadd.f32 0.0, %v2434
      %v2436 = vpop.f32.mrf.mxu0
      %v2437 = vadd.f32 0.0, %v2436
      %2438 = vmatmul.bf16.gmra.mxu0 %v1351
      %v2439 = vpop.f32.mrf.mxu0
      %v2440 = vadd.f32 0.0, %v2439
      %v2441 = vpop.f32.mrf.mxu0
      %v2442 = vadd.f32 0.0, %v2441
      %2443 = vmatmul.bf16.gmra.mxu0 %v1354
      %v2444 = vpop.f32.mrf.mxu0
      %v2445 = vadd.f32 0.0, %v2444
      %v2446 = vpop.f32.mrf.mxu0
      %v2447 = vadd.f32 0.0, %v2446
      %2448 = vmatmul.bf16.gmra.mxu0 %v1357
      %v2449 = vpop.f32.mrf.mxu0
      %v2450 = vadd.f32 0.0, %v2449
      %v2451 = vpop.f32.mrf.mxu0
      %v2452 = vadd.f32 0.0, %v2451
      %2453 = vmatmul.bf16.gmra.mxu0 %v1360
      %v2454 = vpop.f32.mrf.mxu0
      %v2455 = vadd.f32 0.0, %v2454
      %v2456 = vpop.f32.mrf.mxu0
      %v2457 = vadd.f32 0.0, %v2456
      %2458 = vmatmul.bf16.gmra.mxu0 %v1363
      %v2459 = vpop.f32.mrf.mxu0
      %v2460 = vadd.f32 0.0, %v2459
      %v2461 = vpop.f32.mrf.mxu0
      %v2462 = vadd.f32 0.0, %v2461
      %2463 = vmatmul.bf16.gmra.mxu0 %v1366
      %v2464 = vpop.f32.mrf.mxu0
      %v2465 = vadd.f32 0.0, %v2464
      %v2466 = vpop.f32.mrf.mxu0
      %v2467 = vadd.f32 0.0, %v2466
      %2468 = vmatmul.bf16.gmra.mxu0 %v1369
      %v2469 = vpop.f32.mrf.mxu0
      %v2470 = vadd.f32 0.0, %v2469
      %v2471 = vpop.f32.mrf.mxu0
      %v2472 = vadd.f32 0.0, %v2471
      %2473 = vmatmul.bf16.gmra.mxu0 %v1372
      %v2474 = vpop.f32.mrf.mxu0
      %v2475 = vadd.f32 0.0, %v2474
      %v2476 = vpop.f32.mrf.mxu0
      %v2477 = vadd.f32 0.0, %v2476
      %2478 = vmatmul.bf16.gmra.mxu0 %v1375
      %v2479 = vpop.f32.mrf.mxu0
      %v2480 = vadd.f32 0.0, %v2479
      %v2481 = vpop.f32.mrf.mxu0
      %v2482 = vadd.f32 0.0, %v2481
      %2483 = vmatmul.bf16.gmra.mxu0 %v1889
      %v2484 = vpop.f32.mrf.mxu0
      %v2485 = vadd.f32 0.0, %v2484
      %v2486 = vpop.f32.mrf.mxu0
      %v2487 = vadd.f32 0.0, %v2486
      %2488 = vmatmul.bf16.gmra.mxu0 %v2403
      %v2489 = vpop.f32.mrf.mxu0
      %v2490 = vadd.f32 0.0, %v2489
      %v2491 = vpop.f32.mrf.mxu0
      %v2492 = vadd.f32 0.0, %v2491
      %2493 = vdwg.mxu0
      %v2494 = vadd.f32 %v2326, %v2415
      %v2495 = vadd.f32 %v2327, %v2417
      %v2496 = vadd.f32 %v2328, %v2420
      %v2497 = vadd.f32 %v2329, %v2422
      %v2498 = vadd.f32 %v2330, %v2425
      %v2499 = vadd.f32 %v2331, %v2427
      %v2500 = vadd.f32 %v2332, %v2430
      %v2501 = vadd.f32 %v2333, %v2432
      %v2502 = vadd.f32 %v2334, %v2435
      %v2503 = vadd.f32 %v2335, %v2437
      %v2504 = vadd.f32 %v2336, %v2440
      %v2505 = vadd.f32 %v2337, %v2442
      %v2506 = vadd.f32 %v2338, %v2445
      %v2507 = vadd.f32 %v2339, %v2447
      %v2508 = vadd.f32 %v2340, %v2450
      %v2509 = vadd.f32 %v2341, %v2452
      %v2510 = vadd.f32 %v2342, %v2455
      %v2511 = vadd.f32 %v2343, %v2457
      %v2512 = vadd.f32 %v2344, %v2460
      %v2513 = vadd.f32 %v2345, %v2462
      %v2514 = vadd.f32 %v2346, %v2465
      %v2515 = vadd.f32 %v2347, %v2467
      %v2516 = vadd.f32 %v2348, %v2470
      %v2517 = vadd.f32 %v2349, %v2472
      %v2518 = vadd.f32 %v2350, %v2475
      %v2519 = vadd.f32 %v2351, %v2477
      %v2520 = vadd.f32 %v2352, %v2480
      %v2521 = vadd.f32 %v2353, %v2482
      %v2522 = vadd.f32 %v2354, %v2485
      %v2523 = vadd.f32 %v2355, %v2487
      %v2524 = vadd.f32 %v2356, %v2490
      %v2525 = vadd.f32 %v2357, %v2492
      %v2526 = vld [vmem:[%s2] sm:$0x1]
      %v2528 = vperm.slane %v2526, 0
      %v2530 = vadd.f32 %v2494, %v2528
      %v2531 = vadd.f32 %v2495, %v2528
      %v2532 = vadd.f32 %v2496, %v2528
      %v2533 = vadd.f32 %v2497, %v2528
      %v2534 = vadd.f32 %v2498, %v2528
      %v2535 = vadd.f32 %v2499, %v2528
      %v2536 = vadd.f32 %v2500, %v2528
      %v2537 = vadd.f32 %v2501, %v2528
      %v2538 = vadd.f32 %v2502, %v2528
      %v2539 = vadd.f32 %v2503, %v2528
      %v2540 = vadd.f32 %v2504, %v2528
      %v2541 = vadd.f32 %v2505, %v2528
      %v2542 = vadd.f32 %v2506, %v2528
      %v2543 = vadd.f32 %v2507, %v2528
      %v2544 = vadd.f32 %v2508, %v2528
      %v2545 = vadd.f32 %v2509, %v2528
      %v2546 = vadd.f32 %v2510, %v2528
      %v2547 = vadd.f32 %v2511, %v2528
      %v2548 = vadd.f32 %v2512, %v2528
      %v2549 = vadd.f32 %v2513, %v2528
      %v2550 = vadd.f32 %v2514, %v2528
      %v2551 = vadd.f32 %v2515, %v2528
      %v2552 = vadd.f32 %v2516, %v2528
      %v2553 = vadd.f32 %v2517, %v2528
      %v2554 = vadd.f32 %v2518, %v2528
      %v2555 = vadd.f32 %v2519, %v2528
      %v2556 = vadd.f32 %v2520, %v2528
      %v2557 = vadd.f32 %v2521, %v2528
      %v2558 = vadd.f32 %v2522, %v2528
      %v2559 = vadd.f32 %v2523, %v2528
      %v2560 = vadd.f32 %v2524, %v2528
      %v2561 = vadd.f32 %v2525, %v2528
      %v2562 = vpack.c.bf16 %v2530, %v2530
      %v2563 = vpack.c.bf16 %v2531, %v2531
      %v2564 = vpack.c.bf16 %v2532, %v2532
      %v2565 = vpack.c.bf16 %v2533, %v2533
      %v2566 = vpack.c.bf16 %v2534, %v2534
      %v2567 = vpack.c.bf16 %v2535, %v2535
      %v2568 = vpack.c.bf16 %v2536, %v2536
      %v2569 = vpack.c.bf16 %v2537, %v2537
      %v2570 = vpack.c.bf16 %v2538, %v2538
      %v2571 = vpack.c.bf16 %v2539, %v2539
      %v2572 = vpack.c.bf16 %v2540, %v2540
      %v2573 = vpack.c.bf16 %v2541, %v2541
      %v2574 = vpack.c.bf16 %v2542, %v2542
      %v2575 = vpack.c.bf16 %v2543, %v2543
      %v2576 = vpack.c.bf16 %v2544, %v2544
      %v2577 = vpack.c.bf16 %v2545, %v2545
      %v2578 = vpack.c.bf16 %v2546, %v2546
      %v2579 = vpack.c.bf16 %v2547, %v2547
      %v2580 = vpack.c.bf16 %v2548, %v2548
      %v2581 = vpack.c.bf16 %v2549, %v2549
      %v2582 = vpack.c.bf16 %v2550, %v2550
      %v2583 = vpack.c.bf16 %v2551, %v2551
      %v2584 = vpack.c.bf16 %v2552, %v2552
      %v2585 = vpack.c.bf16 %v2553, %v2553
      %v2586 = vpack.c.bf16 %v2554, %v2554
      %v2587 = vpack.c.bf16 %v2555, %v2555
      %v2588 = vpack.c.bf16 %v2556, %v2556
      %v2589 = vpack.c.bf16 %v2557, %v2557
      %v2590 = vpack.c.bf16 %v2558, %v2558
      %v2591 = vpack.c.bf16 %v2559, %v2559
      %v2592 = vpack.c.bf16 %v2560, %v2560
      %v2593 = vpack.c.bf16 %v2561, %v2561
      %vm2594 = vcmask 519168
      %2595 = vst.msk [vmem:[%s203] sm:$0xf] %vm2594, %v2562
      %2596 = vst.msk [vmem:[%s203 + $0x4] sm:$0xf] %vm2594, %v2563
      %2597 = vst.msk [vmem:[%s203 + $0x8] sm:$0xf] %vm2594, %v2564
      %2598 = vst.msk [vmem:[%s203 + $0xc] sm:$0xf] %vm2594, %v2565
      %2599 = vst.msk [vmem:[%s203 + $0x10] sm:$0xf] %vm2594, %v2566
      %2600 = vst.msk [vmem:[%s203 + $0x14] sm:$0xf] %vm2594, %v2567
      %2601 = vst.msk [vmem:[%s203 + $0x18] sm:$0xf] %vm2594, %v2568
      %2602 = vst.msk [vmem:[%s203 + $0x1c] sm:$0xf] %vm2594, %v2569
      %2603 = vst.msk [vmem:[%s203 + $0x20] sm:$0xf] %vm2594, %v2570
      %2604 = vst.msk [vmem:[%s203 + $0x24] sm:$0xf] %vm2594, %v2571
      %2605 = vst.msk [vmem:[%s203 + $0x28] sm:$0xf] %vm2594, %v2572
      %2606 = vst.msk [vmem:[%s203 + $0x2c] sm:$0xf] %vm2594, %v2573
      %2607 = vst.msk [vmem:[%s203 + $0x30] sm:$0xf] %vm2594, %v2574
      %2608 = vst.msk [vmem:[%s203 + $0x34] sm:$0xf] %vm2594, %v2575
      %2609 = vst.msk [vmem:[%s203 + $0x38] sm:$0xf] %vm2594, %v2576
      %2610 = vst.msk [vmem:[%s203 + $0x3c] sm:$0xf] %vm2594, %v2577
      %2611 = vst.msk [vmem:[%s203 + $0x40] sm:$0xf] %vm2594, %v2578
      %2612 = vst.msk [vmem:[%s203 + $0x44] sm:$0xf] %vm2594, %v2579
      %2613 = vst.msk [vmem:[%s203 + $0x48] sm:$0xf] %vm2594, %v2580
      %2614 = vst.msk [vmem:[%s203 + $0x4c] sm:$0xf] %vm2594, %v2581
      %2615 = vst.msk [vmem:[%s203 + $0x50] sm:$0xf] %vm2594, %v2582
      %2616 = vst.msk [vmem:[%s203 + $0x54] sm:$0xf] %vm2594, %v2583
      %2617 = vst.msk [vmem:[%s203 + $0x58] sm:$0xf] %vm2594, %v2584
      %2618 = vst.msk [vmem:[%s203 + $0x5c] sm:$0xf] %vm2594, %v2585
      %2619 = vst.msk [vmem:[%s203 + $0x60] sm:$0xf] %vm2594, %v2586
      %2620 = vst.msk [vmem:[%s203 + $0x64] sm:$0xf] %vm2594, %v2587
      %2621 = vst.msk [vmem:[%s203 + $0x68] sm:$0xf] %vm2594, %v2588
      %2622 = vst.msk [vmem:[%s203 + $0x6c] sm:$0xf] %vm2594, %v2589
      %2623 = vst.msk [vmem:[%s203 + $0x70] sm:$0xf] %vm2594, %v2590
      %2624 = vst.msk [vmem:[%s203 + $0x74] sm:$0xf] %vm2594, %v2591
      %2625 = vst.msk [vmem:[%s203 + $0x78] sm:$0xf] %vm2594, %v2592
      %2626 = vst.msk [vmem:[%s203 + $0x7c] sm:$0xf] %vm2594, %v2593
      %v2627 = vsel %vm738, %v2530, 0.0
      %v2628 = vsel %vm738, %v2531, 0.0
      %v2629 = vadd.f32 %v2627, %v2628
      %v2630 = vsel %vm738, %v2532, 0.0
      %v2631 = vadd.f32 %v2629, %v2630
      %v2632 = vsel %vm738, %v2533, 0.0
      %v2633 = vadd.f32 %v2631, %v2632
      %v2634 = vsel %vm738, %v2534, 0.0
      %v2635 = vadd.f32 %v2633, %v2634
      %v2636 = vsel %vm738, %v2535, 0.0
      %v2637 = vadd.f32 %v2635, %v2636
      %v2638 = vsel %vm738, %v2536, 0.0
      %v2639 = vadd.f32 %v2637, %v2638
      %v2640 = vsel %vm738, %v2537, 0.0
      %v2641 = vadd.f32 %v2639, %v2640
      %v2642 = vsel %vm738, %v2538, 0.0
      %v2643 = vadd.f32 %v2641, %v2642
      %v2644 = vsel %vm738, %v2539, 0.0
      %v2645 = vadd.f32 %v2643, %v2644
      %v2646 = vsel %vm738, %v2540, 0.0
      %v2647 = vadd.f32 %v2645, %v2646
      %v2648 = vsel %vm738, %v2541, 0.0
      %v2649 = vadd.f32 %v2647, %v2648
      %v2650 = vsel %vm738, %v2542, 0.0
      %v2651 = vadd.f32 %v2649, %v2650
      %v2652 = vsel %vm738, %v2543, 0.0
      %v2653 = vadd.f32 %v2651, %v2652
      %v2654 = vsel %vm738, %v2544, 0.0
      %v2655 = vadd.f32 %v2653, %v2654
      %v2656 = vsel %vm738, %v2545, 0.0
      %v2657 = vadd.f32 %v2655, %v2656
      %v2658 = vsel %vm738, %v2546, 0.0
      %v2659 = vadd.f32 %v2657, %v2658
      %v2660 = vsel %vm738, %v2547, 0.0
      %v2661 = vadd.f32 %v2659, %v2660
      %v2662 = vsel %vm738, %v2548, 0.0
      %v2663 = vadd.f32 %v2661, %v2662
      %v2664 = vsel %vm738, %v2549, 0.0
      %v2665 = vadd.f32 %v2663, %v2664
      %v2666 = vsel %vm738, %v2550, 0.0
      %v2667 = vadd.f32 %v2665, %v2666
      %v2668 = vsel %vm738, %v2551, 0.0
      %v2669 = vadd.f32 %v2667, %v2668
      %v2670 = vsel %vm738, %v2552, 0.0
      %v2671 = vadd.f32 %v2669, %v2670
      %v2672 = vsel %vm738, %v2553, 0.0
      %v2673 = vadd.f32 %v2671, %v2672
      %v2674 = vsel %vm738, %v2554, 0.0
      %v2675 = vadd.f32 %v2673, %v2674
      %v2676 = vsel %vm738, %v2555, 0.0
      %v2677 = vadd.f32 %v2675, %v2676
      %v2678 = vsel %vm738, %v2556, 0.0
      %v2679 = vadd.f32 %v2677, %v2678
      %v2680 = vsel %vm738, %v2557, 0.0
      %v2681 = vadd.f32 %v2679, %v2680
      %v2682 = vsel %vm738, %v2558, 0.0
      %v2683 = vadd.f32 %v2681, %v2682
      %v2684 = vsel %vm738, %v2559, 0.0
      %v2685 = vadd.f32 %v2683, %v2684
      %v2686 = vsel %vm738, %v2560, 0.0
      %v2687 = vadd.f32 %v2685, %v2686
      %v2688 = vsel %vm738, %v2561, 0.0
      %v2689 = vadd.f32 %v2687, %v2688
      %v2690 = vrot.slane %v2689, 4
      %v2691 = vadd.f32 %v2689, %v2690
      %v2692 = vrot.slane %v2691, 2
      %v2693 = vadd.f32 %v2691, %v2692
      %v2694 = vrot.slane %v2693, 1
      %v2695 = vadd.f32 %v2693, %v2694
      %v2696 = vrcp.pop 256.0
      %v2697 = vmul.f32 256.0, %v2696
      %v2698 = vsub.f32 1.0, %v2697
      %v2699 = vmul.f32 %v2696, %v2698
      %v2700 = vadd.f32 %v2696, %v2699
      %vm2701 = vweird.f32 %v2696
      %v2702 = vsel %vm2701, %v2696, %v2700
      %v2703 = vmul.f32 %v2695, %v2702
      %vm2704 = vcmask 516096
      %2705 = vst.msk [vmem:[%s206] sm:$0x1] %vm2704, %v2703
      %p2706 = scmp.lt.s32.totalorder %s16, 1
      %s2707 = scalar_select %p2706, %s16, 1
      %s2708 = smul.addr %s2707, 32
      %s2709 = smul.addr %s2708, 4
      %s2710 = scalar_lea.vmem %s3, %s2709
      %p2711 = scmp.lt.s32.totalorder %s16, 1
      %s2712 = scalar_select %p2711, %s16, 1
      %s2713 = scalar_lea.vmem %s4, %s2712
      // Predicated region
      $region33: #{forward.5} parent=31 // pred_check
        %p2714 = pneg %p102
      $region34: #{forward.5} parent=31 // pred_check_branch
        %2716 = sbr.rel (%p2714) target = $region36
      $region35: #{forward.5} parent=31 // pred_region
        _
      $region36: #{forward.5} parent=31 // pred_fallthru
        _
      // Predicated region
      $region37: #{forward.5} parent=31 // pred_check
        %p2717 = pneg %p128
      $region38: #{forward.5} parent=31 // pred_check_branch
        %2719 = sbr.rel (%p2717) target = $region40
      $region39: #{forward.5} parent=31 // pred_region
        _
      $region40: #{forward.5} parent=31 // pred_fallthru
        _
    $region32: #{forward.5} parent=5 // pred_fallthru
      _
    %p2720 = scmp.le.s32.totalorder 2, %s11
    // Predicated region
    $region41: #{forward.5} parent=5 // pred_check
      %p2721 = pneg %p2720
    $region42: #{forward.5} parent=5 // pred_check_branch
      %2723 = sbr.rel (%p2721) target = $region44
    $region43: #{forward.5} parent=5 // pred_region
      %s2724 = ssub.s32 %s11, 2
      // Predicated region
      $region45: #{forward.5} parent=43 // pred_check
        %p2725 = pneg %p108
      $region46: #{forward.5} parent=43 // pred_check_branch
        %2727 = sbr.rel (%p2725) target = $region48
      $region47: #{forward.5} parent=43 // pred_region
        %p2728 = scmp.lt.s32.totalorder %s17, 1
        %s2729 = scalar_select %p2728, %s17, 1
        %s2730 = smul.addr %s2729, 32
        %s2731 = smul.addr %s2730, 4
        %s2732 = scalar_lea.vmem %s3, %s2731
      $region48: #{forward.5} parent=43 // pred_fallthru
        _
      // Predicated region
      $region49: #{forward.5} parent=43 // pred_check
        %p2733 = pneg %p134
      $region50: #{forward.5} parent=43 // pred_check_branch
        %2735 = sbr.rel (%p2733) target = $region52
      $region51: #{forward.5} parent=43 // pred_region
        %p2736 = scmp.lt.s32.totalorder %s17, 1
        %s2737 = scalar_select %p2736, %s17, 1
        %s2738 = scalar_lea.vmem %s4, %s2737
      $region52: #{forward.5} parent=43 // pred_fallthru
        _
    $region44: #{forward.5} parent=5 // pred_fallthru
      _
  $region6: #{forward.5} parent=0 // loop_footer
    %s15 = sadd.s32 1, %s11
  $region7: #{forward.5} parent=0 // loop_footer_branch
    %10 = sbr.rel target = $region3
  $region8: #{forward.5} parent=0 // loop_exit
    _

</llo_original>
